<compile_context>
chip_gen: v6e
topology: v6e:2x2x1
jax: 0.10.0
libtpu: 0.0.40
codegen_flags: <defaults>
</compile_context>

<pallas_src>
import functools

import jax
import jax.numpy as jnp
from jax.experimental import pallas as pl
from jax.experimental.pallas import tpu as pltpu


# ------------------------------ fused kernel ------------------------------

def _encoder_kernel(x_ref, bias_ref, eps_ref,
                    emb_w_ref, emb_b_ref,
                    wq_ref, wkv_ref, wu_ref, bu_ref,
                    g1_ref, b1_ref, wf1_ref, bf1_ref, wf2_ref, bf2_ref,
                    g2_ref, b2_ref,
                    top_w_ref, top_b_ref, fc1_w_ref, fc1_b_ref,
                    fc2_w_ref, fc2_b_ref,
                    out_ref,
                    *, batch, seq, emb, heads, depth, z_dim, out_w):
    BT = batch * seq
    he = heads * emb

    # ---- token embedding: (BT, Din) @ (Din, E) ----
    h = jnp.dot(x_ref[...].astype(jnp.bfloat16), emb_w_ref[...],
                preferred_element_type=jnp.float32) + emb_b_ref[...]

    # additive attention mask (block-diagonal over batch + key mask), (BT, BT)
    bias = bias_ref[...]

    # ---- transformer blocks (depth is small -> unrolled) ----
    for d in range(depth):
        h_bf = h.astype(jnp.bfloat16)

        # fused K|V projection, produced transposed so per-head slices are
        # sublane-aligned:  (2*H*E, BT)
        kv = jax.lax.dot_general(wkv_ref[d], h_bf,
                                 (((1,), (1,)), ((), ())),
                                 preferred_element_type=jnp.float32)
        kv_bf = kv.astype(jnp.bfloat16)

        att_proj = jnp.zeros((BT, emb), jnp.float32)
        for hd in range(heads):
            # per-head query projection (scale folded into the weights)
            q = jnp.dot(h_bf, wq_ref[d * heads + hd],
                        preferred_element_type=jnp.float32)          # (BT, e)
            kT = kv_bf[hd * emb:(hd + 1) * emb, :]                   # (e, BT)
            vT = kv_bf[he + hd * emb: he + (hd + 1) * emb, :]        # (e, BT)

            logits = jnp.dot(q.astype(jnp.bfloat16), kT,
                             preferred_element_type=jnp.float32) + bias
            logits = logits - jnp.max(logits, axis=-1, keepdims=True)
            p = jnp.exp(logits)
            p = p * pl.reciprocal(jnp.sum(p, axis=-1, keepdims=True),
                                  approx=True)

            att = jax.lax.dot_general(p.astype(jnp.bfloat16), vT,
                                      (((1,), (1,)), ((), ())),
                                      preferred_element_type=jnp.float32)
            # accumulate the unifyheads projection per head (no concat)
            att_proj = att_proj + jnp.dot(
                att.astype(jnp.bfloat16), wu_ref[d * heads + hd],
                preferred_element_type=jnp.float32)
        att_proj = att_proj + bu_ref[d]

        # residual + LayerNorm 1   (dropout p=0.0 -> identity)
        s = att_proj + h
        mu = jnp.mean(s, axis=-1, keepdims=True)
        var = jnp.mean(jnp.square(s - mu), axis=-1, keepdims=True)
        h1 = (s - mu) * jax.lax.rsqrt(var + 1e-5) * g1_ref[d] + b1_ref[d]

        # feed-forward (E -> 4E -> E), lane-dense 128-wide hidden
        ff = jnp.dot(h1.astype(jnp.bfloat16), wf1_ref[d],
                     preferred_element_type=jnp.float32) + bf1_ref[d]
        ff = jnp.maximum(ff, 0.0)
        ff = jnp.dot(ff.astype(jnp.bfloat16), wf2_ref[d],
                     preferred_element_type=jnp.float32) + bf2_ref[d]

        # residual + LayerNorm 2
        s2 = ff + h1
        mu2 = jnp.mean(s2, axis=-1, keepdims=True)
        var2 = jnp.mean(jnp.square(s2 - mu2), axis=-1, keepdims=True)
        h = (s2 - mu2) * jax.lax.rsqrt(var2 + 1e-5) * g2_ref[d] + b2_ref[d]

    # ---- toprobs + fc head ----
    y = jnp.dot(h.astype(jnp.bfloat16), top_w_ref[...],
                preferred_element_type=jnp.float32) + top_b_ref[...]   # (BT, z)
    f = jnp.dot(y.astype(jnp.bfloat16), fc1_w_ref[...],
                preferred_element_type=jnp.float32) + fc1_b_ref[...]
    f = jnp.maximum(f, 0.0)
    o = jnp.dot(f.astype(jnp.bfloat16), fc2_w_ref[...],
                preferred_element_type=jnp.float32) + fc2_b_ref[...]   # (BT, 2z)

    # ---- product-of-experts + reparameterization ----
    EPS = 1e-7
    T0 = 1.0 / ((1.0 + EPS) + EPS)             # prior expert: mu=0, lgvar=0
    mus = o[:, :z_dim]                         # (BT, z)
    prec = 1.0 / ((jnp.exp(o[:, z_dim:]) + EPS) + EPS)

    out_ref[...] = jnp.zeros_like(out_ref)     # lane-dense (B, out_w) slab
    for b in range(batch):
        prec_b = prec[b * seq:(b + 1) * seq, :]                  # (T, z)
        mus_b = mus[b * seq:(b + 1) * seq, :]
        sum_T = jnp.sum(prec_b, axis=0, keepdims=True) + T0      # (1, z)
        sum_mT = jnp.sum(mus_b * prec_b, axis=0, keepdims=True)  # prior mu = 0
        inv = 1.0 / sum_T                                        # poe_var
        poe_mu = sum_mT * inv
        enc = eps_ref[b:b + 1, :] * jnp.sqrt(inv) + poe_mu
        out_ref[b:b + 1, 0:z_dim] = enc                          # encoded_z
        out_ref[b:b + 1, z_dim:2 * z_dim] = poe_mu               # mu
        out_ref[b:b + 1, 2 * z_dim:3 * z_dim] = -jnp.log(sum_T)  # log poe_var


# ------------------------------ model glue ------------------------------

def init_params(key, input_dim, emb, heads, depth, z_dim):
    def dense(k, fin, fout, bias=True):
        k1, k2 = jax.random.split(k)
        lim = 1.0 / (fin ** 0.5)
        w = jax.random.uniform(k1, (fin, fout), jnp.float32, -lim, lim)
        b = (jax.random.uniform(k2, (fout,), jnp.float32, -lim, lim)
             if bias else None)
        return w, b

    he = heads * emb
    scale = float(emb) ** (-0.5)   # = (q/e^0.25)*(k/e^0.25), folded into Wq
    keys = jax.random.split(key, depth + 4)

    p = {}
    w_emb, b_emb = dense(keys[0], input_dim, emb)
    p["emb_w"] = w_emb.astype(jnp.bfloat16)
    p["emb_b"] = b_emb.reshape(1, emb)

    wq_l, wkv_l, wu_l, bu_l = [], [], [], []
    g1_l, b1_l, g2_l, b2_l = [], [], [], []
    wf1_l, bf1_l, wf2_l, bf2_l = [], [], [], []
    for d in range(depth):
        bk = jax.random.split(keys[1 + d], 6)
        wq, _ = dense(bk[0], emb, he, bias=False)       # (E, H*e), (in,out)
        wk, _ = dense(bk[1], emb, he, bias=False)
        wv, _ = dense(bk[2], emb, he, bias=False)
        wu, bu = dense(bk[3], he, emb)                  # (H*e, E)
        wf1, bf1 = dense(bk[4], emb, 4 * emb)
        wf2, bf2 = dense(bk[5], 4 * emb, emb)
        # per-head query weights (heads, E, e), attention scale folded in
        wq_l.append((wq * scale).reshape(emb, heads, emb).transpose(1, 0, 2))
        # fused, transposed K|V projection rows: (2*H*e, E)
        wkv_l.append(jnp.concatenate([wk.T, wv.T], axis=0))
        # per-head unify weights (heads, e, E)
        wu_l.append(wu.reshape(heads, emb, emb))
        bu_l.append(bu.reshape(1, emb))
        g1_l.append(jnp.ones((1, emb), jnp.float32))
        b1_l.append(jnp.zeros((1, emb), jnp.float32))
        wf1_l.append(wf1)
        bf1_l.append(bf1.reshape(1, 4 * emb))
        wf2_l.append(wf2)
        bf2_l.append(bf2.reshape(1, emb))
        g2_l.append(jnp.ones((1, emb), jnp.float32))
        b2_l.append(jnp.zeros((1, emb), jnp.float32))

    p["wq"] = jnp.concatenate(wq_l, axis=0).astype(jnp.bfloat16)  # (D*H, E, e)
    p["wkv"] = jnp.stack(wkv_l).astype(jnp.bfloat16)              # (D, 2He, E)
    p["wu"] = jnp.concatenate(wu_l, axis=0).astype(jnp.bfloat16)  # (D*H, e, E)
    p["bu"] = jnp.stack(bu_l)                                     # (D, 1, E)
    p["g1"] = jnp.stack(g1_l); p["b1"] = jnp.stack(b1_l)
    p["wf1"] = jnp.stack(wf1_l).astype(jnp.bfloat16)              # (D, E, 4E)
    p["bf1"] = jnp.stack(bf1_l)
    p["wf2"] = jnp.stack(wf2_l).astype(jnp.bfloat16)              # (D, 4E, E)
    p["bf2"] = jnp.stack(bf2_l)
    p["g2"] = jnp.stack(g2_l); p["b2"] = jnp.stack(b2_l)

    tw, tb = dense(keys[1 + depth], emb, z_dim)
    f1w, f1b = dense(keys[2 + depth], z_dim, z_dim)
    f2w, f2b = dense(keys[3 + depth], z_dim, 2 * z_dim)
    p["top_w"] = tw.astype(jnp.bfloat16); p["top_b"] = tb.reshape(1, z_dim)
    p["fc1_w"] = f1w.astype(jnp.bfloat16); p["fc1_b"] = f1b.reshape(1, z_dim)
    p["fc2_w"] = f2w.astype(jnp.bfloat16); p["fc2_b"] = f2b.reshape(1, 2 * z_dim)
    return p


def transformer_encoder_forward(params, x, mask, eps, *, emb, heads, depth,
                                z_dim):
    """x: (B, T, input_dim) f32, mask: (B, T) or (B, T, 1) with 1=attend,
    eps: (B, z_dim) ~ N(0,1).  Returns (encoded_z (B,z), mu_lgvar (B,2z))."""
    B, T, Din = x.shape
    BT = B * T
    if mask.ndim == 3:
        mask = mask[..., 0]
    m = mask.astype(jnp.float32)

    # Additive attention bias over the flattened (B*T) key axis:
    # 0 for same-batch & valid keys, -1e9 otherwise (masked or cross-batch).
    key_bias = (m - 1.0) * 1e9                                   # (B, T)
    same = jnp.eye(B, dtype=bool)
    bias = jnp.where(same[:, None, :, None],
                     jnp.broadcast_to(key_bias[None, None, :, :],
                                      (B, T, B, T)),
                     -1e9).reshape(BT, BT).astype(jnp.float32)

    out_w = max(128, ((3 * z_dim + 127) // 128) * 128)           # lane-dense
    x2 = x.reshape(BT, Din)

    kern = functools.partial(_encoder_kernel, batch=B, seq=T, emb=emb,
                             heads=heads, depth=depth, z_dim=z_dim,
                             out_w=out_w)

    args = (x2, bias, eps,
            params["emb_w"], params["emb_b"],
            params["wq"], params["wkv"], params["wu"], params["bu"],
            params["g1"], params["b1"], params["wf1"], params["bf1"],
            params["wf2"], params["bf2"], params["g2"], params["b2"],
            params["top_w"], params["top_b"], params["fc1_w"], params["fc1_b"],
            params["fc2_w"], params["fc2_b"])

    def full_spec(a):
        return pl.BlockSpec(a.shape, lambda i, _n=a.ndim: (0,) * _n)

    slab = pl.pallas_call(
        kern,
        out_shape=jax.ShapeDtypeStruct((B, out_w), jnp.float32),
        grid=(1,),
        in_specs=[full_spec(a) for a in args],
        out_specs=pl.BlockSpec((B, out_w), lambda i: (0, 0)),
        compiler_params=pltpu.CompilerParams(
            dimension_semantics=("arbitrary",)),
    )(*args)

    encoded_z = slab[:, :z_dim]
    mu_lgvar = slab[:, z_dim:3 * z_dim]
    return encoded_z, mu_lgvar


# --------------------------------- main ---------------------------------

if __name__ == "__main__":
    B, T = 2, 8
    input_dim = 16      # self.token_dim / input_shape
    z_dim = 32          # args.z_dim (emb == output_dim == z_dim)
    heads = 2           # args.enc_heads
    depth = 2           # args.enc_depth

    key = jax.random.PRNGKey(0)
    k_x, k_m, k_eps, k_p = jax.random.split(key, 4)

    x = jax.random.normal(k_x, (B, T, input_dim), jnp.float32)
    mask = (jax.random.uniform(k_m, (B, T)) > 0.3).astype(jnp.float32)
    mask = mask.at[:, 0].set(1.0)   # at least one valid key per batch element
    eps = jax.random.normal(k_eps, (B, z_dim), jnp.float32)  # randn_like noise

    params = init_params(k_p, input_dim, z_dim, heads, depth, z_dim)

    fwd = jax.jit(functools.partial(transformer_encoder_forward,
                                    emb=z_dim, heads=heads, depth=depth,
                                    z_dim=z_dim))
    encoded_z, mu_lgvar = fwd(params, x, mask, eps)
    jax.block_until_ready((encoded_z, mu_lgvar))

    assert encoded_z.shape == (B, z_dim)
    assert mu_lgvar.shape == (B, 2 * z_dim)
    assert bool(jnp.all(jnp.isfinite(encoded_z)))
    assert bool(jnp.all(jnp.isfinite(mu_lgvar)))
    print("KERNEL_OK")
</pallas_src>

<mosaic_0001>
module attributes {stable_mosaic.version = 11 : i64} {
  func.func @_encoder_kernel(%arg0: i32, %arg1: memref<16x16xf32, #tpu.memory_space<vmem>>, %arg2: memref<16x16xf32, #tpu.memory_space<vmem>>, %arg3: memref<2x32xf32, #tpu.memory_space<vmem>>, %arg4: memref<16x32xbf16, #tpu.memory_space<vmem>>, %arg5: memref<1x32xf32, #tpu.memory_space<vmem>>, %arg6: memref<4x32x32xbf16, #tpu.memory_space<vmem>>, %arg7: memref<2x128x32xbf16, #tpu.memory_space<vmem>>, %arg8: memref<4x32x32xbf16, #tpu.memory_space<vmem>>, %arg9: memref<2x1x32xf32, #tpu.memory_space<vmem>>, %arg10: memref<2x1x32xf32, #tpu.memory_space<vmem>>, %arg11: memref<2x1x32xf32, #tpu.memory_space<vmem>>, %arg12: memref<2x32x128xbf16, #tpu.memory_space<vmem>>, %arg13: memref<2x1x128xf32, #tpu.memory_space<vmem>>, %arg14: memref<2x128x32xbf16, #tpu.memory_space<vmem>>, %arg15: memref<2x1x32xf32, #tpu.memory_space<vmem>>, %arg16: memref<2x1x32xf32, #tpu.memory_space<vmem>>, %arg17: memref<2x1x32xf32, #tpu.memory_space<vmem>>, %arg18: memref<32x32xbf16, #tpu.memory_space<vmem>>, %arg19: memref<1x32xf32, #tpu.memory_space<vmem>>, %arg20: memref<32x32xbf16, #tpu.memory_space<vmem>>, %arg21: memref<1x32xf32, #tpu.memory_space<vmem>>, %arg22: memref<32x64xbf16, #tpu.memory_space<vmem>>, %arg23: memref<1x64xf32, #tpu.memory_space<vmem>>, %arg24: memref<2x128xf32, #tpu.memory_space<vmem>>) attributes {dimension_semantics = [#tpu.dimension_semantics<arbitrary>], iteration_bounds = array<i64: 1>, scalar_prefetch = 0 : i64, scratch_operands = 0 : i64, tpu.core_type = #tpu.core_type<tc>, window_params = [{pipeline_mode = #tpu.pipeline_mode<synchronous>, transform_indices = @transform_0, window_bounds = array<i64: 16, 16>}, {pipeline_mode = #tpu.pipeline_mode<synchronous>, transform_indices = @transform_1, window_bounds = array<i64: 16, 16>}, {pipeline_mode = #tpu.pipeline_mode<synchronous>, transform_indices = @transform_2, window_bounds = array<i64: 2, 32>}, {pipeline_mode = #tpu.pipeline_mode<synchronous>, transform_indices = @transform_3, window_bounds = array<i64: 16, 32>}, {pipeline_mode = #tpu.pipeline_mode<synchronous>, transform_indices = @transform_4, window_bounds = array<i64: 1, 32>}, {pipeline_mode = #tpu.pipeline_mode<synchronous>, transform_indices = @transform_5, window_bounds = array<i64: 4, 32, 32>}, {pipeline_mode = #tpu.pipeline_mode<synchronous>, transform_indices = @transform_6, window_bounds = array<i64: 2, 128, 32>}, {pipeline_mode = #tpu.pipeline_mode<synchronous>, transform_indices = @transform_7, window_bounds = array<i64: 4, 32, 32>}, {pipeline_mode = #tpu.pipeline_mode<synchronous>, transform_indices = @transform_8, window_bounds = array<i64: 2, 1, 32>}, {pipeline_mode = #tpu.pipeline_mode<synchronous>, transform_indices = @transform_9, window_bounds = array<i64: 2, 1, 32>}, {pipeline_mode = #tpu.pipeline_mode<synchronous>, transform_indices = @transform_10, window_bounds = array<i64: 2, 1, 32>}, {pipeline_mode = #tpu.pipeline_mode<synchronous>, transform_indices = @transform_11, window_bounds = array<i64: 2, 32, 128>}, {pipeline_mode = #tpu.pipeline_mode<synchronous>, transform_indices = @transform_12, window_bounds = array<i64: 2, 1, 128>}, {pipeline_mode = #tpu.pipeline_mode<synchronous>, transform_indices = @transform_13, window_bounds = array<i64: 2, 128, 32>}, {pipeline_mode = #tpu.pipeline_mode<synchronous>, transform_indices = @transform_14, window_bounds = array<i64: 2, 1, 32>}, {pipeline_mode = #tpu.pipeline_mode<synchronous>, transform_indices = @transform_15, window_bounds = array<i64: 2, 1, 32>}, {pipeline_mode = #tpu.pipeline_mode<synchronous>, transform_indices = @transform_16, window_bounds = array<i64: 2, 1, 32>}, {pipeline_mode = #tpu.pipeline_mode<synchronous>, transform_indices = @transform_17, window_bounds = array<i64: 32, 32>}, {pipeline_mode = #tpu.pipeline_mode<synchronous>, transform_indices = @transform_18, window_bounds = array<i64: 1, 32>}, {pipeline_mode = #tpu.pipeline_mode<synchronous>, transform_indices = @transform_19, window_bounds = array<i64: 32, 32>}, {pipeline_mode = #tpu.pipeline_mode<synchronous>, transform_indices = @transform_20, window_bounds = array<i64: 1, 32>}, {pipeline_mode = #tpu.pipeline_mode<synchronous>, transform_indices = @transform_21, window_bounds = array<i64: 32, 64>}, {pipeline_mode = #tpu.pipeline_mode<synchronous>, transform_indices = @transform_22, window_bounds = array<i64: 1, 64>}, {pipeline_mode = #tpu.pipeline_mode<synchronous>, transform_indices = @transform_23, window_bounds = array<i64: 2, 128>}]} {
    %c0 = arith.constant 0 : index
    %c0_0 = arith.constant 0 : index
    %0 = vector.load %arg1[%c0, %c0_0] : memref<16x16xf32, #tpu.memory_space<vmem>>, vector<16x16xf32>
    %1 = arith.truncf %0 : vector<16x16xf32> to vector<16x16xbf16>
    %c0_1 = arith.constant 0 : index
    %c0_2 = arith.constant 0 : index
    %2 = vector.load %arg4[%c0_1, %c0_2] : memref<16x32xbf16, #tpu.memory_space<vmem>>, vector<16x32xbf16>
    %cst = arith.constant dense<0.000000e+00> : vector<16x32xf32>
    %3 = tpu.matmul %1, %2, %cst {dimension_numbers = #tpu.dot_dimension_numbers<[1], [0], [0], [1], [0, 0, 1, 1], [], []>} : vector<16x16xbf16>, vector<16x32xbf16>, vector<16x32xf32> -> vector<16x32xf32>
    %c0_3 = arith.constant 0 : index
    %c0_4 = arith.constant 0 : index
    %4 = vector.load %arg5[%c0_3, %c0_4] : memref<1x32xf32, #tpu.memory_space<vmem>>, vector<1x32xf32>
    %5 = vector.broadcast %4 : vector<1x32xf32> to vector<16x32xf32>
    %6 = arith.addf %3, %5 : vector<16x32xf32>
    %c0_5 = arith.constant 0 : index
    %c0_6 = arith.constant 0 : index
    %7 = vector.load %arg2[%c0_5, %c0_6] : memref<16x16xf32, #tpu.memory_space<vmem>>, vector<16x16xf32>
    %8 = arith.truncf %6 : vector<16x32xf32> to vector<16x32xbf16>
    %c0_7 = arith.constant 0 : index
    %c0_8 = arith.constant 0 : index
    %c0_9 = arith.constant 0 : index
    %9 = vector.load %arg7[%c0_7, %c0_8, %c0_9] : memref<2x128x32xbf16, #tpu.memory_space<vmem>>, vector<1x128x32xbf16>
    %10 = vector.shape_cast %9 : vector<1x128x32xbf16> to vector<128x32xbf16>
    %cst_10 = arith.constant dense<0.000000e+00> : vector<128x16xf32>
    %11 = tpu.matmul %10, %8, %cst_10 {dimension_numbers = #tpu.dot_dimension_numbers<[1], [1], [0], [0], [0, 0, 1, 0], [], []>} : vector<128x32xbf16>, vector<16x32xbf16>, vector<128x16xf32> -> vector<128x16xf32>
    %12 = arith.truncf %11 : vector<128x16xf32> to vector<128x16xbf16>
    %cst_11 = arith.constant 0.000000e+00 : f32
    %13 = vector.broadcast %cst_11 : f32 to vector<16x32xf32>
    %c0_12 = arith.constant 0 : index
    %c0_13 = arith.constant 0 : index
    %c0_14 = arith.constant 0 : index
    %14 = vector.load %arg6[%c0_12, %c0_13, %c0_14] : memref<4x32x32xbf16, #tpu.memory_space<vmem>>, vector<1x32x32xbf16>
    %15 = vector.shape_cast %14 : vector<1x32x32xbf16> to vector<32x32xbf16>
    %cst_15 = arith.constant dense<0.000000e+00> : vector<16x32xf32>
    %16 = tpu.matmul %8, %15, %cst_15 {dimension_numbers = #tpu.dot_dimension_numbers<[1], [0], [0], [1], [0, 0, 1, 1], [], []>} : vector<16x32xbf16>, vector<32x32xbf16>, vector<16x32xf32> -> vector<16x32xf32>
    %17 = vector.extract_strided_slice %12 {offsets = [0, 0], sizes = [32, 16], strides = [1, 1]} : vector<128x16xbf16> to vector<32x16xbf16>
    %18 = vector.extract_strided_slice %12 {offsets = [64, 0], sizes = [32, 16], strides = [1, 1]} : vector<128x16xbf16> to vector<32x16xbf16>
    %19 = arith.truncf %16 : vector<16x32xf32> to vector<16x32xbf16>
    %cst_16 = arith.constant dense<0.000000e+00> : vector<16x16xf32>
    %20 = tpu.matmul %19, %17, %cst_16 {dimension_numbers = #tpu.dot_dimension_numbers<[1], [0], [0], [1], [0, 0, 1, 1], [], []>} : vector<16x32xbf16>, vector<32x16xbf16>, vector<16x16xf32> -> vector<16x16xf32>
    %21 = arith.addf %20, %7 : vector<16x16xf32>
    %cst_17 = arith.constant dense<0xFF800000> : vector<16xf32>
    %22 = vector.multi_reduction <maximumf>, %21, %cst_17 [1] : vector<16x16xf32> to vector<16xf32>
    %23 = vector.shape_cast %22 : vector<16xf32> to vector<16x1xf32>
    %24 = vector.broadcast %23 : vector<16x1xf32> to vector<16x16xf32>
    %25 = arith.subf %21, %24 : vector<16x16xf32>
    %26 = math.exp %25 : vector<16x16xf32>
    %cst_18 = arith.constant dense<0.000000e+00> : vector<16xf32>
    %27 = vector.multi_reduction <add>, %26, %cst_18 [1] : vector<16x16xf32> to vector<16xf32>
    %28 = vector.shape_cast %27 : vector<16xf32> to vector<16x1xf32>
    %29 = tpu.reciprocal %28 {approx = true} : vector<16x1xf32> -> vector<16x1xf32>
    %30 = vector.broadcast %29 : vector<16x1xf32> to vector<16x16xf32>
    %31 = arith.mulf %26, %30 : vector<16x16xf32>
    %32 = arith.truncf %31 : vector<16x16xf32> to vector<16x16xbf16>
    %cst_19 = arith.constant dense<0.000000e+00> : vector<16x32xf32>
    %33 = tpu.matmul %32, %18, %cst_19 {dimension_numbers = #tpu.dot_dimension_numbers<[1], [1], [0], [0], [0, 0, 1, 0], [], []>} : vector<16x16xbf16>, vector<32x16xbf16>, vector<16x32xf32> -> vector<16x32xf32>
    %34 = arith.truncf %33 : vector<16x32xf32> to vector<16x32xbf16>
    %c0_20 = arith.constant 0 : index
    %c0_21 = arith.constant 0 : index
    %c0_22 = arith.constant 0 : index
    %35 = vector.load %arg8[%c0_20, %c0_21, %c0_22] : memref<4x32x32xbf16, #tpu.memory_space<vmem>>, vector<1x32x32xbf16>
    %36 = vector.shape_cast %35 : vector<1x32x32xbf16> to vector<32x32xbf16>
    %cst_23 = arith.constant dense<0.000000e+00> : vector<16x32xf32>
    %37 = tpu.matmul %34, %36, %cst_23 {dimension_numbers = #tpu.dot_dimension_numbers<[1], [0], [0], [1], [0, 0, 1, 1], [], []>} : vector<16x32xbf16>, vector<32x32xbf16>, vector<16x32xf32> -> vector<16x32xf32>
    %38 = arith.addf %13, %37 : vector<16x32xf32>
    %c1 = arith.constant 1 : index
    %c0_24 = arith.constant 0 : index
    %c0_25 = arith.constant 0 : index
    %39 = vector.load %arg6[%c1, %c0_24, %c0_25] : memref<4x32x32xbf16, #tpu.memory_space<vmem>>, vector<1x32x32xbf16>
    %40 = vector.shape_cast %39 : vector<1x32x32xbf16> to vector<32x32xbf16>
    %cst_26 = arith.constant dense<0.000000e+00> : vector<16x32xf32>
    %41 = tpu.matmul %8, %40, %cst_26 {dimension_numbers = #tpu.dot_dimension_numbers<[1], [0], [0], [1], [0, 0, 1, 1], [], []>} : vector<16x32xbf16>, vector<32x32xbf16>, vector<16x32xf32> -> vector<16x32xf32>
    %42 = vector.extract_strided_slice %12 {offsets = [32, 0], sizes = [32, 16], strides = [1, 1]} : vector<128x16xbf16> to vector<32x16xbf16>
    %43 = vector.extract_strided_slice %12 {offsets = [96, 0], sizes = [32, 16], strides = [1, 1]} : vector<128x16xbf16> to vector<32x16xbf16>
    %44 = arith.truncf %41 : vector<16x32xf32> to vector<16x32xbf16>
    %cst_27 = arith.constant dense<0.000000e+00> : vector<16x16xf32>
    %45 = tpu.matmul %44, %42, %cst_27 {dimension_numbers = #tpu.dot_dimension_numbers<[1], [0], [0], [1], [0, 0, 1, 1], [], []>} : vector<16x32xbf16>, vector<32x16xbf16>, vector<16x16xf32> -> vector<16x16xf32>
    %46 = arith.addf %45, %7 : vector<16x16xf32>
    %cst_28 = arith.constant dense<0xFF800000> : vector<16xf32>
    %47 = vector.multi_reduction <maximumf>, %46, %cst_28 [1] : vector<16x16xf32> to vector<16xf32>
    %48 = vector.shape_cast %47 : vector<16xf32> to vector<16x1xf32>
    %49 = vector.broadcast %48 : vector<16x1xf32> to vector<16x16xf32>
    %50 = arith.subf %46, %49 : vector<16x16xf32>
    %51 = math.exp %50 : vector<16x16xf32>
    %cst_29 = arith.constant dense<0.000000e+00> : vector<16xf32>
    %52 = vector.multi_reduction <add>, %51, %cst_29 [1] : vector<16x16xf32> to vector<16xf32>
    %53 = vector.shape_cast %52 : vector<16xf32> to vector<16x1xf32>
    %54 = tpu.reciprocal %53 {approx = true} : vector<16x1xf32> -> vector<16x1xf32>
    %55 = vector.broadcast %54 : vector<16x1xf32> to vector<16x16xf32>
    %56 = arith.mulf %51, %55 : vector<16x16xf32>
    %57 = arith.truncf %56 : vector<16x16xf32> to vector<16x16xbf16>
    %cst_30 = arith.constant dense<0.000000e+00> : vector<16x32xf32>
    %58 = tpu.matmul %57, %43, %cst_30 {dimension_numbers = #tpu.dot_dimension_numbers<[1], [1], [0], [0], [0, 0, 1, 0], [], []>} : vector<16x16xbf16>, vector<32x16xbf16>, vector<16x32xf32> -> vector<16x32xf32>
    %59 = arith.truncf %58 : vector<16x32xf32> to vector<16x32xbf16>
    %c1_31 = arith.constant 1 : index
    %c0_32 = arith.constant 0 : index
    %c0_33 = arith.constant 0 : index
    %60 = vector.load %arg8[%c1_31, %c0_32, %c0_33] : memref<4x32x32xbf16, #tpu.memory_space<vmem>>, vector<1x32x32xbf16>
    %61 = vector.shape_cast %60 : vector<1x32x32xbf16> to vector<32x32xbf16>
    %cst_34 = arith.constant dense<0.000000e+00> : vector<16x32xf32>
    %62 = tpu.matmul %59, %61, %cst_34 {dimension_numbers = #tpu.dot_dimension_numbers<[1], [0], [0], [1], [0, 0, 1, 1], [], []>} : vector<16x32xbf16>, vector<32x32xbf16>, vector<16x32xf32> -> vector<16x32xf32>
    %63 = arith.addf %38, %62 : vector<16x32xf32>
    %c0_35 = arith.constant 0 : index
    %c0_36 = arith.constant 0 : index
    %c0_37 = arith.constant 0 : index
    %64 = vector.load %arg9[%c0_35, %c0_36, %c0_37] : memref<2x1x32xf32, #tpu.memory_space<vmem>>, vector<1x1x32xf32>
    %65 = vector.shape_cast %64 : vector<1x1x32xf32> to vector<1x32xf32>
    %66 = vector.broadcast %65 : vector<1x32xf32> to vector<16x32xf32>
    %67 = arith.addf %63, %66 : vector<16x32xf32>
    %68 = arith.addf %67, %6 : vector<16x32xf32>
    %cst_38 = arith.constant dense<0.000000e+00> : vector<16xf32>
    %69 = vector.multi_reduction <add>, %68, %cst_38 [1] : vector<16x32xf32> to vector<16xf32>
    %70 = vector.shape_cast %69 : vector<16xf32> to vector<16x1xf32>
    %cst_39 = arith.constant 3.200000e+01 : f32
    %71 = vector.broadcast %cst_39 : f32 to vector<16x1xf32>
    %72 = arith.divf %70, %71 : vector<16x1xf32>
    %73 = vector.broadcast %72 : vector<16x1xf32> to vector<16x32xf32>
    %74 = arith.subf %68, %73 : vector<16x32xf32>
    %75 = arith.mulf %74, %74 : vector<16x32xf32>
    %cst_40 = arith.constant dense<0.000000e+00> : vector<16xf32>
    %76 = vector.multi_reduction <add>, %75, %cst_40 [1] : vector<16x32xf32> to vector<16xf32>
    %77 = vector.shape_cast %76 : vector<16xf32> to vector<16x1xf32>
    %cst_41 = arith.constant 3.200000e+01 : f32
    %78 = vector.broadcast %cst_41 : f32 to vector<16x1xf32>
    %79 = arith.divf %77, %78 : vector<16x1xf32>
    %80 = vector.broadcast %72 : vector<16x1xf32> to vector<16x32xf32>
    %81 = arith.subf %68, %80 : vector<16x32xf32>
    %cst_42 = arith.constant 9.99999974E-6 : f32
    %82 = vector.broadcast %cst_42 : f32 to vector<16x1xf32>
    %83 = arith.addf %79, %82 : vector<16x1xf32>
    %84 = math.rsqrt %83 : vector<16x1xf32>
    %85 = vector.broadcast %84 : vector<16x1xf32> to vector<16x32xf32>
    %86 = arith.mulf %81, %85 : vector<16x32xf32>
    %c0_43 = arith.constant 0 : index
    %c0_44 = arith.constant 0 : index
    %c0_45 = arith.constant 0 : index
    %87 = vector.load %arg10[%c0_43, %c0_44, %c0_45] : memref<2x1x32xf32, #tpu.memory_space<vmem>>, vector<1x1x32xf32>
    %88 = vector.shape_cast %87 : vector<1x1x32xf32> to vector<1x32xf32>
    %89 = vector.broadcast %88 : vector<1x32xf32> to vector<16x32xf32>
    %90 = arith.mulf %86, %89 : vector<16x32xf32>
    %c0_46 = arith.constant 0 : index
    %c0_47 = arith.constant 0 : index
    %c0_48 = arith.constant 0 : index
    %91 = vector.load %arg11[%c0_46, %c0_47, %c0_48] : memref<2x1x32xf32, #tpu.memory_space<vmem>>, vector<1x1x32xf32>
    %92 = vector.shape_cast %91 : vector<1x1x32xf32> to vector<1x32xf32>
    %93 = vector.broadcast %92 : vector<1x32xf32> to vector<16x32xf32>
    %94 = arith.addf %90, %93 : vector<16x32xf32>
    %95 = arith.truncf %94 : vector<16x32xf32> to vector<16x32xbf16>
    %c0_49 = arith.constant 0 : index
    %c0_50 = arith.constant 0 : index
    %c0_51 = arith.constant 0 : index
    %96 = vector.load %arg12[%c0_49, %c0_50, %c0_51] : memref<2x32x128xbf16, #tpu.memory_space<vmem>>, vector<1x32x128xbf16>
    %97 = vector.shape_cast %96 : vector<1x32x128xbf16> to vector<32x128xbf16>
    %cst_52 = arith.constant dense<0.000000e+00> : vector<16x128xf32>
    %98 = tpu.matmul %95, %97, %cst_52 {dimension_numbers = #tpu.dot_dimension_numbers<[1], [0], [0], [1], [0, 0, 1, 1], [], []>} : vector<16x32xbf16>, vector<32x128xbf16>, vector<16x128xf32> -> vector<16x128xf32>
    %c0_53 = arith.constant 0 : index
    %c0_54 = arith.constant 0 : index
    %c0_55 = arith.constant 0 : index
    %99 = vector.load %arg13[%c0_53, %c0_54, %c0_55] : memref<2x1x128xf32, #tpu.memory_space<vmem>>, vector<1x1x128xf32>
    %100 = vector.shape_cast %99 : vector<1x1x128xf32> to vector<1x128xf32>
    %101 = vector.broadcast %100 : vector<1x128xf32> to vector<16x128xf32>
    %102 = arith.addf %98, %101 : vector<16x128xf32>
    %cst_56 = arith.constant 0.000000e+00 : f32
    %103 = vector.broadcast %cst_56 : f32 to vector<16x128xf32>
    %104 = arith.maximumf %102, %103 : vector<16x128xf32>
    %105 = arith.truncf %104 : vector<16x128xf32> to vector<16x128xbf16>
    %c0_57 = arith.constant 0 : index
    %c0_58 = arith.constant 0 : index
    %c0_59 = arith.constant 0 : index
    %106 = vector.load %arg14[%c0_57, %c0_58, %c0_59] : memref<2x128x32xbf16, #tpu.memory_space<vmem>>, vector<1x128x32xbf16>
    %107 = vector.shape_cast %106 : vector<1x128x32xbf16> to vector<128x32xbf16>
    %cst_60 = arith.constant dense<0.000000e+00> : vector<16x32xf32>
    %108 = tpu.matmul %105, %107, %cst_60 {dimension_numbers = #tpu.dot_dimension_numbers<[1], [0], [0], [1], [0, 0, 1, 1], [], []>} : vector<16x128xbf16>, vector<128x32xbf16>, vector<16x32xf32> -> vector<16x32xf32>
    %c0_61 = arith.constant 0 : index
    %c0_62 = arith.constant 0 : index
    %c0_63 = arith.constant 0 : index
    %109 = vector.load %arg15[%c0_61, %c0_62, %c0_63] : memref<2x1x32xf32, #tpu.memory_space<vmem>>, vector<1x1x32xf32>
    %110 = vector.shape_cast %109 : vector<1x1x32xf32> to vector<1x32xf32>
    %111 = vector.broadcast %110 : vector<1x32xf32> to vector<16x32xf32>
    %112 = arith.addf %108, %111 : vector<16x32xf32>
    %113 = arith.addf %112, %94 : vector<16x32xf32>
    %cst_64 = arith.constant dense<0.000000e+00> : vector<16xf32>
    %114 = vector.multi_reduction <add>, %113, %cst_64 [1] : vector<16x32xf32> to vector<16xf32>
    %115 = vector.shape_cast %114 : vector<16xf32> to vector<16x1xf32>
    %cst_65 = arith.constant 3.200000e+01 : f32
    %116 = vector.broadcast %cst_65 : f32 to vector<16x1xf32>
    %117 = arith.divf %115, %116 : vector<16x1xf32>
    %118 = vector.broadcast %117 : vector<16x1xf32> to vector<16x32xf32>
    %119 = arith.subf %113, %118 : vector<16x32xf32>
    %120 = arith.mulf %119, %119 : vector<16x32xf32>
    %cst_66 = arith.constant dense<0.000000e+00> : vector<16xf32>
    %121 = vector.multi_reduction <add>, %120, %cst_66 [1] : vector<16x32xf32> to vector<16xf32>
    %122 = vector.shape_cast %121 : vector<16xf32> to vector<16x1xf32>
    %cst_67 = arith.constant 3.200000e+01 : f32
    %123 = vector.broadcast %cst_67 : f32 to vector<16x1xf32>
    %124 = arith.divf %122, %123 : vector<16x1xf32>
    %125 = vector.broadcast %117 : vector<16x1xf32> to vector<16x32xf32>
    %126 = arith.subf %113, %125 : vector<16x32xf32>
    %cst_68 = arith.constant 9.99999974E-6 : f32
    %127 = vector.broadcast %cst_68 : f32 to vector<16x1xf32>
    %128 = arith.addf %124, %127 : vector<16x1xf32>
    %129 = math.rsqrt %128 : vector<16x1xf32>
    %130 = vector.broadcast %129 : vector<16x1xf32> to vector<16x32xf32>
    %131 = arith.mulf %126, %130 : vector<16x32xf32>
    %c0_69 = arith.constant 0 : index
    %c0_70 = arith.constant 0 : index
    %c0_71 = arith.constant 0 : index
    %132 = vector.load %arg16[%c0_69, %c0_70, %c0_71] : memref<2x1x32xf32, #tpu.memory_space<vmem>>, vector<1x1x32xf32>
    %133 = vector.shape_cast %132 : vector<1x1x32xf32> to vector<1x32xf32>
    %134 = vector.broadcast %133 : vector<1x32xf32> to vector<16x32xf32>
    %135 = arith.mulf %131, %134 : vector<16x32xf32>
    %c0_72 = arith.constant 0 : index
    %c0_73 = arith.constant 0 : index
    %c0_74 = arith.constant 0 : index
    %136 = vector.load %arg17[%c0_72, %c0_73, %c0_74] : memref<2x1x32xf32, #tpu.memory_space<vmem>>, vector<1x1x32xf32>
    %137 = vector.shape_cast %136 : vector<1x1x32xf32> to vector<1x32xf32>
    %138 = vector.broadcast %137 : vector<1x32xf32> to vector<16x32xf32>
    %139 = arith.addf %135, %138 : vector<16x32xf32>
    %140 = arith.truncf %139 : vector<16x32xf32> to vector<16x32xbf16>
    %c1_75 = arith.constant 1 : index
    %c0_76 = arith.constant 0 : index
    %c0_77 = arith.constant 0 : index
    %141 = vector.load %arg7[%c1_75, %c0_76, %c0_77] : memref<2x128x32xbf16, #tpu.memory_space<vmem>>, vector<1x128x32xbf16>
    %142 = vector.shape_cast %141 : vector<1x128x32xbf16> to vector<128x32xbf16>
    %cst_78 = arith.constant dense<0.000000e+00> : vector<128x16xf32>
    %143 = tpu.matmul %142, %140, %cst_78 {dimension_numbers = #tpu.dot_dimension_numbers<[1], [1], [0], [0], [0, 0, 1, 0], [], []>} : vector<128x32xbf16>, vector<16x32xbf16>, vector<128x16xf32> -> vector<128x16xf32>
    %144 = arith.truncf %143 : vector<128x16xf32> to vector<128x16xbf16>
    %cst_79 = arith.constant 0.000000e+00 : f32
    %145 = vector.broadcast %cst_79 : f32 to vector<16x32xf32>
    %c2 = arith.constant 2 : index
    %c0_80 = arith.constant 0 : index
    %c0_81 = arith.constant 0 : index
    %146 = vector.load %arg6[%c2, %c0_80, %c0_81] : memref<4x32x32xbf16, #tpu.memory_space<vmem>>, vector<1x32x32xbf16>
    %147 = vector.shape_cast %146 : vector<1x32x32xbf16> to vector<32x32xbf16>
    %cst_82 = arith.constant dense<0.000000e+00> : vector<16x32xf32>
    %148 = tpu.matmul %140, %147, %cst_82 {dimension_numbers = #tpu.dot_dimension_numbers<[1], [0], [0], [1], [0, 0, 1, 1], [], []>} : vector<16x32xbf16>, vector<32x32xbf16>, vector<16x32xf32> -> vector<16x32xf32>
    %149 = vector.extract_strided_slice %144 {offsets = [0, 0], sizes = [32, 16], strides = [1, 1]} : vector<128x16xbf16> to vector<32x16xbf16>
    %150 = vector.extract_strided_slice %144 {offsets = [64, 0], sizes = [32, 16], strides = [1, 1]} : vector<128x16xbf16> to vector<32x16xbf16>
    %151 = arith.truncf %148 : vector<16x32xf32> to vector<16x32xbf16>
    %cst_83 = arith.constant dense<0.000000e+00> : vector<16x16xf32>
    %152 = tpu.matmul %151, %149, %cst_83 {dimension_numbers = #tpu.dot_dimension_numbers<[1], [0], [0], [1], [0, 0, 1, 1], [], []>} : vector<16x32xbf16>, vector<32x16xbf16>, vector<16x16xf32> -> vector<16x16xf32>
    %153 = arith.addf %152, %7 : vector<16x16xf32>
    %cst_84 = arith.constant dense<0xFF800000> : vector<16xf32>
    %154 = vector.multi_reduction <maximumf>, %153, %cst_84 [1] : vector<16x16xf32> to vector<16xf32>
    %155 = vector.shape_cast %154 : vector<16xf32> to vector<16x1xf32>
    %156 = vector.broadcast %155 : vector<16x1xf32> to vector<16x16xf32>
    %157 = arith.subf %153, %156 : vector<16x16xf32>
    %158 = math.exp %157 : vector<16x16xf32>
    %cst_85 = arith.constant dense<0.000000e+00> : vector<16xf32>
    %159 = vector.multi_reduction <add>, %158, %cst_85 [1] : vector<16x16xf32> to vector<16xf32>
    %160 = vector.shape_cast %159 : vector<16xf32> to vector<16x1xf32>
    %161 = tpu.reciprocal %160 {approx = true} : vector<16x1xf32> -> vector<16x1xf32>
    %162 = vector.broadcast %161 : vector<16x1xf32> to vector<16x16xf32>
    %163 = arith.mulf %158, %162 : vector<16x16xf32>
    %164 = arith.truncf %163 : vector<16x16xf32> to vector<16x16xbf16>
    %cst_86 = arith.constant dense<0.000000e+00> : vector<16x32xf32>
    %165 = tpu.matmul %164, %150, %cst_86 {dimension_numbers = #tpu.dot_dimension_numbers<[1], [1], [0], [0], [0, 0, 1, 0], [], []>} : vector<16x16xbf16>, vector<32x16xbf16>, vector<16x32xf32> -> vector<16x32xf32>
    %166 = arith.truncf %165 : vector<16x32xf32> to vector<16x32xbf16>
    %c2_87 = arith.constant 2 : index
    %c0_88 = arith.constant 0 : index
    %c0_89 = arith.constant 0 : index
    %167 = vector.load %arg8[%c2_87, %c0_88, %c0_89] : memref<4x32x32xbf16, #tpu.memory_space<vmem>>, vector<1x32x32xbf16>
    %168 = vector.shape_cast %167 : vector<1x32x32xbf16> to vector<32x32xbf16>
    %cst_90 = arith.constant dense<0.000000e+00> : vector<16x32xf32>
    %169 = tpu.matmul %166, %168, %cst_90 {dimension_numbers = #tpu.dot_dimension_numbers<[1], [0], [0], [1], [0, 0, 1, 1], [], []>} : vector<16x32xbf16>, vector<32x32xbf16>, vector<16x32xf32> -> vector<16x32xf32>
    %170 = arith.addf %145, %169 : vector<16x32xf32>
    %c3 = arith.constant 3 : index
    %c0_91 = arith.constant 0 : index
    %c0_92 = arith.constant 0 : index
    %171 = vector.load %arg6[%c3, %c0_91, %c0_92] : memref<4x32x32xbf16, #tpu.memory_space<vmem>>, vector<1x32x32xbf16>
    %172 = vector.shape_cast %171 : vector<1x32x32xbf16> to vector<32x32xbf16>
    %cst_93 = arith.constant dense<0.000000e+00> : vector<16x32xf32>
    %173 = tpu.matmul %140, %172, %cst_93 {dimension_numbers = #tpu.dot_dimension_numbers<[1], [0], [0], [1], [0, 0, 1, 1], [], []>} : vector<16x32xbf16>, vector<32x32xbf16>, vector<16x32xf32> -> vector<16x32xf32>
    %174 = vector.extract_strided_slice %144 {offsets = [32, 0], sizes = [32, 16], strides = [1, 1]} : vector<128x16xbf16> to vector<32x16xbf16>
    %175 = vector.extract_strided_slice %144 {offsets = [96, 0], sizes = [32, 16], strides = [1, 1]} : vector<128x16xbf16> to vector<32x16xbf16>
    %176 = arith.truncf %173 : vector<16x32xf32> to vector<16x32xbf16>
    %cst_94 = arith.constant dense<0.000000e+00> : vector<16x16xf32>
    %177 = tpu.matmul %176, %174, %cst_94 {dimension_numbers = #tpu.dot_dimension_numbers<[1], [0], [0], [1], [0, 0, 1, 1], [], []>} : vector<16x32xbf16>, vector<32x16xbf16>, vector<16x16xf32> -> vector<16x16xf32>
    %178 = arith.addf %177, %7 : vector<16x16xf32>
    %cst_95 = arith.constant dense<0xFF800000> : vector<16xf32>
    %179 = vector.multi_reduction <maximumf>, %178, %cst_95 [1] : vector<16x16xf32> to vector<16xf32>
    %180 = vector.shape_cast %179 : vector<16xf32> to vector<16x1xf32>
    %181 = vector.broadcast %180 : vector<16x1xf32> to vector<16x16xf32>
    %182 = arith.subf %178, %181 : vector<16x16xf32>
    %183 = math.exp %182 : vector<16x16xf32>
    %cst_96 = arith.constant dense<0.000000e+00> : vector<16xf32>
    %184 = vector.multi_reduction <add>, %183, %cst_96 [1] : vector<16x16xf32> to vector<16xf32>
    %185 = vector.shape_cast %184 : vector<16xf32> to vector<16x1xf32>
    %186 = tpu.reciprocal %185 {approx = true} : vector<16x1xf32> -> vector<16x1xf32>
    %187 = vector.broadcast %186 : vector<16x1xf32> to vector<16x16xf32>
    %188 = arith.mulf %183, %187 : vector<16x16xf32>
    %189 = arith.truncf %188 : vector<16x16xf32> to vector<16x16xbf16>
    %cst_97 = arith.constant dense<0.000000e+00> : vector<16x32xf32>
    %190 = tpu.matmul %189, %175, %cst_97 {dimension_numbers = #tpu.dot_dimension_numbers<[1], [1], [0], [0], [0, 0, 1, 0], [], []>} : vector<16x16xbf16>, vector<32x16xbf16>, vector<16x32xf32> -> vector<16x32xf32>
    %191 = arith.truncf %190 : vector<16x32xf32> to vector<16x32xbf16>
    %c3_98 = arith.constant 3 : index
    %c0_99 = arith.constant 0 : index
    %c0_100 = arith.constant 0 : index
    %192 = vector.load %arg8[%c3_98, %c0_99, %c0_100] : memref<4x32x32xbf16, #tpu.memory_space<vmem>>, vector<1x32x32xbf16>
    %193 = vector.shape_cast %192 : vector<1x32x32xbf16> to vector<32x32xbf16>
    %cst_101 = arith.constant dense<0.000000e+00> : vector<16x32xf32>
    %194 = tpu.matmul %191, %193, %cst_101 {dimension_numbers = #tpu.dot_dimension_numbers<[1], [0], [0], [1], [0, 0, 1, 1], [], []>} : vector<16x32xbf16>, vector<32x32xbf16>, vector<16x32xf32> -> vector<16x32xf32>
    %195 = arith.addf %170, %194 : vector<16x32xf32>
    %c1_102 = arith.constant 1 : index
    %c0_103 = arith.constant 0 : index
    %c0_104 = arith.constant 0 : index
    %196 = vector.load %arg9[%c1_102, %c0_103, %c0_104] : memref<2x1x32xf32, #tpu.memory_space<vmem>>, vector<1x1x32xf32>
    %197 = vector.shape_cast %196 : vector<1x1x32xf32> to vector<1x32xf32>
    %198 = vector.broadcast %197 : vector<1x32xf32> to vector<16x32xf32>
    %199 = arith.addf %195, %198 : vector<16x32xf32>
    %200 = arith.addf %199, %139 : vector<16x32xf32>
    %cst_105 = arith.constant dense<0.000000e+00> : vector<16xf32>
    %201 = vector.multi_reduction <add>, %200, %cst_105 [1] : vector<16x32xf32> to vector<16xf32>
    %202 = vector.shape_cast %201 : vector<16xf32> to vector<16x1xf32>
    %cst_106 = arith.constant 3.200000e+01 : f32
    %203 = vector.broadcast %cst_106 : f32 to vector<16x1xf32>
    %204 = arith.divf %202, %203 : vector<16x1xf32>
    %205 = vector.broadcast %204 : vector<16x1xf32> to vector<16x32xf32>
    %206 = arith.subf %200, %205 : vector<16x32xf32>
    %207 = arith.mulf %206, %206 : vector<16x32xf32>
    %cst_107 = arith.constant dense<0.000000e+00> : vector<16xf32>
    %208 = vector.multi_reduction <add>, %207, %cst_107 [1] : vector<16x32xf32> to vector<16xf32>
    %209 = vector.shape_cast %208 : vector<16xf32> to vector<16x1xf32>
    %cst_108 = arith.constant 3.200000e+01 : f32
    %210 = vector.broadcast %cst_108 : f32 to vector<16x1xf32>
    %211 = arith.divf %209, %210 : vector<16x1xf32>
    %212 = vector.broadcast %204 : vector<16x1xf32> to vector<16x32xf32>
    %213 = arith.subf %200, %212 : vector<16x32xf32>
    %cst_109 = arith.constant 9.99999974E-6 : f32
    %214 = vector.broadcast %cst_109 : f32 to vector<16x1xf32>
    %215 = arith.addf %211, %214 : vector<16x1xf32>
    %216 = math.rsqrt %215 : vector<16x1xf32>
    %217 = vector.broadcast %216 : vector<16x1xf32> to vector<16x32xf32>
    %218 = arith.mulf %213, %217 : vector<16x32xf32>
    %c1_110 = arith.constant 1 : index
    %c0_111 = arith.constant 0 : index
    %c0_112 = arith.constant 0 : index
    %219 = vector.load %arg10[%c1_110, %c0_111, %c0_112] : memref<2x1x32xf32, #tpu.memory_space<vmem>>, vector<1x1x32xf32>
    %220 = vector.shape_cast %219 : vector<1x1x32xf32> to vector<1x32xf32>
    %221 = vector.broadcast %220 : vector<1x32xf32> to vector<16x32xf32>
    %222 = arith.mulf %218, %221 : vector<16x32xf32>
    %c1_113 = arith.constant 1 : index
    %c0_114 = arith.constant 0 : index
    %c0_115 = arith.constant 0 : index
    %223 = vector.load %arg11[%c1_113, %c0_114, %c0_115] : memref<2x1x32xf32, #tpu.memory_space<vmem>>, vector<1x1x32xf32>
    %224 = vector.shape_cast %223 : vector<1x1x32xf32> to vector<1x32xf32>
    %225 = vector.broadcast %224 : vector<1x32xf32> to vector<16x32xf32>
    %226 = arith.addf %222, %225 : vector<16x32xf32>
    %227 = arith.truncf %226 : vector<16x32xf32> to vector<16x32xbf16>
    %c1_116 = arith.constant 1 : index
    %c0_117 = arith.constant 0 : index
    %c0_118 = arith.constant 0 : index
    %228 = vector.load %arg12[%c1_116, %c0_117, %c0_118] : memref<2x32x128xbf16, #tpu.memory_space<vmem>>, vector<1x32x128xbf16>
    %229 = vector.shape_cast %228 : vector<1x32x128xbf16> to vector<32x128xbf16>
    %cst_119 = arith.constant dense<0.000000e+00> : vector<16x128xf32>
    %230 = tpu.matmul %227, %229, %cst_119 {dimension_numbers = #tpu.dot_dimension_numbers<[1], [0], [0], [1], [0, 0, 1, 1], [], []>} : vector<16x32xbf16>, vector<32x128xbf16>, vector<16x128xf32> -> vector<16x128xf32>
    %c1_120 = arith.constant 1 : index
    %c0_121 = arith.constant 0 : index
    %c0_122 = arith.constant 0 : index
    %231 = vector.load %arg13[%c1_120, %c0_121, %c0_122] : memref<2x1x128xf32, #tpu.memory_space<vmem>>, vector<1x1x128xf32>
    %232 = vector.shape_cast %231 : vector<1x1x128xf32> to vector<1x128xf32>
    %233 = vector.broadcast %232 : vector<1x128xf32> to vector<16x128xf32>
    %234 = arith.addf %230, %233 : vector<16x128xf32>
    %cst_123 = arith.constant 0.000000e+00 : f32
    %235 = vector.broadcast %cst_123 : f32 to vector<16x128xf32>
    %236 = arith.maximumf %234, %235 : vector<16x128xf32>
    %237 = arith.truncf %236 : vector<16x128xf32> to vector<16x128xbf16>
    %c1_124 = arith.constant 1 : index
    %c0_125 = arith.constant 0 : index
    %c0_126 = arith.constant 0 : index
    %238 = vector.load %arg14[%c1_124, %c0_125, %c0_126] : memref<2x128x32xbf16, #tpu.memory_space<vmem>>, vector<1x128x32xbf16>
    %239 = vector.shape_cast %238 : vector<1x128x32xbf16> to vector<128x32xbf16>
    %cst_127 = arith.constant dense<0.000000e+00> : vector<16x32xf32>
    %240 = tpu.matmul %237, %239, %cst_127 {dimension_numbers = #tpu.dot_dimension_numbers<[1], [0], [0], [1], [0, 0, 1, 1], [], []>} : vector<16x128xbf16>, vector<128x32xbf16>, vector<16x32xf32> -> vector<16x32xf32>
    %c1_128 = arith.constant 1 : index
    %c0_129 = arith.constant 0 : index
    %c0_130 = arith.constant 0 : index
    %241 = vector.load %arg15[%c1_128, %c0_129, %c0_130] : memref<2x1x32xf32, #tpu.memory_space<vmem>>, vector<1x1x32xf32>
    %242 = vector.shape_cast %241 : vector<1x1x32xf32> to vector<1x32xf32>
    %243 = vector.broadcast %242 : vector<1x32xf32> to vector<16x32xf32>
    %244 = arith.addf %240, %243 : vector<16x32xf32>
    %245 = arith.addf %244, %226 : vector<16x32xf32>
    %cst_131 = arith.constant dense<0.000000e+00> : vector<16xf32>
    %246 = vector.multi_reduction <add>, %245, %cst_131 [1] : vector<16x32xf32> to vector<16xf32>
    %247 = vector.shape_cast %246 : vector<16xf32> to vector<16x1xf32>
    %cst_132 = arith.constant 3.200000e+01 : f32
    %248 = vector.broadcast %cst_132 : f32 to vector<16x1xf32>
    %249 = arith.divf %247, %248 : vector<16x1xf32>
    %250 = vector.broadcast %249 : vector<16x1xf32> to vector<16x32xf32>
    %251 = arith.subf %245, %250 : vector<16x32xf32>
    %252 = arith.mulf %251, %251 : vector<16x32xf32>
    %cst_133 = arith.constant dense<0.000000e+00> : vector<16xf32>
    %253 = vector.multi_reduction <add>, %252, %cst_133 [1] : vector<16x32xf32> to vector<16xf32>
    %254 = vector.shape_cast %253 : vector<16xf32> to vector<16x1xf32>
    %cst_134 = arith.constant 3.200000e+01 : f32
    %255 = vector.broadcast %cst_134 : f32 to vector<16x1xf32>
    %256 = arith.divf %254, %255 : vector<16x1xf32>
    %257 = vector.broadcast %249 : vector<16x1xf32> to vector<16x32xf32>
    %258 = arith.subf %245, %257 : vector<16x32xf32>
    %cst_135 = arith.constant 9.99999974E-6 : f32
    %259 = vector.broadcast %cst_135 : f32 to vector<16x1xf32>
    %260 = arith.addf %256, %259 : vector<16x1xf32>
    %261 = math.rsqrt %260 : vector<16x1xf32>
    %262 = vector.broadcast %261 : vector<16x1xf32> to vector<16x32xf32>
    %263 = arith.mulf %258, %262 : vector<16x32xf32>
    %c1_136 = arith.constant 1 : index
    %c0_137 = arith.constant 0 : index
    %c0_138 = arith.constant 0 : index
    %264 = vector.load %arg16[%c1_136, %c0_137, %c0_138] : memref<2x1x32xf32, #tpu.memory_space<vmem>>, vector<1x1x32xf32>
    %265 = vector.shape_cast %264 : vector<1x1x32xf32> to vector<1x32xf32>
    %266 = vector.broadcast %265 : vector<1x32xf32> to vector<16x32xf32>
    %267 = arith.mulf %263, %266 : vector<16x32xf32>
    %c1_139 = arith.constant 1 : index
    %c0_140 = arith.constant 0 : index
    %c0_141 = arith.constant 0 : index
    %268 = vector.load %arg17[%c1_139, %c0_140, %c0_141] : memref<2x1x32xf32, #tpu.memory_space<vmem>>, vector<1x1x32xf32>
    %269 = vector.shape_cast %268 : vector<1x1x32xf32> to vector<1x32xf32>
    %270 = vector.broadcast %269 : vector<1x32xf32> to vector<16x32xf32>
    %271 = arith.addf %267, %270 : vector<16x32xf32>
    %272 = arith.truncf %271 : vector<16x32xf32> to vector<16x32xbf16>
    %c0_142 = arith.constant 0 : index
    %c0_143 = arith.constant 0 : index
    %273 = vector.load %arg18[%c0_142, %c0_143] : memref<32x32xbf16, #tpu.memory_space<vmem>>, vector<32x32xbf16>
    %cst_144 = arith.constant dense<0.000000e+00> : vector<16x32xf32>
    %274 = tpu.matmul %272, %273, %cst_144 {dimension_numbers = #tpu.dot_dimension_numbers<[1], [0], [0], [1], [0, 0, 1, 1], [], []>} : vector<16x32xbf16>, vector<32x32xbf16>, vector<16x32xf32> -> vector<16x32xf32>
    %c0_145 = arith.constant 0 : index
    %c0_146 = arith.constant 0 : index
    %275 = vector.load %arg19[%c0_145, %c0_146] : memref<1x32xf32, #tpu.memory_space<vmem>>, vector<1x32xf32>
    %276 = vector.broadcast %275 : vector<1x32xf32> to vector<16x32xf32>
    %277 = arith.addf %274, %276 : vector<16x32xf32>
    %278 = arith.truncf %277 : vector<16x32xf32> to vector<16x32xbf16>
    %c0_147 = arith.constant 0 : index
    %c0_148 = arith.constant 0 : index
    %279 = vector.load %arg20[%c0_147, %c0_148] : memref<32x32xbf16, #tpu.memory_space<vmem>>, vector<32x32xbf16>
    %cst_149 = arith.constant dense<0.000000e+00> : vector<16x32xf32>
    %280 = tpu.matmul %278, %279, %cst_149 {dimension_numbers = #tpu.dot_dimension_numbers<[1], [0], [0], [1], [0, 0, 1, 1], [], []>} : vector<16x32xbf16>, vector<32x32xbf16>, vector<16x32xf32> -> vector<16x32xf32>
    %c0_150 = arith.constant 0 : index
    %c0_151 = arith.constant 0 : index
    %281 = vector.load %arg21[%c0_150, %c0_151] : memref<1x32xf32, #tpu.memory_space<vmem>>, vector<1x32xf32>
    %282 = vector.broadcast %281 : vector<1x32xf32> to vector<16x32xf32>
    %283 = arith.addf %280, %282 : vector<16x32xf32>
    %cst_152 = arith.constant 0.000000e+00 : f32
    %284 = vector.broadcast %cst_152 : f32 to vector<16x32xf32>
    %285 = arith.maximumf %283, %284 : vector<16x32xf32>
    %286 = arith.truncf %285 : vector<16x32xf32> to vector<16x32xbf16>
    %c0_153 = arith.constant 0 : index
    %c0_154 = arith.constant 0 : index
    %287 = vector.load %arg22[%c0_153, %c0_154] : memref<32x64xbf16, #tpu.memory_space<vmem>>, vector<32x64xbf16>
    %cst_155 = arith.constant dense<0.000000e+00> : vector<16x64xf32>
    %288 = tpu.matmul %286, %287, %cst_155 {dimension_numbers = #tpu.dot_dimension_numbers<[1], [0], [0], [1], [0, 0, 1, 1], [], []>} : vector<16x32xbf16>, vector<32x64xbf16>, vector<16x64xf32> -> vector<16x64xf32>
    %c0_156 = arith.constant 0 : index
    %c0_157 = arith.constant 0 : index
    %289 = vector.load %arg23[%c0_156, %c0_157] : memref<1x64xf32, #tpu.memory_space<vmem>>, vector<1x64xf32>
    %290 = vector.broadcast %289 : vector<1x64xf32> to vector<16x64xf32>
    %291 = arith.addf %288, %290 : vector<16x64xf32>
    %292 = vector.extract_strided_slice %291 {offsets = [0, 0], sizes = [16, 32], strides = [1, 1]} : vector<16x64xf32> to vector<16x32xf32>
    %293 = vector.extract_strided_slice %291 {offsets = [0, 32], sizes = [16, 32], strides = [1, 1]} : vector<16x64xf32> to vector<16x32xf32>
    %294 = math.exp %293 : vector<16x32xf32>
    %cst_158 = arith.constant 1.000000e-07 : f32
    %295 = vector.broadcast %cst_158 : f32 to vector<16x32xf32>
    %296 = arith.addf %294, %295 : vector<16x32xf32>
    %cst_159 = arith.constant 1.000000e-07 : f32
    %297 = vector.broadcast %cst_159 : f32 to vector<16x32xf32>
    %298 = arith.addf %296, %297 : vector<16x32xf32>
    %cst_160 = arith.constant 1.000000e+00 : f32
    %299 = vector.broadcast %cst_160 : f32 to vector<16x32xf32>
    %300 = arith.divf %299, %298 : vector<16x32xf32>
    %cst_161 = arith.constant 0.000000e+00 : f32
    %301 = vector.broadcast %cst_161 : f32 to vector<2x128xf32>
    %c0_162 = arith.constant 0 : index
    %c0_163 = arith.constant 0 : index
    %302 = vector.load %arg24[%c0_162, %c0_163] : memref<2x128xf32, #tpu.memory_space<vmem>>, vector<2x128xf32>
    tpu.vector_store %arg24[%c0_162, %c0_163], %301 {strides = array<i32>} : memref<2x128xf32, #tpu.memory_space<vmem>>, vector<2x128xf32>,
    %303 = vector.extract_strided_slice %300 {offsets = [0, 0], sizes = [8, 32], strides = [1, 1]} : vector<16x32xf32> to vector<8x32xf32>
    %304 = vector.extract_strided_slice %292 {offsets = [0, 0], sizes = [8, 32], strides = [1, 1]} : vector<16x32xf32> to vector<8x32xf32>
    %cst_164 = arith.constant dense<0.000000e+00> : vector<32xf32>
    %305 = vector.multi_reduction <add>, %303, %cst_164 [0] : vector<8x32xf32> to vector<32xf32>
    %306 = vector.shape_cast %305 : vector<32xf32> to vector<1x32xf32>
    %cst_165 = arith.constant 0.999999821 : f32
    %307 = vector.broadcast %cst_165 : f32 to vector<1x32xf32>
    %308 = arith.addf %306, %307 : vector<1x32xf32>
    %309 = arith.mulf %304, %303 : vector<8x32xf32>
    %cst_166 = arith.constant dense<0.000000e+00> : vector<32xf32>
    %310 = vector.multi_reduction <add>, %309, %cst_166 [0] : vector<8x32xf32> to vector<32xf32>
    %311 = vector.shape_cast %310 : vector<32xf32> to vector<1x32xf32>
    %cst_167 = arith.constant 1.000000e+00 : f32
    %312 = vector.broadcast %cst_167 : f32 to vector<1x32xf32>
    %313 = arith.divf %312, %308 : vector<1x32xf32>
    %314 = arith.mulf %311, %313 : vector<1x32xf32>
    %c0_168 = arith.constant 0 : index
    %c0_169 = arith.constant 0 : index
    %315 = vector.load %arg3[%c0_168, %c0_169] : memref<2x32xf32, #tpu.memory_space<vmem>>, vector<1x32xf32>
    %316 = math.sqrt %313 : vector<1x32xf32>
    %317 = arith.mulf %315, %316 : vector<1x32xf32>
    %318 = arith.addf %317, %314 : vector<1x32xf32>
    %c0_170 = arith.constant 0 : index
    %c0_171 = arith.constant 0 : index
    %319 = vector.load %arg24[%c0_170, %c0_171] : memref<2x128xf32, #tpu.memory_space<vmem>>, vector<1x32xf32>
    tpu.vector_store %arg24[%c0_170, %c0_171], %318 {strides = array<i32>} : memref<2x128xf32, #tpu.memory_space<vmem>>, vector<1x32xf32>,
    %c0_172 = arith.constant 0 : index
    %c32 = arith.constant 32 : index
    %320 = vector.load %arg24[%c0_172, %c32] : memref<2x128xf32, #tpu.memory_space<vmem>>, vector<1x32xf32>
    tpu.vector_store %arg24[%c0_172, %c32], %314 {strides = array<i32>} : memref<2x128xf32, #tpu.memory_space<vmem>>, vector<1x32xf32>,
    %321 = math.log %308 : vector<1x32xf32>
    %cst_173 = arith.constant 0.000000e+00 : f32
    %322 = vector.broadcast %cst_173 : f32 to vector<1x32xf32>
    %323 = arith.subf %322, %321 : vector<1x32xf32>
    %c0_174 = arith.constant 0 : index
    %c64 = arith.constant 64 : index
    %324 = vector.load %arg24[%c0_174, %c64] : memref<2x128xf32, #tpu.memory_space<vmem>>, vector<1x32xf32>
    tpu.vector_store %arg24[%c0_174, %c64], %323 {strides = array<i32>} : memref<2x128xf32, #tpu.memory_space<vmem>>, vector<1x32xf32>,
    %325 = vector.extract_strided_slice %300 {offsets = [8, 0], sizes = [8, 32], strides = [1, 1]} : vector<16x32xf32> to vector<8x32xf32>
    %326 = vector.extract_strided_slice %292 {offsets = [8, 0], sizes = [8, 32], strides = [1, 1]} : vector<16x32xf32> to vector<8x32xf32>
    %cst_175 = arith.constant dense<0.000000e+00> : vector<32xf32>
    %327 = vector.multi_reduction <add>, %325, %cst_175 [0] : vector<8x32xf32> to vector<32xf32>
    %328 = vector.shape_cast %327 : vector<32xf32> to vector<1x32xf32>
    %cst_176 = arith.constant 0.999999821 : f32
    %329 = vector.broadcast %cst_176 : f32 to vector<1x32xf32>
    %330 = arith.addf %328, %329 : vector<1x32xf32>
    %331 = arith.mulf %326, %325 : vector<8x32xf32>
    %cst_177 = arith.constant dense<0.000000e+00> : vector<32xf32>
    %332 = vector.multi_reduction <add>, %331, %cst_177 [0] : vector<8x32xf32> to vector<32xf32>
    %333 = vector.shape_cast %332 : vector<32xf32> to vector<1x32xf32>
    %cst_178 = arith.constant 1.000000e+00 : f32
    %334 = vector.broadcast %cst_178 : f32 to vector<1x32xf32>
    %335 = arith.divf %334, %330 : vector<1x32xf32>
    %336 = arith.mulf %333, %335 : vector<1x32xf32>
    %c1_179 = arith.constant 1 : index
    %c0_180 = arith.constant 0 : index
    %337 = vector.load %arg3[%c1_179, %c0_180] : memref<2x32xf32, #tpu.memory_space<vmem>>, vector<1x32xf32>
    %338 = math.sqrt %335 : vector<1x32xf32>
    %339 = arith.mulf %337, %338 : vector<1x32xf32>
    %340 = arith.addf %339, %336 : vector<1x32xf32>
    %c1_181 = arith.constant 1 : index
    %c0_182 = arith.constant 0 : index
    %341 = vector.load %arg24[%c1_181, %c0_182] : memref<2x128xf32, #tpu.memory_space<vmem>>, vector<1x32xf32>
    tpu.vector_store %arg24[%c1_181, %c0_182], %340 {strides = array<i32>} : memref<2x128xf32, #tpu.memory_space<vmem>>, vector<1x32xf32>,
    %c1_183 = arith.constant 1 : index
    %c32_184 = arith.constant 32 : index
    %342 = vector.load %arg24[%c1_183, %c32_184] : memref<2x128xf32, #tpu.memory_space<vmem>>, vector<1x32xf32>
    tpu.vector_store %arg24[%c1_183, %c32_184], %336 {strides = array<i32>} : memref<2x128xf32, #tpu.memory_space<vmem>>, vector<1x32xf32>,
    %343 = math.log %330 : vector<1x32xf32>
    %cst_185 = arith.constant 0.000000e+00 : f32
    %344 = vector.broadcast %cst_185 : f32 to vector<1x32xf32>
    %345 = arith.subf %344, %343 : vector<1x32xf32>
    %c1_186 = arith.constant 1 : index
    %c64_187 = arith.constant 64 : index
    %346 = vector.load %arg24[%c1_186, %c64_187] : memref<2x128xf32, #tpu.memory_space<vmem>>, vector<1x32xf32>
    tpu.vector_store %arg24[%c1_186, %c64_187], %345 {strides = array<i32>} : memref<2x128xf32, #tpu.memory_space<vmem>>, vector<1x32xf32>,
    return
  }
  func.func @transform_0(%arg0: i32) -> (i32, i32) {
    %c0_i32 = arith.constant 0 : i32
    %c0_i32_0 = arith.constant 0 : i32
    %c0_i32_1 = arith.constant 0 : i32
    return %c0_i32, %c0_i32_0 : i32, i32
  }
  func.func @transform_1(%arg0: i32) -> (i32, i32) {
    %c0_i32 = arith.constant 0 : i32
    %c0_i32_0 = arith.constant 0 : i32
    %c0_i32_1 = arith.constant 0 : i32
    return %c0_i32, %c0_i32_0 : i32, i32
  }
  func.func @transform_2(%arg0: i32) -> (i32, i32) {
    %c0_i32 = arith.constant 0 : i32
    %c0_i32_0 = arith.constant 0 : i32
    %c0_i32_1 = arith.constant 0 : i32
    return %c0_i32, %c0_i32_0 : i32, i32
  }
  func.func @transform_3(%arg0: i32) -> (i32, i32) {
    %c0_i32 = arith.constant 0 : i32
    %c0_i32_0 = arith.constant 0 : i32
    %c0_i32_1 = arith.constant 0 : i32
    return %c0_i32, %c0_i32_0 : i32, i32
  }
  func.func @transform_4(%arg0: i32) -> (i32, i32) {
    %c0_i32 = arith.constant 0 : i32
    %c0_i32_0 = arith.constant 0 : i32
    %c0_i32_1 = arith.constant 0 : i32
    return %c0_i32, %c0_i32_0 : i32, i32
  }
  func.func @transform_5(%arg0: i32) -> (i32, i32, i32) {
    %c0_i32 = arith.constant 0 : i32
    %c0_i32_0 = arith.constant 0 : i32
    %c0_i32_1 = arith.constant 0 : i32
    %c0_i32_2 = arith.constant 0 : i32
    return %c0_i32, %c0_i32_0, %c0_i32_1 : i32, i32, i32
  }
  func.func @transform_6(%arg0: i32) -> (i32, i32, i32) {
    %c0_i32 = arith.constant 0 : i32
    %c0_i32_0 = arith.constant 0 : i32
    %c0_i32_1 = arith.constant 0 : i32
    %c0_i32_2 = arith.constant 0 : i32
    return %c0_i32, %c0_i32_0, %c0_i32_1 : i32, i32, i32
  }
  func.func @transform_7(%arg0: i32) -> (i32, i32, i32) {
    %c0_i32 = arith.constant 0 : i32
    %c0_i32_0 = arith.constant 0 : i32
    %c0_i32_1 = arith.constant 0 : i32
    %c0_i32_2 = arith.constant 0 : i32
    return %c0_i32, %c0_i32_0, %c0_i32_1 : i32, i32, i32
  }
  func.func @transform_8(%arg0: i32) -> (i32, i32, i32) {
    %c0_i32 = arith.constant 0 : i32
    %c0_i32_0 = arith.constant 0 : i32
    %c0_i32_1 = arith.constant 0 : i32
    %c0_i32_2 = arith.constant 0 : i32
    return %c0_i32, %c0_i32_0, %c0_i32_1 : i32, i32, i32
  }
  func.func @transform_9(%arg0: i32) -> (i32, i32, i32) {
    %c0_i32 = arith.constant 0 : i32
    %c0_i32_0 = arith.constant 0 : i32
    %c0_i32_1 = arith.constant 0 : i32
    %c0_i32_2 = arith.constant 0 : i32
    return %c0_i32, %c0_i32_0, %c0_i32_1 : i32, i32, i32
  }
  func.func @transform_10(%arg0: i32) -> (i32, i32, i32) {
    %c0_i32 = arith.constant 0 : i32
    %c0_i32_0 = arith.constant 0 : i32
    %c0_i32_1 = arith.constant 0 : i32
    %c0_i32_2 = arith.constant 0 : i32
    return %c0_i32, %c0_i32_0, %c0_i32_1 : i32, i32, i32
  }
  func.func @transform_11(%arg0: i32) -> (i32, i32, i32) {
    %c0_i32 = arith.constant 0 : i32
    %c0_i32_0 = arith.constant 0 : i32
    %c0_i32_1 = arith.constant 0 : i32
    %c0_i32_2 = arith.constant 0 : i32
    return %c0_i32, %c0_i32_0, %c0_i32_1 : i32, i32, i32
  }
  func.func @transform_12(%arg0: i32) -> (i32, i32, i32) {
    %c0_i32 = arith.constant 0 : i32
    %c0_i32_0 = arith.constant 0 : i32
    %c0_i32_1 = arith.constant 0 : i32
    %c0_i32_2 = arith.constant 0 : i32
    return %c0_i32, %c0_i32_0, %c0_i32_1 : i32, i32, i32
  }
  func.func @transform_13(%arg0: i32) -> (i32, i32, i32) {
    %c0_i32 = arith.constant 0 : i32
    %c0_i32_0 = arith.constant 0 : i32
    %c0_i32_1 = arith.constant 0 : i32
    %c0_i32_2 = arith.constant 0 : i32
    return %c0_i32, %c0_i32_0, %c0_i32_1 : i32, i32, i32
  }
  func.func @transform_14(%arg0: i32) -> (i32, i32, i32) {
    %c0_i32 = arith.constant 0 : i32
    %c0_i32_0 = arith.constant 0 : i32
    %c0_i32_1 = arith.constant 0 : i32
    %c0_i32_2 = arith.constant 0 : i32
    return %c0_i32, %c0_i32_0, %c0_i32_1 : i32, i32, i32
  }
  func.func @transform_15(%arg0: i32) -> (i32, i32, i32) {
    %c0_i32 = arith.constant 0 : i32
    %c0_i32_0 = arith.constant 0 : i32
    %c0_i32_1 = arith.constant 0 : i32
    %c0_i32_2 = arith.constant 0 : i32
    return %c0_i32, %c0_i32_0, %c0_i32_1 : i32, i32, i32
  }
  func.func @transform_16(%arg0: i32) -> (i32, i32, i32) {
    %c0_i32 = arith.constant 0 : i32
    %c0_i32_0 = arith.constant 0 : i32
    %c0_i32_1 = arith.constant 0 : i32
    %c0_i32_2 = arith.constant 0 : i32
    return %c0_i32, %c0_i32_0, %c0_i32_1 : i32, i32, i32
  }
  func.func @transform_17(%arg0: i32) -> (i32, i32) {
    %c0_i32 = arith.constant 0 : i32
    %c0_i32_0 = arith.constant 0 : i32
    %c0_i32_1 = arith.constant 0 : i32
    return %c0_i32, %c0_i32_0 : i32, i32
  }
  func.func @transform_18(%arg0: i32) -> (i32, i32) {
    %c0_i32 = arith.constant 0 : i32
    %c0_i32_0 = arith.constant 0 : i32
    %c0_i32_1 = arith.constant 0 : i32
    return %c0_i32, %c0_i32_0 : i32, i32
  }
  func.func @transform_19(%arg0: i32) -> (i32, i32) {
    %c0_i32 = arith.constant 0 : i32
    %c0_i32_0 = arith.constant 0 : i32
    %c0_i32_1 = arith.constant 0 : i32
    return %c0_i32, %c0_i32_0 : i32, i32
  }
  func.func @transform_20(%arg0: i32) -> (i32, i32) {
    %c0_i32 = arith.constant 0 : i32
    %c0_i32_0 = arith.constant 0 : i32
    %c0_i32_1 = arith.constant 0 : i32
    return %c0_i32, %c0_i32_0 : i32, i32
  }
  func.func @transform_21(%arg0: i32) -> (i32, i32) {
    %c0_i32 = arith.constant 0 : i32
    %c0_i32_0 = arith.constant 0 : i32
    %c0_i32_1 = arith.constant 0 : i32
    return %c0_i32, %c0_i32_0 : i32, i32
  }
  func.func @transform_22(%arg0: i32) -> (i32, i32) {
    %c0_i32 = arith.constant 0 : i32
    %c0_i32_0 = arith.constant 0 : i32
    %c0_i32_1 = arith.constant 0 : i32
    return %c0_i32, %c0_i32_0 : i32, i32
  }
  func.func @transform_23(%arg0: i32) -> (i32, i32) {
    %c0_i32 = arith.constant 0 : i32
    %c0_i32_0 = arith.constant 0 : i32
    %c0_i32_1 = arith.constant 0 : i32
    return %c0_i32, %c0_i32_0 : i32, i32
  }
}

</mosaic_0001>

<llo_original>
// kernel: transformer_encoder_forward.1
$region0: #{transformer_encoder_forward.1}
  #allocation0 [shape = 'u32[]', space=smem, size = 0x4, offset = 0x4, fixed_abs, tag = 'smem constant byte address 0x4 - core index']
  #allocation1 [shape = 'u32[144,128]{1,0:T(1,128)}', space=vmem, size = 0x12000, scoped, tag = 'internal scratch']
  %s0 = inlined_call_operand.vmem [shape: f32[16,16], index: 0, kind: input, shape index: {}]
  %s1 = inlined_call_operand.vmem [shape: f32[16,16], index: 1, kind: input, shape index: {}]
  %s2 = inlined_call_operand.vmem [shape: f32[2,32], index: 2, kind: input, shape index: {}]
  %s3 = inlined_call_operand.vmem [shape: bf16[16,32], index: 3, kind: input, shape index: {}]
  %s4 = inlined_call_operand.vmem [shape: f32[1,32], index: 4, kind: input, shape index: {}]
  %s5 = inlined_call_operand.vmem [shape: bf16[4,32,32], index: 5, kind: input, shape index: {}]
  %s6 = inlined_call_operand.vmem [shape: bf16[2,128,32], index: 6, kind: input, shape index: {}]
  %s7 = inlined_call_operand.vmem [shape: bf16[4,32,32], index: 7, kind: input, shape index: {}]
  %s8 = inlined_call_operand.vmem [shape: f32[2,1,32], index: 8, kind: input, shape index: {}]
  %s9 = inlined_call_operand.vmem [shape: f32[2,1,32], index: 9, kind: input, shape index: {}]
  %s10 = inlined_call_operand.vmem [shape: f32[2,1,32], index: 10, kind: input, shape index: {}]
  %s11 = inlined_call_operand.vmem [shape: bf16[2,32,128], index: 11, kind: input, shape index: {}]
  %s12 = inlined_call_operand.vmem [shape: f32[2,1,128], index: 12, kind: input, shape index: {}]
  %s13 = inlined_call_operand.vmem [shape: bf16[2,128,32], index: 13, kind: input, shape index: {}]
  %s14 = inlined_call_operand.vmem [shape: f32[2,1,32], index: 14, kind: input, shape index: {}]
  %s15 = inlined_call_operand.vmem [shape: f32[2,1,32], index: 15, kind: input, shape index: {}]
  %s16 = inlined_call_operand.vmem [shape: f32[2,1,32], index: 16, kind: input, shape index: {}]
  %s17 = inlined_call_operand.vmem [shape: bf16[32,32], index: 17, kind: input, shape index: {}]
  %s18 = inlined_call_operand.vmem [shape: f32[1,32], index: 18, kind: input, shape index: {}]
  %s19 = inlined_call_operand.vmem [shape: bf16[32,32], index: 19, kind: input, shape index: {}]
  %s20 = inlined_call_operand.vmem [shape: f32[1,32], index: 20, kind: input, shape index: {}]
  %s21 = inlined_call_operand.vmem [shape: bf16[32,64], index: 21, kind: input, shape index: {}]
  %s22 = inlined_call_operand.vmem [shape: f32[1,64], index: 22, kind: input, shape index: {}]
  %s23 = inlined_call_operand.vmem [shape: f32[2,128], index: 23, kind: output, shape index: {}]
  %s24 = sld [smem:[#allocation0]]
  $region102: #{transformer_encoder_forward.1} parent=0
    _
  %s26 = ssub.s32 1, %s24
  %s27 = scalar_select 0, %s26, %s24
  // Predicated region
  $region2: #{transformer_encoder_forward.1} parent=0 // pred_check
    _
  $region3: #{transformer_encoder_forward.1} parent=0 // pred_check_branch
    %29 = sbr.rel (0) target = $region5
  $region4: #{transformer_encoder_forward.1} parent=0 // pred_region
    _
  $region5: #{transformer_encoder_forward.1} parent=0 // pred_fallthru
    _
  // Predicated region
  $region6: #{transformer_encoder_forward.1} parent=0 // pred_check
    _
  $region7: #{transformer_encoder_forward.1} parent=0 // pred_check_branch
    %31 = sbr.rel (0) target = $region9
  $region8: #{transformer_encoder_forward.1} parent=0 // pred_region
    _
  $region9: #{transformer_encoder_forward.1} parent=0 // pred_fallthru
    _
  // Predicated region
  $region10: #{transformer_encoder_forward.1} parent=0 // pred_check
    _
  $region11: #{transformer_encoder_forward.1} parent=0 // pred_check_branch
    %33 = sbr.rel (0) target = $region13
  $region12: #{transformer_encoder_forward.1} parent=0 // pred_region
    _
  $region13: #{transformer_encoder_forward.1} parent=0 // pred_fallthru
    _
  // Predicated region
  $region14: #{transformer_encoder_forward.1} parent=0 // pred_check
    _
  $region15: #{transformer_encoder_forward.1} parent=0 // pred_check_branch
    %35 = sbr.rel (0) target = $region17
  $region16: #{transformer_encoder_forward.1} parent=0 // pred_region
    _
  $region17: #{transformer_encoder_forward.1} parent=0 // pred_fallthru
    _
  // Predicated region
  $region18: #{transformer_encoder_forward.1} parent=0 // pred_check
    _
  $region19: #{transformer_encoder_forward.1} parent=0 // pred_check_branch
    %37 = sbr.rel (0) target = $region21
  $region20: #{transformer_encoder_forward.1} parent=0 // pred_region
    _
  $region21: #{transformer_encoder_forward.1} parent=0 // pred_fallthru
    _
  // Predicated region
  $region22: #{transformer_encoder_forward.1} parent=0 // pred_check
    _
  $region23: #{transformer_encoder_forward.1} parent=0 // pred_check_branch
    %39 = sbr.rel (0) target = $region25
  $region24: #{transformer_encoder_forward.1} parent=0 // pred_region
    _
  $region25: #{transformer_encoder_forward.1} parent=0 // pred_fallthru
    _
  // Predicated region
  $region26: #{transformer_encoder_forward.1} parent=0 // pred_check
    _
  $region27: #{transformer_encoder_forward.1} parent=0 // pred_check_branch
    %41 = sbr.rel (0) target = $region29
  $region28: #{transformer_encoder_forward.1} parent=0 // pred_region
    _
  $region29: #{transformer_encoder_forward.1} parent=0 // pred_fallthru
    _
  // Predicated region
  $region30: #{transformer_encoder_forward.1} parent=0 // pred_check
    _
  $region31: #{transformer_encoder_forward.1} parent=0 // pred_check_branch
    %43 = sbr.rel (0) target = $region33
  $region32: #{transformer_encoder_forward.1} parent=0 // pred_region
    _
  $region33: #{transformer_encoder_forward.1} parent=0 // pred_fallthru
    _
  // Predicated region
  $region34: #{transformer_encoder_forward.1} parent=0 // pred_check
    _
  $region35: #{transformer_encoder_forward.1} parent=0 // pred_check_branch
    %45 = sbr.rel (0) target = $region37
  $region36: #{transformer_encoder_forward.1} parent=0 // pred_region
    _
  $region37: #{transformer_encoder_forward.1} parent=0 // pred_fallthru
    _
  // Predicated region
  $region38: #{transformer_encoder_forward.1} parent=0 // pred_check
    _
  $region39: #{transformer_encoder_forward.1} parent=0 // pred_check_branch
    %47 = sbr.rel (0) target = $region41
  $region40: #{transformer_encoder_forward.1} parent=0 // pred_region
    _
  $region41: #{transformer_encoder_forward.1} parent=0 // pred_fallthru
    _
  // Predicated region
  $region42: #{transformer_encoder_forward.1} parent=0 // pred_check
    _
  $region43: #{transformer_encoder_forward.1} parent=0 // pred_check_branch
    %49 = sbr.rel (0) target = $region45
  $region44: #{transformer_encoder_forward.1} parent=0 // pred_region
    _
  $region45: #{transformer_encoder_forward.1} parent=0 // pred_fallthru
    _
  // Predicated region
  $region46: #{transformer_encoder_forward.1} parent=0 // pred_check
    _
  $region47: #{transformer_encoder_forward.1} parent=0 // pred_check_branch
    %51 = sbr.rel (0) target = $region49
  $region48: #{transformer_encoder_forward.1} parent=0 // pred_region
    _
  $region49: #{transformer_encoder_forward.1} parent=0 // pred_fallthru
    _
  // Predicated region
  $region50: #{transformer_encoder_forward.1} parent=0 // pred_check
    _
  $region51: #{transformer_encoder_forward.1} parent=0 // pred_check_branch
    %53 = sbr.rel (0) target = $region53
  $region52: #{transformer_encoder_forward.1} parent=0 // pred_region
    _
  $region53: #{transformer_encoder_forward.1} parent=0 // pred_fallthru
    _
  // Predicated region
  $region54: #{transformer_encoder_forward.1} parent=0 // pred_check
    _
  $region55: #{transformer_encoder_forward.1} parent=0 // pred_check_branch
    %55 = sbr.rel (0) target = $region57
  $region56: #{transformer_encoder_forward.1} parent=0 // pred_region
    _
  $region57: #{transformer_encoder_forward.1} parent=0 // pred_fallthru
    _
  // Predicated region
  $region58: #{transformer_encoder_forward.1} parent=0 // pred_check
    _
  $region59: #{transformer_encoder_forward.1} parent=0 // pred_check_branch
    %57 = sbr.rel (0) target = $region61
  $region60: #{transformer_encoder_forward.1} parent=0 // pred_region
    _
  $region61: #{transformer_encoder_forward.1} parent=0 // pred_fallthru
    _
  // Predicated region
  $region62: #{transformer_encoder_forward.1} parent=0 // pred_check
    _
  $region63: #{transformer_encoder_forward.1} parent=0 // pred_check_branch
    %59 = sbr.rel (0) target = $region65
  $region64: #{transformer_encoder_forward.1} parent=0 // pred_region
    _
  $region65: #{transformer_encoder_forward.1} parent=0 // pred_fallthru
    _
  // Predicated region
  $region66: #{transformer_encoder_forward.1} parent=0 // pred_check
    _
  $region67: #{transformer_encoder_forward.1} parent=0 // pred_check_branch
    %61 = sbr.rel (0) target = $region69
  $region68: #{transformer_encoder_forward.1} parent=0 // pred_region
    _
  $region69: #{transformer_encoder_forward.1} parent=0 // pred_fallthru
    _
  // Predicated region
  $region70: #{transformer_encoder_forward.1} parent=0 // pred_check
    _
  $region71: #{transformer_encoder_forward.1} parent=0 // pred_check_branch
    %63 = sbr.rel (0) target = $region73
  $region72: #{transformer_encoder_forward.1} parent=0 // pred_region
    _
  $region73: #{transformer_encoder_forward.1} parent=0 // pred_fallthru
    _
  // Predicated region
  $region74: #{transformer_encoder_forward.1} parent=0 // pred_check
    _
  $region75: #{transformer_encoder_forward.1} parent=0 // pred_check_branch
    %65 = sbr.rel (0) target = $region77
  $region76: #{transformer_encoder_forward.1} parent=0 // pred_region
    _
  $region77: #{transformer_encoder_forward.1} parent=0 // pred_fallthru
    _
  // Predicated region
  $region78: #{transformer_encoder_forward.1} parent=0 // pred_check
    _
  $region79: #{transformer_encoder_forward.1} parent=0 // pred_check_branch
    %67 = sbr.rel (0) target = $region81
  $region80: #{transformer_encoder_forward.1} parent=0 // pred_region
    _
  $region81: #{transformer_encoder_forward.1} parent=0 // pred_fallthru
    _
  // Predicated region
  $region82: #{transformer_encoder_forward.1} parent=0 // pred_check
    _
  $region83: #{transformer_encoder_forward.1} parent=0 // pred_check_branch
    %69 = sbr.rel (0) target = $region85
  $region84: #{transformer_encoder_forward.1} parent=0 // pred_region
    _
  $region85: #{transformer_encoder_forward.1} parent=0 // pred_fallthru
    _
  // Predicated region
  $region86: #{transformer_encoder_forward.1} parent=0 // pred_check
    _
  $region87: #{transformer_encoder_forward.1} parent=0 // pred_check_branch
    %71 = sbr.rel (0) target = $region89
  $region88: #{transformer_encoder_forward.1} parent=0 // pred_region
    _
  $region89: #{transformer_encoder_forward.1} parent=0 // pred_fallthru
    _
  // Predicated region
  $region90: #{transformer_encoder_forward.1} parent=0 // pred_check
    _
  $region91: #{transformer_encoder_forward.1} parent=0 // pred_check_branch
    %73 = sbr.rel (0) target = $region93
  $region92: #{transformer_encoder_forward.1} parent=0 // pred_region
    _
  $region93: #{transformer_encoder_forward.1} parent=0 // pred_fallthru
    _
  %v75 = vld [vmem:[%s0] sm:$0xff]
  %v76 = vld [vmem:[%s0 + $0x8] sm:$0xff]
  %v77 = vpack.c.bf16 %v76, %v75
  %v78 = vld [vmem:[%s3] sm:$0xf]
  %v79 = vld [vmem:[%s3 + $0x4] sm:$0xf]
  %v80 = vld [vmem:[%s4] sm:$0x1]
  %v82 = vlaneseq
  %v83 = vshrl.u32 %v82, 7
  %v84 = vsub.s32 0, %v83
  %v85 = vrot.slane %v80, %v84
  %v89 = vunpack.c.l.b16 %v78
  %v90 = vunpack.c.l.b16 %v79
  %v91 = vpack.c.b16 %v90, %v89
  %vm93 = vcmask 130048
  %v95 = vsel %vm93, %v77, 0
  %97 = vmatprep.subr.bf16.mxu0 0
  %98 = vmatpush1.bf16.msra.mxu0 0
  %99 = vmatprep.subr.bf16.mxu0 0
  %100 = vmatpush1.bf16.msra.mxu0 0
  %101 = vmatprep.subr.bf16.mxu0 0
  %102 = vmatpush1.bf16.msra.mxu0 0
  %103 = vmatprep.subr.bf16.mxu0 0
  %104 = vmatpush1.bf16.msra.mxu0 0
  %105 = vmatprep.subr.bf16.mxu0 0
  %106 = vmatpush1.bf16.msra.mxu0 0
  %107 = vmatprep.subr.bf16.mxu0 0
  %108 = vmatpush1.bf16.msra.mxu0 0
  %109 = vmatprep.subr.bf16.mxu0 0
  %110 = vmatpush1.bf16.msra.mxu0 0
  %111 = vmatprep.subr.bf16.mxu0 0
  %112 = vmatpush1.bf16.msra.mxu0 %v91
  %113 = vmatprep.subr.bf16.mxu0 0
  %114 = vmatpush2.bf16.msra.mxu0 0
  %115 = vmatprep.subr.bf16.mxu0 0
  %116 = vmatpush2.bf16.msra.mxu0 0
  %117 = vmatprep.subr.bf16.mxu0 0
  %118 = vmatpush2.bf16.msra.mxu0 0
  %119 = vmatprep.subr.bf16.mxu0 0
  %120 = vmatpush2.bf16.msra.mxu0 0
  %121 = vmatprep.subr.bf16.mxu0 0
  %122 = vmatpush2.bf16.msra.mxu0 0
  %123 = vmatprep.subr.bf16.mxu0 0
  %124 = vmatpush2.bf16.msra.mxu0 0
  %125 = vmatprep.subr.bf16.mxu0 0
  %126 = vmatpush2.bf16.msra.mxu0 0
  %127 = vmatprep.subr.bf16.mxu0 0
  %128 = vmatpush2.bf16.msra.mxu0 0
  %129 = vmatprep.mubr.bf16.mxu0 0
  %130 = vmatmul.mubr.bf16.gmra.mxu0 %v95
  %v131 = vpop.f32.mrf.mxu0
  %v132 = vadd.f32 %v85, %v131
  %v133 = vpop.f32.mrf.mxu0
  %v134 = vpop.f32.mrf.mxu0
  %v135 = vadd.f32 %v85, %v134
  %v136 = vpop.f32.mrf.mxu0
  %137 = vdwg.mxu0
  %v138 = vld [vmem:[%s1] sm:$0xff]
  %v139 = vld [vmem:[%s1 + $0x8] sm:$0xff]
  %v140 = vpack.c.bf16 %v135, %v132
  %v141 = vld [vmem:[%s6] sm:$0xf]
  %v142 = vld [vmem:[%s6 + $0x4] sm:$0xf]
  %v143 = vld [vmem:[%s6 + $0x8] sm:$0xf]
  %v144 = vld [vmem:[%s6 + $0xc] sm:$0xf]
  %v145 = vld [vmem:[%s6 + $0x10] sm:$0xf]
  %v146 = vld [vmem:[%s6 + $0x14] sm:$0xf]
  %v147 = vld [vmem:[%s6 + $0x18] sm:$0xf]
  %v148 = vld [vmem:[%s6 + $0x1c] sm:$0xf]
  %v149 = vld [vmem:[%s6 + $0x20] sm:$0xf]
  %v150 = vld [vmem:[%s6 + $0x24] sm:$0xf]
  %v151 = vld [vmem:[%s6 + $0x28] sm:$0xf]
  %v152 = vld [vmem:[%s6 + $0x2c] sm:$0xf]
  %v153 = vld [vmem:[%s6 + $0x30] sm:$0xf]
  %v154 = vld [vmem:[%s6 + $0x34] sm:$0xf]
  %v155 = vld [vmem:[%s6 + $0x38] sm:$0xf]
  %v156 = vld [vmem:[%s6 + $0x3c] sm:$0xf]
  %v173 = vunpack.c.l.b16 %v141
  %v174 = vunpack.c.l.b16 %v142
  %v175 = vunpack.c.l.b16 %v143
  %v176 = vunpack.c.l.b16 %v144
  %v177 = vunpack.c.l.b16 %v145
  %v178 = vunpack.c.l.b16 %v146
  %v179 = vunpack.c.l.b16 %v147
  %v180 = vunpack.c.l.b16 %v148
  %v181 = vunpack.c.l.b16 %v149
  %v182 = vunpack.c.l.b16 %v150
  %v183 = vunpack.c.l.b16 %v151
  %v184 = vunpack.c.l.b16 %v152
  %v185 = vunpack.c.l.b16 %v153
  %v186 = vunpack.c.l.b16 %v154
  %v187 = vunpack.c.l.b16 %v155
  %v188 = vunpack.c.l.b16 %v156
  %v189 = vpack.c.b16 %v174, %v173
  %v190 = vpack.c.b16 %v176, %v175
  %v191 = vpack.c.b16 %v178, %v177
  %v192 = vpack.c.b16 %v180, %v179
  %v193 = vpack.c.b16 %v182, %v181
  %v194 = vpack.c.b16 %v184, %v183
  %v195 = vpack.c.b16 %v186, %v185
  %v196 = vpack.c.b16 %v188, %v187
  %vm197 = vcmask 261120
  %v199 = vsel %vm197, %v189, 0
  %v202 = vsel %vm197, %v190, 0
  %v205 = vsel %vm197, %v191, 0
  %v208 = vsel %vm197, %v192, 0
  %v211 = vsel %vm197, %v193, 0
  %v214 = vsel %vm197, %v194, 0
  %v217 = vsel %vm197, %v195, 0
  %v220 = vsel %vm197, %v196, 0
  %v223 = vsel %vm197, %v140, 0
  %225 = vmatprep.subr.bf16.mxu0 0
  %226 = vmatpush1.bf16.xpose.msra.mxu0 0
  %227 = vmatprep.subr.bf16.mxu0 0
  %228 = vmatpush1.bf16.xpose.msra.mxu0 0
  %229 = vmatprep.subr.bf16.mxu0 0
  %230 = vmatpush1.bf16.xpose.msra.mxu0 0
  %231 = vmatprep.subr.bf16.mxu0 0
  %232 = vmatpush1.bf16.xpose.msra.mxu0 0
  %233 = vmatprep.subr.bf16.mxu0 0
  %234 = vmatpush1.bf16.xpose.msra.mxu0 0
  %235 = vmatprep.subr.bf16.mxu0 0
  %236 = vmatpush1.bf16.xpose.msra.mxu0 0
  %237 = vmatprep.subr.bf16.mxu0 0
  %238 = vmatpush1.bf16.xpose.msra.mxu0 0
  %239 = vmatprep.subr.bf16.mxu0 0
  %240 = vmatpush1.bf16.xpose.msra.mxu0 %v223
  %241 = vmatprep.subr.bf16.mxu0 0
  %242 = vmatpush2.bf16.xpose.msra.mxu0 0
  %243 = vmatprep.subr.bf16.mxu0 0
  %244 = vmatpush2.bf16.xpose.msra.mxu0 0
  %245 = vmatprep.subr.bf16.mxu0 0
  %246 = vmatpush2.bf16.xpose.msra.mxu0 0
  %247 = vmatprep.subr.bf16.mxu0 0
  %248 = vmatpush2.bf16.xpose.msra.mxu0 0
  %249 = vmatprep.subr.bf16.mxu0 0
  %250 = vmatpush2.bf16.xpose.msra.mxu0 0
  %251 = vmatprep.subr.bf16.mxu0 0
  %252 = vmatpush2.bf16.xpose.msra.mxu0 0
  %253 = vmatprep.subr.bf16.mxu0 0
  %254 = vmatpush2.bf16.xpose.msra.mxu0 0
  %255 = vmatprep.subr.bf16.mxu0 0
  %256 = vmatpush2.bf16.xpose.msra.mxu0 0
  %257 = vmatprep.mubr.bf16.mxu0 0
  %258 = vmatmul.mubr.bf16.gmra.mxu0 %v199
  %v259 = vpop.f32.mrf.mxu0
  %v260 = vadd.f32 0.0, %v259
  %v261 = vpop.f32.mrf.mxu0
  %v262 = vpop.f32.mrf.mxu0
  %v263 = vadd.f32 0.0, %v262
  %v264 = vpop.f32.mrf.mxu0
  %265 = vmatprep.mubr.bf16.mxu0 0
  %266 = vmatmul.mubr.bf16.gmra.mxu0 %v202
  %v267 = vpop.f32.mrf.mxu0
  %v268 = vadd.f32 0.0, %v267
  %v269 = vpop.f32.mrf.mxu0
  %v270 = vpop.f32.mrf.mxu0
  %v271 = vadd.f32 0.0, %v270
  %v272 = vpop.f32.mrf.mxu0
  %273 = vmatprep.mubr.bf16.mxu0 0
  %274 = vmatmul.mubr.bf16.gmra.mxu0 %v205
  %v275 = vpop.f32.mrf.mxu0
  %v276 = vadd.f32 0.0, %v275
  %v277 = vpop.f32.mrf.mxu0
  %v278 = vpop.f32.mrf.mxu0
  %v279 = vadd.f32 0.0, %v278
  %v280 = vpop.f32.mrf.mxu0
  %281 = vmatprep.mubr.bf16.mxu0 0
  %282 = vmatmul.mubr.bf16.gmra.mxu0 %v208
  %v283 = vpop.f32.mrf.mxu0
  %v284 = vadd.f32 0.0, %v283
  %v285 = vpop.f32.mrf.mxu0
  %v286 = vpop.f32.mrf.mxu0
  %v287 = vadd.f32 0.0, %v286
  %v288 = vpop.f32.mrf.mxu0
  %289 = vmatprep.mubr.bf16.mxu0 0
  %290 = vmatmul.mubr.bf16.gmra.mxu0 %v211
  %v291 = vpop.f32.mrf.mxu0
  %v292 = vadd.f32 0.0, %v291
  %v293 = vpop.f32.mrf.mxu0
  %v294 = vpop.f32.mrf.mxu0
  %v295 = vadd.f32 0.0, %v294
  %v296 = vpop.f32.mrf.mxu0
  %297 = vmatprep.mubr.bf16.mxu0 0
  %298 = vmatmul.mubr.bf16.gmra.mxu0 %v214
  %v299 = vpop.f32.mrf.mxu0
  %v300 = vadd.f32 0.0, %v299
  %v301 = vpop.f32.mrf.mxu0
  %v302 = vpop.f32.mrf.mxu0
  %v303 = vadd.f32 0.0, %v302
  %v304 = vpop.f32.mrf.mxu0
  %305 = vmatprep.mubr.bf16.mxu0 0
  %306 = vmatmul.mubr.bf16.gmra.mxu0 %v217
  %v307 = vpop.f32.mrf.mxu0
  %v308 = vadd.f32 0.0, %v307
  %v309 = vpop.f32.mrf.mxu0
  %v310 = vpop.f32.mrf.mxu0
  %v311 = vadd.f32 0.0, %v310
  %v312 = vpop.f32.mrf.mxu0
  %313 = vmatprep.mubr.bf16.mxu0 0
  %314 = vmatmul.mubr.bf16.gmra.mxu0 %v220
  %v315 = vpop.f32.mrf.mxu0
  %v316 = vadd.f32 0.0, %v315
  %v317 = vpop.f32.mrf.mxu0
  %v318 = vpop.f32.mrf.mxu0
  %v319 = vadd.f32 0.0, %v318
  %v320 = vpop.f32.mrf.mxu0
  %321 = vdwg.mxu0
  %v322 = vpack.c.bf16 %v263, %v260
  %v323 = vpack.c.bf16 %v271, %v268
  %v324 = vpack.c.bf16 %v279, %v276
  %v325 = vpack.c.bf16 %v287, %v284
  %v326 = vpack.c.bf16 %v295, %v292
  %v327 = vpack.c.bf16 %v303, %v300
  %v328 = vpack.c.bf16 %v311, %v308
  %v329 = vpack.c.bf16 %v319, %v316
  %v330 = vld [vmem:[%s5] sm:$0xf]
  %v331 = vld [vmem:[%s5 + $0x4] sm:$0xf]
  %v332 = vld [vmem:[%s5 + $0x8] sm:$0xf]
  %v333 = vld [vmem:[%s5 + $0xc] sm:$0xf]
  %v338 = vunpack.c.l.b16 %v330
  %v339 = vunpack.c.l.b16 %v331
  %v340 = vunpack.c.l.b16 %v332
  %v341 = vunpack.c.l.b16 %v333
  %v342 = vpack.c.b16 %v339, %v338
  %v343 = vpack.c.b16 %v341, %v340
  %346 = vmatprep.subr.bf16.mxu0 0
  %347 = vmatpush1.bf16.msra.mxu0 0
  %348 = vmatprep.subr.bf16.mxu0 0
  %349 = vmatpush1.bf16.msra.mxu0 0
  %350 = vmatprep.subr.bf16.mxu0 0
  %351 = vmatpush1.bf16.msra.mxu0 0
  %352 = vmatprep.subr.bf16.mxu0 0
  %353 = vmatpush1.bf16.msra.mxu0 0
  %354 = vmatprep.subr.bf16.mxu0 0
  %355 = vmatpush1.bf16.msra.mxu0 0
  %356 = vmatprep.subr.bf16.mxu0 0
  %357 = vmatpush1.bf16.msra.mxu0 0
  %358 = vmatprep.subr.bf16.mxu0 0
  %359 = vmatpush1.bf16.msra.mxu0 %v343
  %360 = vmatprep.subr.bf16.mxu0 0
  %361 = vmatpush1.bf16.msra.mxu0 %v342
  %362 = vmatprep.subr.bf16.mxu0 0
  %363 = vmatpush2.bf16.msra.mxu0 0
  %364 = vmatprep.subr.bf16.mxu0 0
  %365 = vmatpush2.bf16.msra.mxu0 0
  %366 = vmatprep.subr.bf16.mxu0 0
  %367 = vmatpush2.bf16.msra.mxu0 0
  %368 = vmatprep.subr.bf16.mxu0 0
  %369 = vmatpush2.bf16.msra.mxu0 0
  %370 = vmatprep.subr.bf16.mxu0 0
  %371 = vmatpush2.bf16.msra.mxu0 0
  %372 = vmatprep.subr.bf16.mxu0 0
  %373 = vmatpush2.bf16.msra.mxu0 0
  %374 = vmatprep.subr.bf16.mxu0 0
  %375 = vmatpush2.bf16.msra.mxu0 0
  %376 = vmatprep.subr.bf16.mxu0 0
  %377 = vmatpush2.bf16.msra.mxu0 0
  %378 = vmatprep.mubr.bf16.mxu0 0
  %379 = vmatmul.mubr.bf16.gmra.mxu0 %v223
  %v380 = vpop.f32.mrf.mxu0
  %v381 = vadd.f32 0.0, %v380
  %v382 = vpop.f32.mrf.mxu0
  %v383 = vpop.f32.mrf.mxu0
  %v384 = vadd.f32 0.0, %v383
  %v385 = vpop.f32.mrf.mxu0
  %386 = vdwg.mxu0
  %v387 = vpack.c.bf16 %v384, %v381
  %v389 = vsel %vm197, %v387, 0
  %391 = vmatprep.subr.bf16.mxu0 0
  %392 = vmatpush1.bf16.msra.mxu0 0
  %393 = vmatprep.subr.bf16.mxu0 0
  %394 = vmatpush1.bf16.msra.mxu0 0
  %395 = vmatprep.subr.bf16.mxu0 0
  %396 = vmatpush1.bf16.msra.mxu0 0
  %397 = vmatprep.subr.bf16.mxu0 0
  %398 = vmatpush1.bf16.msra.mxu0 0
  %399 = vmatprep.subr.bf16.mxu0 0
  %400 = vmatpush1.bf16.msra.mxu0 0
  %401 = vmatprep.subr.bf16.mxu0 0
  %402 = vmatpush1.bf16.msra.mxu0 0
  %403 = vmatprep.subr.bf16.mxu0 0
  %404 = vmatpush1.bf16.msra.mxu0 %v323
  %405 = vmatprep.subr.bf16.mxu0 0
  %406 = vmatpush1.bf16.msra.mxu0 %v322
  %407 = vmatprep.subr.bf16.mxu0 0
  %408 = vmatpush2.bf16.msra.mxu0 0
  %409 = vmatprep.subr.bf16.mxu0 0
  %410 = vmatpush2.bf16.msra.mxu0 0
  %411 = vmatprep.subr.bf16.mxu0 0
  %412 = vmatpush2.bf16.msra.mxu0 0
  %413 = vmatprep.subr.bf16.mxu0 0
  %414 = vmatpush2.bf16.msra.mxu0 0
  %415 = vmatprep.subr.bf16.mxu0 0
  %416 = vmatpush2.bf16.msra.mxu0 0
  %417 = vmatprep.subr.bf16.mxu0 0
  %418 = vmatpush2.bf16.msra.mxu0 0
  %419 = vmatprep.subr.bf16.mxu0 0
  %420 = vmatpush2.bf16.msra.mxu0 0
  %421 = vmatprep.subr.bf16.mxu0 0
  %422 = vmatpush2.bf16.msra.mxu0 0
  %423 = vmatprep.mubr.bf16.mxu0 0
  %424 = vmatmul.mubr.bf16.gmra.mxu0 %v389
  %v425 = vpop.f32.mrf.mxu0
  %v426 = vadd.f32 %v138, %v425
  %v427 = vpop.f32.mrf.mxu0
  %v428 = vpop.f32.mrf.mxu0
  %v429 = vadd.f32 %v139, %v428
  %v430 = vpop.f32.mrf.mxu0
  %431 = vdwg.mxu0
  %v432 = vsel %vm93, %v426, -inf
  %433 = vmax.xlane.f32.xlu0 %v432
  %v434 = vpop.xlane.xlu0 %433
  %v435 = vsel %vm93, %v429, -inf
  %436 = vmax.xlane.f32.xlu0 %v435
  %v437 = vpop.xlane.xlu0 %436
  %v438 = vsub.f32 %v426, %v434
  %v439 = vsub.f32 %v429, %v437
  %v440 = vmul.f32 %v438, 1.442695
  %v441 = vpow.pop %v440
  %v442 = vmul.f32 %v439, 1.442695
  %v443 = vpow.pop %v442
  %v444 = vsel %vm93, %v441, 0.0
  %445 = vadd.xlane.f32.xlu0 %v444
  %v446 = vpop.xlane.xlu0 %445
  %v447 = vsel %vm93, %v443, 0.0
  %448 = vadd.xlane.f32.xlu0 %v447
  %v449 = vpop.xlane.xlu0 %448
  %v450 = vrcp.pop %v446
  %v451 = vrcp.pop %v449
  %v452 = vmul.f32 %v441, %v450
  %v453 = vmul.f32 %v443, %v451
  %v454 = vpack.c.bf16 %v453, %v452
  %v456 = vsel %vm93, %v454, 0
  %v459 = vsel %vm93, %v326, 0
  %v462 = vsel %vm93, %v327, 0
  %464 = vmatprep.subr.bf16.mxu0 0
  %465 = vmatpush1.bf16.xpose.msra.mxu0 0
  %466 = vmatprep.subr.bf16.mxu0 0
  %467 = vmatpush1.bf16.xpose.msra.mxu0 0
  %468 = vmatprep.subr.bf16.mxu0 0
  %469 = vmatpush1.bf16.xpose.msra.mxu0 0
  %470 = vmatprep.subr.bf16.mxu0 0
  %471 = vmatpush1.bf16.xpose.msra.mxu0 0
  %472 = vmatprep.subr.bf16.mxu0 0
  %473 = vmatpush1.bf16.xpose.msra.mxu0 0
  %474 = vmatprep.subr.bf16.mxu0 0
  %475 = vmatpush1.bf16.xpose.msra.mxu0 0
  %476 = vmatprep.subr.bf16.mxu0 0
  %477 = vmatpush1.bf16.xpose.msra.mxu0 %v462
  %478 = vmatprep.subr.bf16.mxu0 0
  %479 = vmatpush1.bf16.xpose.msra.mxu0 %v459
  %480 = vmatprep.subr.bf16.mxu0 0
  %481 = vmatpush2.bf16.xpose.msra.mxu0 0
  %482 = vmatprep.subr.bf16.mxu0 0
  %483 = vmatpush2.bf16.xpose.msra.mxu0 0
  %484 = vmatprep.subr.bf16.mxu0 0
  %485 = vmatpush2.bf16.xpose.msra.mxu0 0
  %486 = vmatprep.subr.bf16.mxu0 0
  %487 = vmatpush2.bf16.xpose.msra.mxu0 0
  %488 = vmatprep.subr.bf16.mxu0 0
  %489 = vmatpush2.bf16.xpose.msra.mxu0 0
  %490 = vmatprep.subr.bf16.mxu0 0
  %491 = vmatpush2.bf16.xpose.msra.mxu0 0
  %492 = vmatprep.subr.bf16.mxu0 0
  %493 = vmatpush2.bf16.xpose.msra.mxu0 0
  %494 = vmatprep.subr.bf16.mxu0 0
  %495 = vmatpush2.bf16.xpose.msra.mxu0 0
  %496 = vmatprep.mubr.bf16.mxu0 0
  %497 = vmatmul.mubr.bf16.gmra.mxu0 %v456
  %v498 = vpop.f32.mrf.mxu0
  %v499 = vadd.f32 0.0, %v498
  %v500 = vpop.f32.mrf.mxu0
  %v501 = vpop.f32.mrf.mxu0
  %v502 = vadd.f32 0.0, %v501
  %v503 = vpop.f32.mrf.mxu0
  %504 = vdwg.mxu0
  %v505 = vpack.c.bf16 %v502, %v499
  %v506 = vld [vmem:[%s7] sm:$0xf]
  %v507 = vld [vmem:[%s7 + $0x4] sm:$0xf]
  %v508 = vld [vmem:[%s7 + $0x8] sm:$0xf]
  %v509 = vld [vmem:[%s7 + $0xc] sm:$0xf]
  %s510 = scalar_lea.vmem %s5, 16
  %v511 = vld [vmem:[%s510] sm:$0xf]
  %v512 = vld [vmem:[%s510 + $0x4] sm:$0xf]
  %v513 = vld [vmem:[%s510 + $0x8] sm:$0xf]
  %v514 = vld [vmem:[%s510 + $0xc] sm:$0xf]
  %v519 = vunpack.c.l.b16 %v511
  %v520 = vunpack.c.l.b16 %v512
  %v521 = vunpack.c.l.b16 %v513
  %v522 = vunpack.c.l.b16 %v514
  %v523 = vpack.c.b16 %v520, %v519
  %v524 = vpack.c.b16 %v522, %v521
  %527 = vmatprep.subr.bf16.mxu0 0
  %528 = vmatpush1.bf16.msra.mxu0 0
  %529 = vmatprep.subr.bf16.mxu0 0
  %530 = vmatpush1.bf16.msra.mxu0 0
  %531 = vmatprep.subr.bf16.mxu0 0
  %532 = vmatpush1.bf16.msra.mxu0 0
  %533 = vmatprep.subr.bf16.mxu0 0
  %534 = vmatpush1.bf16.msra.mxu0 0
  %535 = vmatprep.subr.bf16.mxu0 0
  %536 = vmatpush1.bf16.msra.mxu0 0
  %537 = vmatprep.subr.bf16.mxu0 0
  %538 = vmatpush1.bf16.msra.mxu0 0
  %539 = vmatprep.subr.bf16.mxu0 0
  %540 = vmatpush1.bf16.msra.mxu0 %v524
  %541 = vmatprep.subr.bf16.mxu0 0
  %542 = vmatpush1.bf16.msra.mxu0 %v523
  %543 = vmatprep.subr.bf16.mxu0 0
  %544 = vmatpush2.bf16.msra.mxu0 0
  %545 = vmatprep.subr.bf16.mxu0 0
  %546 = vmatpush2.bf16.msra.mxu0 0
  %547 = vmatprep.subr.bf16.mxu0 0
  %548 = vmatpush2.bf16.msra.mxu0 0
  %549 = vmatprep.subr.bf16.mxu0 0
  %550 = vmatpush2.bf16.msra.mxu0 0
  %551 = vmatprep.subr.bf16.mxu0 0
  %552 = vmatpush2.bf16.msra.mxu0 0
  %553 = vmatprep.subr.bf16.mxu0 0
  %554 = vmatpush2.bf16.msra.mxu0 0
  %555 = vmatprep.subr.bf16.mxu0 0
  %556 = vmatpush2.bf16.msra.mxu0 0
  %557 = vmatprep.subr.bf16.mxu0 0
  %558 = vmatpush2.bf16.msra.mxu0 0
  %559 = vmatprep.mubr.bf16.mxu0 0
  %560 = vmatmul.mubr.bf16.gmra.mxu0 %v223
  %v561 = vpop.f32.mrf.mxu0
  %v562 = vadd.f32 0.0, %v561
  %v563 = vpop.f32.mrf.mxu0
  %v564 = vpop.f32.mrf.mxu0
  %v565 = vadd.f32 0.0, %v564
  %v566 = vpop.f32.mrf.mxu0
  %567 = vdwg.mxu0
  %v568 = vpack.c.bf16 %v565, %v562
  %v570 = vsel %vm197, %v568, 0
  %572 = vmatprep.subr.bf16.mxu0 0
  %573 = vmatpush1.bf16.msra.mxu0 0
  %574 = vmatprep.subr.bf16.mxu0 0
  %575 = vmatpush1.bf16.msra.mxu0 0
  %576 = vmatprep.subr.bf16.mxu0 0
  %577 = vmatpush1.bf16.msra.mxu0 0
  %578 = vmatprep.subr.bf16.mxu0 0
  %579 = vmatpush1.bf16.msra.mxu0 0
  %580 = vmatprep.subr.bf16.mxu0 0
  %581 = vmatpush1.bf16.msra.mxu0 0
  %582 = vmatprep.subr.bf16.mxu0 0
  %583 = vmatpush1.bf16.msra.mxu0 0
  %584 = vmatprep.subr.bf16.mxu0 0
  %585 = vmatpush1.bf16.msra.mxu0 %v325
  %586 = vmatprep.subr.bf16.mxu0 0
  %587 = vmatpush1.bf16.msra.mxu0 %v324
  %588 = vmatprep.subr.bf16.mxu0 0
  %589 = vmatpush2.bf16.msra.mxu0 0
  %590 = vmatprep.subr.bf16.mxu0 0
  %591 = vmatpush2.bf16.msra.mxu0 0
  %592 = vmatprep.subr.bf16.mxu0 0
  %593 = vmatpush2.bf16.msra.mxu0 0
  %594 = vmatprep.subr.bf16.mxu0 0
  %595 = vmatpush2.bf16.msra.mxu0 0
  %596 = vmatprep.subr.bf16.mxu0 0
  %597 = vmatpush2.bf16.msra.mxu0 0
  %598 = vmatprep.subr.bf16.mxu0 0
  %599 = vmatpush2.bf16.msra.mxu0 0
  %600 = vmatprep.subr.bf16.mxu0 0
  %601 = vmatpush2.bf16.msra.mxu0 0
  %602 = vmatprep.subr.bf16.mxu0 0
  %603 = vmatpush2.bf16.msra.mxu0 0
  %604 = vmatprep.mubr.bf16.mxu0 0
  %605 = vmatmul.mubr.bf16.gmra.mxu0 %v570
  %v606 = vpop.f32.mrf.mxu0
  %v607 = vadd.f32 %v138, %v606
  %v608 = vpop.f32.mrf.mxu0
  %v609 = vpop.f32.mrf.mxu0
  %v610 = vadd.f32 %v139, %v609
  %v611 = vpop.f32.mrf.mxu0
  %612 = vdwg.mxu0
  %v613 = vsel %vm93, %v607, -inf
  %614 = vmax.xlane.f32.xlu0 %v613
  %v615 = vpop.xlane.xlu0 %614
  %v616 = vsel %vm93, %v610, -inf
  %617 = vmax.xlane.f32.xlu0 %v616
  %v618 = vpop.xlane.xlu0 %617
  %v619 = vsub.f32 %v607, %v615
  %v620 = vsub.f32 %v610, %v618
  %v621 = vmul.f32 %v619, 1.442695
  %v622 = vpow.pop %v621
  %v623 = vmul.f32 %v620, 1.442695
  %v624 = vpow.pop %v623
  %v625 = vsel %vm93, %v622, 0.0
  %626 = vadd.xlane.f32.xlu0 %v625
  %v627 = vpop.xlane.xlu0 %626
  %v628 = vsel %vm93, %v624, 0.0
  %629 = vadd.xlane.f32.xlu0 %v628
  %v630 = vpop.xlane.xlu0 %629
  %v631 = vrcp.pop %v627
  %v632 = vrcp.pop %v630
  %v633 = vmul.f32 %v622, %v631
  %v634 = vmul.f32 %v624, %v632
  %v635 = vpack.c.bf16 %v634, %v633
  %v637 = vsel %vm93, %v635, 0
  %v640 = vsel %vm93, %v328, 0
  %v643 = vsel %vm93, %v329, 0
  %645 = vmatprep.subr.bf16.mxu0 0
  %646 = vmatpush1.bf16.xpose.msra.mxu0 0
  %647 = vmatprep.subr.bf16.mxu0 0
  %648 = vmatpush1.bf16.xpose.msra.mxu0 0
  %649 = vmatprep.subr.bf16.mxu0 0
  %650 = vmatpush1.bf16.xpose.msra.mxu0 0
  %651 = vmatprep.subr.bf16.mxu0 0
  %652 = vmatpush1.bf16.xpose.msra.mxu0 0
  %653 = vmatprep.subr.bf16.mxu0 0
  %654 = vmatpush1.bf16.xpose.msra.mxu0 0
  %655 = vmatprep.subr.bf16.mxu0 0
  %656 = vmatpush1.bf16.xpose.msra.mxu0 0
  %657 = vmatprep.subr.bf16.mxu0 0
  %658 = vmatpush1.bf16.xpose.msra.mxu0 %v643
  %659 = vmatprep.subr.bf16.mxu0 0
  %660 = vmatpush1.bf16.xpose.msra.mxu0 %v640
  %661 = vmatprep.subr.bf16.mxu0 0
  %662 = vmatpush2.bf16.xpose.msra.mxu0 0
  %663 = vmatprep.subr.bf16.mxu0 0
  %664 = vmatpush2.bf16.xpose.msra.mxu0 0
  %665 = vmatprep.subr.bf16.mxu0 0
  %666 = vmatpush2.bf16.xpose.msra.mxu0 0
  %667 = vmatprep.subr.bf16.mxu0 0
  %668 = vmatpush2.bf16.xpose.msra.mxu0 0
  %669 = vmatprep.subr.bf16.mxu0 0
  %670 = vmatpush2.bf16.xpose.msra.mxu0 0
  %671 = vmatprep.subr.bf16.mxu0 0
  %672 = vmatpush2.bf16.xpose.msra.mxu0 0
  %673 = vmatprep.subr.bf16.mxu0 0
  %674 = vmatpush2.bf16.xpose.msra.mxu0 0
  %675 = vmatprep.subr.bf16.mxu0 0
  %676 = vmatpush2.bf16.xpose.msra.mxu0 0
  %677 = vmatprep.mubr.bf16.mxu0 0
  %678 = vmatmul.mubr.bf16.gmra.mxu0 %v637
  %v679 = vpop.f32.mrf.mxu0
  %v680 = vadd.f32 0.0, %v679
  %v681 = vpop.f32.mrf.mxu0
  %v682 = vpop.f32.mrf.mxu0
  %v683 = vadd.f32 0.0, %v682
  %v684 = vpop.f32.mrf.mxu0
  %685 = vdwg.mxu0
  %v686 = vpack.c.bf16 %v683, %v680
  %s687 = scalar_lea.vmem %s7, 16
  %v688 = vld [vmem:[%s687] sm:$0xf]
  %v689 = vld [vmem:[%s687 + $0x4] sm:$0xf]
  %v690 = vld [vmem:[%s687 + $0x8] sm:$0xf]
  %v691 = vld [vmem:[%s687 + $0xc] sm:$0xf]
  %v696 = vunpack.c.l.b16 %v688
  %v697 = vunpack.c.l.b16 %v689
  %v698 = vunpack.c.l.b16 %v690
  %v699 = vunpack.c.l.b16 %v691
  %v700 = vpack.c.b16 %v697, %v696
  %v701 = vpack.c.b16 %v699, %v698
  %v705 = vsel %vm197, %v686, 0
  %707 = vmatprep.subr.bf16.mxu0 0
  %708 = vmatpush1.bf16.msra.mxu0 0
  %709 = vmatprep.subr.bf16.mxu0 0
  %710 = vmatpush1.bf16.msra.mxu0 0
  %711 = vmatprep.subr.bf16.mxu0 0
  %712 = vmatpush1.bf16.msra.mxu0 0
  %713 = vmatprep.subr.bf16.mxu0 0
  %714 = vmatpush1.bf16.msra.mxu0 0
  %715 = vmatprep.subr.bf16.mxu0 0
  %716 = vmatpush1.bf16.msra.mxu0 0
  %717 = vmatprep.subr.bf16.mxu0 0
  %718 = vmatpush1.bf16.msra.mxu0 0
  %719 = vmatprep.subr.bf16.mxu0 0
  %720 = vmatpush1.bf16.msra.mxu0 %v701
  %721 = vmatprep.subr.bf16.mxu0 0
  %722 = vmatpush1.bf16.msra.mxu0 %v700
  %723 = vmatprep.subr.bf16.mxu0 0
  %724 = vmatpush2.bf16.msra.mxu0 0
  %725 = vmatprep.subr.bf16.mxu0 0
  %726 = vmatpush2.bf16.msra.mxu0 0
  %727 = vmatprep.subr.bf16.mxu0 0
  %728 = vmatpush2.bf16.msra.mxu0 0
  %729 = vmatprep.subr.bf16.mxu0 0
  %730 = vmatpush2.bf16.msra.mxu0 0
  %731 = vmatprep.subr.bf16.mxu0 0
  %732 = vmatpush2.bf16.msra.mxu0 0
  %733 = vmatprep.subr.bf16.mxu0 0
  %734 = vmatpush2.bf16.msra.mxu0 0
  %735 = vmatprep.subr.bf16.mxu0 0
  %736 = vmatpush2.bf16.msra.mxu0 0
  %737 = vmatprep.subr.bf16.mxu0 0
  %738 = vmatpush2.bf16.msra.mxu0 0
  %739 = vmatprep.mubr.bf16.mxu0 0
  %740 = vmatmul.mubr.bf16.gmra.mxu0 %v705
  %v741 = vpop.f32.mrf.mxu0
  %v742 = vadd.f32 0.0, %v741
  %v743 = vpop.f32.mrf.mxu0
  %v744 = vpop.f32.mrf.mxu0
  %v745 = vadd.f32 0.0, %v744
  %v746 = vpop.f32.mrf.mxu0
  %747 = vdwg.mxu0
  %v752 = vunpack.c.l.b16 %v506
  %v753 = vunpack.c.l.b16 %v507
  %v754 = vunpack.c.l.b16 %v508
  %v755 = vunpack.c.l.b16 %v509
  %v756 = vpack.c.b16 %v753, %v752
  %v757 = vpack.c.b16 %v755, %v754
  %v761 = vsel %vm197, %v505, 0
  %763 = vmatprep.subr.bf16.mxu0 0
  %764 = vmatpush1.bf16.msra.mxu0 0
  %765 = vmatprep.subr.bf16.mxu0 0
  %766 = vmatpush1.bf16.msra.mxu0 0
  %767 = vmatprep.subr.bf16.mxu0 0
  %768 = vmatpush1.bf16.msra.mxu0 0
  %769 = vmatprep.subr.bf16.mxu0 0
  %770 = vmatpush1.bf16.msra.mxu0 0
  %771 = vmatprep.subr.bf16.mxu0 0
  %772 = vmatpush1.bf16.msra.mxu0 0
  %773 = vmatprep.subr.bf16.mxu0 0
  %774 = vmatpush1.bf16.msra.mxu0 0
  %775 = vmatprep.subr.bf16.mxu0 0
  %776 = vmatpush1.bf16.msra.mxu0 %v757
  %777 = vmatprep.subr.bf16.mxu0 0
  %778 = vmatpush1.bf16.msra.mxu0 %v756
  %779 = vmatprep.subr.bf16.mxu0 0
  %780 = vmatpush2.bf16.msra.mxu0 0
  %781 = vmatprep.subr.bf16.mxu0 0
  %782 = vmatpush2.bf16.msra.mxu0 0
  %783 = vmatprep.subr.bf16.mxu0 0
  %784 = vmatpush2.bf16.msra.mxu0 0
  %785 = vmatprep.subr.bf16.mxu0 0
  %786 = vmatpush2.bf16.msra.mxu0 0
  %787 = vmatprep.subr.bf16.mxu0 0
  %788 = vmatpush2.bf16.msra.mxu0 0
  %789 = vmatprep.subr.bf16.mxu0 0
  %790 = vmatpush2.bf16.msra.mxu0 0
  %791 = vmatprep.subr.bf16.mxu0 0
  %792 = vmatpush2.bf16.msra.mxu0 0
  %793 = vmatprep.subr.bf16.mxu0 0
  %794 = vmatpush2.bf16.msra.mxu0 0
  %795 = vmatprep.mubr.bf16.mxu0 0
  %796 = vmatmul.mubr.bf16.gmra.mxu0 %v761
  %v797 = vpop.f32.mrf.mxu0
  %v798 = vadd.f32 %v742, %v797
  %v799 = vpop.f32.mrf.mxu0
  %v800 = vpop.f32.mrf.mxu0
  %v801 = vadd.f32 %v745, %v800
  %v802 = vpop.f32.mrf.mxu0
  %803 = vdwg.mxu0
  %v804 = vld [vmem:[%s8] sm:$0x1]
  %v806 = vlaneseq
  %v807 = vshrl.u32 %v806, 7
  %v808 = vsub.s32 0, %v807
  %v809 = vrot.slane %v804, %v808
  %v811 = vadd.f32 %v798, %v809
  %v812 = vadd.f32 %v801, %v809
  %v813 = vadd.f32 %v811, %v132
  %v814 = vadd.f32 %v812, %v135
  %v815 = vsel %vm197, %v813, 0.0
  %816 = vadd.xlane.f32.xlu0 %v815
  %v817 = vpop.xlane.xlu0 %816
  %v818 = vsel %vm197, %v814, 0.0
  %819 = vadd.xlane.f32.xlu0 %v818
  %v820 = vpop.xlane.xlu0 %819
  %v821 = vrcp.pop 32.0
  %v822 = vmul.f32 %v817, %v821
  %v823 = vmul.f32 %v820, %v821
  %v824 = vsub.f32 %v813, %v822
  %v825 = vsub.f32 %v814, %v823
  %v826 = vmul.f32 %v824, %v824
  %v827 = vmul.f32 %v825, %v825
  %v828 = vsel %vm197, %v826, 0.0
  %829 = vadd.xlane.f32.xlu0 %v828
  %v830 = vpop.xlane.xlu0 %829
  %v831 = vsel %vm197, %v827, 0.0
  %832 = vadd.xlane.f32.xlu0 %v831
  %v833 = vpop.xlane.xlu0 %832
  %v834 = vmul.f32 %v830, %v821
  %v835 = vmul.f32 %v833, %v821
  %v836 = vadd.f32 %v834, 1e-05
  %v837 = vadd.f32 %v835, 1e-05
  %v838 = vrsqrt.pop %v836
  %v839 = vrsqrt.pop %v837
  %v840 = vmul.f32 %v824, %v838
  %v841 = vmul.f32 %v825, %v839
  %v842 = vld [vmem:[%s9] sm:$0x1]
  %v844 = vlaneseq
  %v845 = vshrl.u32 %v844, 7
  %v846 = vsub.s32 0, %v845
  %v847 = vrot.slane %v842, %v846
  %v849 = vmul.f32 %v840, %v847
  %v850 = vmul.f32 %v841, %v847
  %v851 = vld [vmem:[%s10] sm:$0x1]
  %v853 = vlaneseq
  %v854 = vshrl.u32 %v853, 7
  %v855 = vsub.s32 0, %v854
  %v856 = vrot.slane %v851, %v855
  %v858 = vadd.f32 %v849, %v856
  %v859 = vadd.f32 %v850, %v856
  %v860 = vpack.c.bf16 %v859, %v858
  %v861 = vld [vmem:[%s11] sm:$0xf]
  %v862 = vld [vmem:[%s11 + $0x4] sm:$0xf]
  %v863 = vld [vmem:[%s11 + $0x8] sm:$0xf]
  %v864 = vld [vmem:[%s11 + $0xc] sm:$0xf]
  %v865 = vld [vmem:[%s12] sm:$0x1]
  %v867 = vlaneseq
  %v868 = vshrl.u32 %v867, 7
  %v869 = vsub.s32 0, %v868
  %v870 = vrot.slane %v865, %v869
  %v876 = vunpack.c.l.b16 %v861
  %v877 = vunpack.c.l.b16 %v862
  %v878 = vunpack.c.l.b16 %v863
  %v879 = vunpack.c.l.b16 %v864
  %v880 = vpack.c.b16 %v877, %v876
  %v881 = vpack.c.b16 %v879, %v878
  %v885 = vsel %vm197, %v860, 0
  %887 = vmatprep.subr.bf16.mxu0 0
  %888 = vmatpush1.bf16.msra.mxu0 0
  %889 = vmatprep.subr.bf16.mxu0 0
  %890 = vmatpush1.bf16.msra.mxu0 0
  %891 = vmatprep.subr.bf16.mxu0 0
  %892 = vmatpush1.bf16.msra.mxu0 0
  %893 = vmatprep.subr.bf16.mxu0 0
  %894 = vmatpush1.bf16.msra.mxu0 0
  %895 = vmatprep.subr.bf16.mxu0 0
  %896 = vmatpush1.bf16.msra.mxu0 0
  %897 = vmatprep.subr.bf16.mxu0 0
  %898 = vmatpush1.bf16.msra.mxu0 0
  %899 = vmatprep.subr.bf16.mxu0 0
  %900 = vmatpush1.bf16.msra.mxu0 %v881
  %901 = vmatprep.subr.bf16.mxu0 0
  %902 = vmatpush1.bf16.msra.mxu0 %v880
  %903 = vmatprep.subr.bf16.mxu0 0
  %904 = vmatpush2.bf16.msra.mxu0 0
  %905 = vmatprep.subr.bf16.mxu0 0
  %906 = vmatpush2.bf16.msra.mxu0 0
  %907 = vmatprep.subr.bf16.mxu0 0
  %908 = vmatpush2.bf16.msra.mxu0 0
  %909 = vmatprep.subr.bf16.mxu0 0
  %910 = vmatpush2.bf16.msra.mxu0 0
  %911 = vmatprep.subr.bf16.mxu0 0
  %912 = vmatpush2.bf16.msra.mxu0 0
  %913 = vmatprep.subr.bf16.mxu0 0
  %914 = vmatpush2.bf16.msra.mxu0 0
  %915 = vmatprep.subr.bf16.mxu0 0
  %916 = vmatpush2.bf16.msra.mxu0 0
  %917 = vmatprep.subr.bf16.mxu0 0
  %918 = vmatpush2.bf16.msra.mxu0 0
  %919 = vmatprep.mubr.bf16.mxu0 0
  %920 = vmatmul.mubr.bf16.gmra.mxu0 %v885
  %v921 = vpop.f32.mrf.mxu0
  %v922 = vadd.f32 %v870, %v921
  %v923 = vpop.f32.mrf.mxu0
  %v924 = vpop.f32.mrf.mxu0
  %v925 = vadd.f32 %v870, %v924
  %v926 = vpop.f32.mrf.mxu0
  %927 = vdwg.mxu0
  %v928 = vmax.f32 %v922, 0.0
  %v929 = vmax.f32 %v925, 0.0
  %v930 = vpack.c.bf16 %v929, %v928
  %v931 = vld [vmem:[%s13] sm:$0xf]
  %v932 = vld [vmem:[%s13 + $0x4] sm:$0xf]
  %v933 = vld [vmem:[%s13 + $0x8] sm:$0xf]
  %v934 = vld [vmem:[%s13 + $0xc] sm:$0xf]
  %v935 = vld [vmem:[%s13 + $0x10] sm:$0xf]
  %v936 = vld [vmem:[%s13 + $0x14] sm:$0xf]
  %v937 = vld [vmem:[%s13 + $0x18] sm:$0xf]
  %v938 = vld [vmem:[%s13 + $0x1c] sm:$0xf]
  %v939 = vld [vmem:[%s13 + $0x20] sm:$0xf]
  %v940 = vld [vmem:[%s13 + $0x24] sm:$0xf]
  %v941 = vld [vmem:[%s13 + $0x28] sm:$0xf]
  %v942 = vld [vmem:[%s13 + $0x2c] sm:$0xf]
  %v943 = vld [vmem:[%s13 + $0x30] sm:$0xf]
  %v944 = vld [vmem:[%s13 + $0x34] sm:$0xf]
  %v945 = vld [vmem:[%s13 + $0x38] sm:$0xf]
  %v946 = vld [vmem:[%s13 + $0x3c] sm:$0xf]
  %v947 = vld [vmem:[%s14] sm:$0x1]
  %v949 = vlaneseq
  %v950 = vshrl.u32 %v949, 7
  %v951 = vsub.s32 0, %v950
  %v952 = vrot.slane %v947, %v951
  %v970 = vunpack.c.l.b16 %v931
  %v971 = vunpack.c.l.b16 %v932
  %v972 = vunpack.c.l.b16 %v933
  %v973 = vunpack.c.l.b16 %v934
  %v974 = vunpack.c.l.b16 %v935
  %v975 = vunpack.c.l.b16 %v936
  %v976 = vunpack.c.l.b16 %v937
  %v977 = vunpack.c.l.b16 %v938
  %v978 = vunpack.c.l.b16 %v939
  %v979 = vunpack.c.l.b16 %v940
  %v980 = vunpack.c.l.b16 %v941
  %v981 = vunpack.c.l.b16 %v942
  %v982 = vunpack.c.l.b16 %v943
  %v983 = vunpack.c.l.b16 %v944
  %v984 = vunpack.c.l.b16 %v945
  %v985 = vunpack.c.l.b16 %v946
  %v986 = vpack.c.b16 %v971, %v970
  %v987 = vpack.c.b16 %v973, %v972
  %v988 = vpack.c.b16 %v975, %v974
  %v989 = vpack.c.b16 %v977, %v976
  %v990 = vpack.c.b16 %v979, %v978
  %v991 = vpack.c.b16 %v981, %v980
  %v992 = vpack.c.b16 %v983, %v982
  %v993 = vpack.c.b16 %v985, %v984
  %1002 = vmatprep.subr.bf16.mxu0 0
  %1003 = vmatpush1.bf16.msra.mxu0 %v993
  %1004 = vmatprep.subr.bf16.mxu0 0
  %1005 = vmatpush1.bf16.msra.mxu0 %v992
  %1006 = vmatprep.subr.bf16.mxu0 0
  %1007 = vmatpush1.bf16.msra.mxu0 %v991
  %1008 = vmatprep.subr.bf16.mxu0 0
  %1009 = vmatpush1.bf16.msra.mxu0 %v990
  %1010 = vmatprep.subr.bf16.mxu0 0
  %1011 = vmatpush1.bf16.msra.mxu0 %v989
  %1012 = vmatprep.subr.bf16.mxu0 0
  %1013 = vmatpush1.bf16.msra.mxu0 %v988
  %1014 = vmatprep.subr.bf16.mxu0 0
  %1015 = vmatpush1.bf16.msra.mxu0 %v987
  %1016 = vmatprep.subr.bf16.mxu0 0
  %1017 = vmatpush1.bf16.msra.mxu0 %v986
  %1018 = vmatprep.subr.bf16.mxu0 0
  %1019 = vmatpush2.bf16.msra.mxu0 0
  %1020 = vmatprep.subr.bf16.mxu0 0
  %1021 = vmatpush2.bf16.msra.mxu0 0
  %1022 = vmatprep.subr.bf16.mxu0 0
  %1023 = vmatpush2.bf16.msra.mxu0 0
  %1024 = vmatprep.subr.bf16.mxu0 0
  %1025 = vmatpush2.bf16.msra.mxu0 0
  %1026 = vmatprep.subr.bf16.mxu0 0
  %1027 = vmatpush2.bf16.msra.mxu0 0
  %1028 = vmatprep.subr.bf16.mxu0 0
  %1029 = vmatpush2.bf16.msra.mxu0 0
  %1030 = vmatprep.subr.bf16.mxu0 0
  %1031 = vmatpush2.bf16.msra.mxu0 0
  %1032 = vmatprep.subr.bf16.mxu0 0
  %1033 = vmatpush2.bf16.msra.mxu0 0
  %1034 = vmatprep.mubr.bf16.mxu0 0
  %1035 = vmatmul.mubr.bf16.gmra.mxu0 %v930
  %v1036 = vpop.f32.mrf.mxu0
  %v1037 = vadd.f32 %v952, %v1036
  %v1038 = vpop.f32.mrf.mxu0
  %v1039 = vpop.f32.mrf.mxu0
  %v1040 = vadd.f32 %v952, %v1039
  %v1041 = vpop.f32.mrf.mxu0
  %1042 = vdwg.mxu0
  %v1043 = vadd.f32 %v1037, %v858
  %v1044 = vadd.f32 %v1040, %v859
  %v1045 = vsel %vm197, %v1043, 0.0
  %1046 = vadd.xlane.f32.xlu0 %v1045
  %v1047 = vpop.xlane.xlu0 %1046
  %v1048 = vsel %vm197, %v1044, 0.0
  %1049 = vadd.xlane.f32.xlu0 %v1048
  %v1050 = vpop.xlane.xlu0 %1049
  %v1051 = vmul.f32 %v1047, %v821
  %v1052 = vmul.f32 %v1050, %v821
  %v1053 = vsub.f32 %v1043, %v1051
  %v1054 = vsub.f32 %v1044, %v1052
  %v1055 = vmul.f32 %v1053, %v1053
  %v1056 = vmul.f32 %v1054, %v1054
  %v1057 = vsel %vm197, %v1055, 0.0
  %1058 = vadd.xlane.f32.xlu0 %v1057
  %v1059 = vpop.xlane.xlu0 %1058
  %v1060 = vsel %vm197, %v1056, 0.0
  %1061 = vadd.xlane.f32.xlu0 %v1060
  %v1062 = vpop.xlane.xlu0 %1061
  %v1063 = vmul.f32 %v1059, %v821
  %v1064 = vmul.f32 %v1062, %v821
  %v1065 = vadd.f32 %v1063, 1e-05
  %v1066 = vadd.f32 %v1064, 1e-05
  %v1067 = vrsqrt.pop %v1065
  %v1068 = vrsqrt.pop %v1066
  %v1069 = vmul.f32 %v1053, %v1067
  %v1070 = vmul.f32 %v1054, %v1068
  %v1071 = vld [vmem:[%s15] sm:$0x1]
  %v1073 = vlaneseq
  %v1074 = vshrl.u32 %v1073, 7
  %v1075 = vsub.s32 0, %v1074
  %v1076 = vrot.slane %v1071, %v1075
  %v1078 = vmul.f32 %v1069, %v1076
  %v1079 = vmul.f32 %v1070, %v1076
  %v1080 = vld [vmem:[%s16] sm:$0x1]
  %v1082 = vlaneseq
  %v1083 = vshrl.u32 %v1082, 7
  %v1084 = vsub.s32 0, %v1083
  %v1085 = vrot.slane %v1080, %v1084
  %v1087 = vadd.f32 %v1078, %v1085
  %v1088 = vadd.f32 %v1079, %v1085
  %v1089 = vpack.c.bf16 %v1088, %v1087
  %s1090 = scalar_lea.vmem %s6, 64
  %v1091 = vld [vmem:[%s1090] sm:$0xf]
  %v1092 = vld [vmem:[%s1090 + $0x4] sm:$0xf]
  %v1093 = vld [vmem:[%s1090 + $0x8] sm:$0xf]
  %v1094 = vld [vmem:[%s1090 + $0xc] sm:$0xf]
  %v1095 = vld [vmem:[%s1090 + $0x10] sm:$0xf]
  %v1096 = vld [vmem:[%s1090 + $0x14] sm:$0xf]
  %v1097 = vld [vmem:[%s1090 + $0x18] sm:$0xf]
  %v1098 = vld [vmem:[%s1090 + $0x1c] sm:$0xf]
  %v1099 = vld [vmem:[%s1090 + $0x20] sm:$0xf]
  %v1100 = vld [vmem:[%s1090 + $0x24] sm:$0xf]
  %v1101 = vld [vmem:[%s1090 + $0x28] sm:$0xf]
  %v1102 = vld [vmem:[%s1090 + $0x2c] sm:$0xf]
  %v1103 = vld [vmem:[%s1090 + $0x30] sm:$0xf]
  %v1104 = vld [vmem:[%s1090 + $0x34] sm:$0xf]
  %v1105 = vld [vmem:[%s1090 + $0x38] sm:$0xf]
  %v1106 = vld [vmem:[%s1090 + $0x3c] sm:$0xf]
  %v1123 = vunpack.c.l.b16 %v1091
  %v1124 = vunpack.c.l.b16 %v1092
  %v1125 = vunpack.c.l.b16 %v1093
  %v1126 = vunpack.c.l.b16 %v1094
  %v1127 = vunpack.c.l.b16 %v1095
  %v1128 = vunpack.c.l.b16 %v1096
  %v1129 = vunpack.c.l.b16 %v1097
  %v1130 = vunpack.c.l.b16 %v1098
  %v1131 = vunpack.c.l.b16 %v1099
  %v1132 = vunpack.c.l.b16 %v1100
  %v1133 = vunpack.c.l.b16 %v1101
  %v1134 = vunpack.c.l.b16 %v1102
  %v1135 = vunpack.c.l.b16 %v1103
  %v1136 = vunpack.c.l.b16 %v1104
  %v1137 = vunpack.c.l.b16 %v1105
  %v1138 = vunpack.c.l.b16 %v1106
  %v1139 = vpack.c.b16 %v1124, %v1123
  %v1140 = vpack.c.b16 %v1126, %v1125
  %v1141 = vpack.c.b16 %v1128, %v1127
  %v1142 = vpack.c.b16 %v1130, %v1129
  %v1143 = vpack.c.b16 %v1132, %v1131
  %v1144 = vpack.c.b16 %v1134, %v1133
  %v1145 = vpack.c.b16 %v1136, %v1135
  %v1146 = vpack.c.b16 %v1138, %v1137
  %v1148 = vsel %vm197, %v1139, 0
  %v1151 = vsel %vm197, %v1140, 0
  %v1154 = vsel %vm197, %v1141, 0
  %v1157 = vsel %vm197, %v1142, 0
  %v1160 = vsel %vm197, %v1143, 0
  %v1163 = vsel %vm197, %v1144, 0
  %v1166 = vsel %vm197, %v1145, 0
  %v1169 = vsel %vm197, %v1146, 0
  %v1172 = vsel %vm197, %v1089, 0
  %1174 = vmatprep.subr.bf16.mxu0 0
  %1175 = vmatpush1.bf16.xpose.msra.mxu0 0
  %1176 = vmatprep.subr.bf16.mxu0 0
  %1177 = vmatpush1.bf16.xpose.msra.mxu0 0
  %1178 = vmatprep.subr.bf16.mxu0 0
  %1179 = vmatpush1.bf16.xpose.msra.mxu0 0
  %1180 = vmatprep.subr.bf16.mxu0 0
  %1181 = vmatpush1.bf16.xpose.msra.mxu0 0
  %1182 = vmatprep.subr.bf16.mxu0 0
  %1183 = vmatpush1.bf16.xpose.msra.mxu0 0
  %1184 = vmatprep.subr.bf16.mxu0 0
  %1185 = vmatpush1.bf16.xpose.msra.mxu0 0
  %1186 = vmatprep.subr.bf16.mxu0 0
  %1187 = vmatpush1.bf16.xpose.msra.mxu0 0
  %1188 = vmatprep.subr.bf16.mxu0 0
  %1189 = vmatpush1.bf16.xpose.msra.mxu0 %v1172
  %1190 = vmatprep.subr.bf16.mxu0 0
  %1191 = vmatpush2.bf16.xpose.msra.mxu0 0
  %1192 = vmatprep.subr.bf16.mxu0 0
  %1193 = vmatpush2.bf16.xpose.msra.mxu0 0
  %1194 = vmatprep.subr.bf16.mxu0 0
  %1195 = vmatpush2.bf16.xpose.msra.mxu0 0
  %1196 = vmatprep.subr.bf16.mxu0 0
  %1197 = vmatpush2.bf16.xpose.msra.mxu0 0
  %1198 = vmatprep.subr.bf16.mxu0 0
  %1199 = vmatpush2.bf16.xpose.msra.mxu0 0
  %1200 = vmatprep.subr.bf16.mxu0 0
  %1201 = vmatpush2.bf16.xpose.msra.mxu0 0
  %1202 = vmatprep.subr.bf16.mxu0 0
  %1203 = vmatpush2.bf16.xpose.msra.mxu0 0
  %1204 = vmatprep.subr.bf16.mxu0 0
  %1205 = vmatpush2.bf16.xpose.msra.mxu0 0
  %1206 = vmatprep.mubr.bf16.mxu0 0
  %1207 = vmatmul.mubr.bf16.gmra.mxu0 %v1148
  %v1208 = vpop.f32.mrf.mxu0
  %v1209 = vadd.f32 0.0, %v1208
  %v1210 = vpop.f32.mrf.mxu0
  %v1211 = vpop.f32.mrf.mxu0
  %v1212 = vadd.f32 0.0, %v1211
  %v1213 = vpop.f32.mrf.mxu0
  %1214 = vmatprep.mubr.bf16.mxu0 0
  %1215 = vmatmul.mubr.bf16.gmra.mxu0 %v1151
  %v1216 = vpop.f32.mrf.mxu0
  %v1217 = vadd.f32 0.0, %v1216
  %v1218 = vpop.f32.mrf.mxu0
  %v1219 = vpop.f32.mrf.mxu0
  %v1220 = vadd.f32 0.0, %v1219
  %v1221 = vpop.f32.mrf.mxu0
  %1222 = vmatprep.mubr.bf16.mxu0 0
  %1223 = vmatmul.mubr.bf16.gmra.mxu0 %v1154
  %v1224 = vpop.f32.mrf.mxu0
  %v1225 = vadd.f32 0.0, %v1224
  %v1226 = vpop.f32.mrf.mxu0
  %v1227 = vpop.f32.mrf.mxu0
  %v1228 = vadd.f32 0.0, %v1227
  %v1229 = vpop.f32.mrf.mxu0
  %1230 = vmatprep.mubr.bf16.mxu0 0
  %1231 = vmatmul.mubr.bf16.gmra.mxu0 %v1157
  %v1232 = vpop.f32.mrf.mxu0
  %v1233 = vadd.f32 0.0, %v1232
  %v1234 = vpop.f32.mrf.mxu0
  %v1235 = vpop.f32.mrf.mxu0
  %v1236 = vadd.f32 0.0, %v1235
  %v1237 = vpop.f32.mrf.mxu0
  %1238 = vmatprep.mubr.bf16.mxu0 0
  %1239 = vmatmul.mubr.bf16.gmra.mxu0 %v1160
  %v1240 = vpop.f32.mrf.mxu0
  %v1241 = vadd.f32 0.0, %v1240
  %v1242 = vpop.f32.mrf.mxu0
  %v1243 = vpop.f32.mrf.mxu0
  %v1244 = vadd.f32 0.0, %v1243
  %v1245 = vpop.f32.mrf.mxu0
  %1246 = vmatprep.mubr.bf16.mxu0 0
  %1247 = vmatmul.mubr.bf16.gmra.mxu0 %v1163
  %v1248 = vpop.f32.mrf.mxu0
  %v1249 = vadd.f32 0.0, %v1248
  %v1250 = vpop.f32.mrf.mxu0
  %v1251 = vpop.f32.mrf.mxu0
  %v1252 = vadd.f32 0.0, %v1251
  %v1253 = vpop.f32.mrf.mxu0
  %1254 = vmatprep.mubr.bf16.mxu0 0
  %1255 = vmatmul.mubr.bf16.gmra.mxu0 %v1166
  %v1256 = vpop.f32.mrf.mxu0
  %v1257 = vadd.f32 0.0, %v1256
  %v1258 = vpop.f32.mrf.mxu0
  %v1259 = vpop.f32.mrf.mxu0
  %v1260 = vadd.f32 0.0, %v1259
  %v1261 = vpop.f32.mrf.mxu0
  %1262 = vmatprep.mubr.bf16.mxu0 0
  %1263 = vmatmul.mubr.bf16.gmra.mxu0 %v1169
  %v1264 = vpop.f32.mrf.mxu0
  %v1265 = vadd.f32 0.0, %v1264
  %v1266 = vpop.f32.mrf.mxu0
  %v1267 = vpop.f32.mrf.mxu0
  %v1268 = vadd.f32 0.0, %v1267
  %v1269 = vpop.f32.mrf.mxu0
  %1270 = vdwg.mxu0
  %v1271 = vpack.c.bf16 %v1212, %v1209
  %v1272 = vpack.c.bf16 %v1220, %v1217
  %v1273 = vpack.c.bf16 %v1228, %v1225
  %v1274 = vpack.c.bf16 %v1236, %v1233
  %v1275 = vpack.c.bf16 %v1244, %v1241
  %v1276 = vpack.c.bf16 %v1252, %v1249
  %v1277 = vpack.c.bf16 %v1260, %v1257
  %v1278 = vpack.c.bf16 %v1268, %v1265
  %s1279 = scalar_lea.vmem %s5, 32
  %v1280 = vld [vmem:[%s1279] sm:$0xf]
  %v1281 = vld [vmem:[%s1279 + $0x4] sm:$0xf]
  %v1282 = vld [vmem:[%s1279 + $0x8] sm:$0xf]
  %v1283 = vld [vmem:[%s1279 + $0xc] sm:$0xf]
  %v1288 = vunpack.c.l.b16 %v1280
  %v1289 = vunpack.c.l.b16 %v1281
  %v1290 = vunpack.c.l.b16 %v1282
  %v1291 = vunpack.c.l.b16 %v1283
  %v1292 = vpack.c.b16 %v1289, %v1288
  %v1293 = vpack.c.b16 %v1291, %v1290
  %1296 = vmatprep.subr.bf16.mxu0 0
  %1297 = vmatpush1.bf16.msra.mxu0 0
  %1298 = vmatprep.subr.bf16.mxu0 0
  %1299 = vmatpush1.bf16.msra.mxu0 0
  %1300 = vmatprep.subr.bf16.mxu0 0
  %1301 = vmatpush1.bf16.msra.mxu0 0
  %1302 = vmatprep.subr.bf16.mxu0 0
  %1303 = vmatpush1.bf16.msra.mxu0 0
  %1304 = vmatprep.subr.bf16.mxu0 0
  %1305 = vmatpush1.bf16.msra.mxu0 0
  %1306 = vmatprep.subr.bf16.mxu0 0
  %1307 = vmatpush1.bf16.msra.mxu0 0
  %1308 = vmatprep.subr.bf16.mxu0 0
  %1309 = vmatpush1.bf16.msra.mxu0 %v1293
  %1310 = vmatprep.subr.bf16.mxu0 0
  %1311 = vmatpush1.bf16.msra.mxu0 %v1292
  %1312 = vmatprep.subr.bf16.mxu0 0
  %1313 = vmatpush2.bf16.msra.mxu0 0
  %1314 = vmatprep.subr.bf16.mxu0 0
  %1315 = vmatpush2.bf16.msra.mxu0 0
  %1316 = vmatprep.subr.bf16.mxu0 0
  %1317 = vmatpush2.bf16.msra.mxu0 0
  %1318 = vmatprep.subr.bf16.mxu0 0
  %1319 = vmatpush2.bf16.msra.mxu0 0
  %1320 = vmatprep.subr.bf16.mxu0 0
  %1321 = vmatpush2.bf16.msra.mxu0 0
  %1322 = vmatprep.subr.bf16.mxu0 0
  %1323 = vmatpush2.bf16.msra.mxu0 0
  %1324 = vmatprep.subr.bf16.mxu0 0
  %1325 = vmatpush2.bf16.msra.mxu0 0
  %1326 = vmatprep.subr.bf16.mxu0 0
  %1327 = vmatpush2.bf16.msra.mxu0 0
  %1328 = vmatprep.mubr.bf16.mxu0 0
  %1329 = vmatmul.mubr.bf16.gmra.mxu0 %v1172
  %v1330 = vpop.f32.mrf.mxu0
  %v1331 = vadd.f32 0.0, %v1330
  %v1332 = vpop.f32.mrf.mxu0
  %v1333 = vpop.f32.mrf.mxu0
  %v1334 = vadd.f32 0.0, %v1333
  %v1335 = vpop.f32.mrf.mxu0
  %1336 = vdwg.mxu0
  %v1337 = vpack.c.bf16 %v1334, %v1331
  %v1339 = vsel %vm197, %v1337, 0
  %1341 = vmatprep.subr.bf16.mxu0 0
  %1342 = vmatpush1.bf16.msra.mxu0 0
  %1343 = vmatprep.subr.bf16.mxu0 0
  %1344 = vmatpush1.bf16.msra.mxu0 0
  %1345 = vmatprep.subr.bf16.mxu0 0
  %1346 = vmatpush1.bf16.msra.mxu0 0
  %1347 = vmatprep.subr.bf16.mxu0 0
  %1348 = vmatpush1.bf16.msra.mxu0 0
  %1349 = vmatprep.subr.bf16.mxu0 0
  %1350 = vmatpush1.bf16.msra.mxu0 0
  %1351 = vmatprep.subr.bf16.mxu0 0
  %1352 = vmatpush1.bf16.msra.mxu0 0
  %1353 = vmatprep.subr.bf16.mxu0 0
  %1354 = vmatpush1.bf16.msra.mxu0 %v1272
  %1355 = vmatprep.subr.bf16.mxu0 0
  %1356 = vmatpush1.bf16.msra.mxu0 %v1271
  %1357 = vmatprep.subr.bf16.mxu0 0
  %1358 = vmatpush2.bf16.msra.mxu0 0
  %1359 = vmatprep.subr.bf16.mxu0 0
  %1360 = vmatpush2.bf16.msra.mxu0 0
  %1361 = vmatprep.subr.bf16.mxu0 0
  %1362 = vmatpush2.bf16.msra.mxu0 0
  %1363 = vmatprep.subr.bf16.mxu0 0
  %1364 = vmatpush2.bf16.msra.mxu0 0
  %1365 = vmatprep.subr.bf16.mxu0 0
  %1366 = vmatpush2.bf16.msra.mxu0 0
  %1367 = vmatprep.subr.bf16.mxu0 0
  %1368 = vmatpush2.bf16.msra.mxu0 0
  %1369 = vmatprep.subr.bf16.mxu0 0
  %1370 = vmatpush2.bf16.msra.mxu0 0
  %1371 = vmatprep.subr.bf16.mxu0 0
  %1372 = vmatpush2.bf16.msra.mxu0 0
  %1373 = vmatprep.mubr.bf16.mxu0 0
  %1374 = vmatmul.mubr.bf16.gmra.mxu0 %v1339
  %v1375 = vpop.f32.mrf.mxu0
  %v1376 = vadd.f32 %v138, %v1375
  %v1377 = vpop.f32.mrf.mxu0
  %v1378 = vpop.f32.mrf.mxu0
  %v1379 = vadd.f32 %v139, %v1378
  %v1380 = vpop.f32.mrf.mxu0
  %1381 = vdwg.mxu0
  %v1382 = vsel %vm93, %v1376, -inf
  %1383 = vmax.xlane.f32.xlu0 %v1382
  %v1384 = vpop.xlane.xlu0 %1383
  %v1385 = vsel %vm93, %v1379, -inf
  %1386 = vmax.xlane.f32.xlu0 %v1385
  %v1387 = vpop.xlane.xlu0 %1386
  %v1388 = vsub.f32 %v1376, %v1384
  %v1389 = vsub.f32 %v1379, %v1387
  %v1390 = vmul.f32 %v1388, 1.442695
  %v1391 = vpow.pop %v1390
  %v1392 = vmul.f32 %v1389, 1.442695
  %v1393 = vpow.pop %v1392
  %v1394 = vsel %vm93, %v1391, 0.0
  %1395 = vadd.xlane.f32.xlu0 %v1394
  %v1396 = vpop.xlane.xlu0 %1395
  %v1397 = vsel %vm93, %v1393, 0.0
  %1398 = vadd.xlane.f32.xlu0 %v1397
  %v1399 = vpop.xlane.xlu0 %1398
  %v1400 = vrcp.pop %v1396
  %v1401 = vrcp.pop %v1399
  %v1402 = vmul.f32 %v1391, %v1400
  %v1403 = vmul.f32 %v1393, %v1401
  %v1404 = vpack.c.bf16 %v1403, %v1402
  %v1406 = vsel %vm93, %v1404, 0
  %v1409 = vsel %vm93, %v1275, 0
  %v1412 = vsel %vm93, %v1276, 0
  %1414 = vmatprep.subr.bf16.mxu0 0
  %1415 = vmatpush1.bf16.xpose.msra.mxu0 0
  %1416 = vmatprep.subr.bf16.mxu0 0
  %1417 = vmatpush1.bf16.xpose.msra.mxu0 0
  %1418 = vmatprep.subr.bf16.mxu0 0
  %1419 = vmatpush1.bf16.xpose.msra.mxu0 0
  %1420 = vmatprep.subr.bf16.mxu0 0
  %1421 = vmatpush1.bf16.xpose.msra.mxu0 0
  %1422 = vmatprep.subr.bf16.mxu0 0
  %1423 = vmatpush1.bf16.xpose.msra.mxu0 0
  %1424 = vmatprep.subr.bf16.mxu0 0
  %1425 = vmatpush1.bf16.xpose.msra.mxu0 0
  %1426 = vmatprep.subr.bf16.mxu0 0
  %1427 = vmatpush1.bf16.xpose.msra.mxu0 %v1412
  %1428 = vmatprep.subr.bf16.mxu0 0
  %1429 = vmatpush1.bf16.xpose.msra.mxu0 %v1409
  %1430 = vmatprep.subr.bf16.mxu0 0
  %1431 = vmatpush2.bf16.xpose.msra.mxu0 0
  %1432 = vmatprep.subr.bf16.mxu0 0
  %1433 = vmatpush2.bf16.xpose.msra.mxu0 0
  %1434 = vmatprep.subr.bf16.mxu0 0
  %1435 = vmatpush2.bf16.xpose.msra.mxu0 0
  %1436 = vmatprep.subr.bf16.mxu0 0
  %1437 = vmatpush2.bf16.xpose.msra.mxu0 0
  %1438 = vmatprep.subr.bf16.mxu0 0
  %1439 = vmatpush2.bf16.xpose.msra.mxu0 0
  %1440 = vmatprep.subr.bf16.mxu0 0
  %1441 = vmatpush2.bf16.xpose.msra.mxu0 0
  %1442 = vmatprep.subr.bf16.mxu0 0
  %1443 = vmatpush2.bf16.xpose.msra.mxu0 0
  %1444 = vmatprep.subr.bf16.mxu0 0
  %1445 = vmatpush2.bf16.xpose.msra.mxu0 0
  %1446 = vmatprep.mubr.bf16.mxu0 0
  %1447 = vmatmul.mubr.bf16.gmra.mxu0 %v1406
  %v1448 = vpop.f32.mrf.mxu0
  %v1449 = vadd.f32 0.0, %v1448
  %v1450 = vpop.f32.mrf.mxu0
  %v1451 = vpop.f32.mrf.mxu0
  %v1452 = vadd.f32 0.0, %v1451
  %v1453 = vpop.f32.mrf.mxu0
  %1454 = vdwg.mxu0
  %v1455 = vpack.c.bf16 %v1452, %v1449
  %s1456 = scalar_lea.vmem %s7, 32
  %v1457 = vld [vmem:[%s1456] sm:$0xf]
  %v1458 = vld [vmem:[%s1456 + $0x4] sm:$0xf]
  %v1459 = vld [vmem:[%s1456 + $0x8] sm:$0xf]
  %v1460 = vld [vmem:[%s1456 + $0xc] sm:$0xf]
  %s1461 = scalar_lea.vmem %s5, 48
  %v1462 = vld [vmem:[%s1461] sm:$0xf]
  %v1463 = vld [vmem:[%s1461 + $0x4] sm:$0xf]
  %v1464 = vld [vmem:[%s1461 + $0x8] sm:$0xf]
  %v1465 = vld [vmem:[%s1461 + $0xc] sm:$0xf]
  %v1470 = vunpack.c.l.b16 %v1462
  %v1471 = vunpack.c.l.b16 %v1463
  %v1472 = vunpack.c.l.b16 %v1464
  %v1473 = vunpack.c.l.b16 %v1465
  %v1474 = vpack.c.b16 %v1471, %v1470
  %v1475 = vpack.c.b16 %v1473, %v1472
  %1478 = vmatprep.subr.bf16.mxu0 0
  %1479 = vmatpush1.bf16.msra.mxu0 0
  %1480 = vmatprep.subr.bf16.mxu0 0
  %1481 = vmatpush1.bf16.msra.mxu0 0
  %1482 = vmatprep.subr.bf16.mxu0 0
  %1483 = vmatpush1.bf16.msra.mxu0 0
  %1484 = vmatprep.subr.bf16.mxu0 0
  %1485 = vmatpush1.bf16.msra.mxu0 0
  %1486 = vmatprep.subr.bf16.mxu0 0
  %1487 = vmatpush1.bf16.msra.mxu0 0
  %1488 = vmatprep.subr.bf16.mxu0 0
  %1489 = vmatpush1.bf16.msra.mxu0 0
  %1490 = vmatprep.subr.bf16.mxu0 0
  %1491 = vmatpush1.bf16.msra.mxu0 %v1475
  %1492 = vmatprep.subr.bf16.mxu0 0
  %1493 = vmatpush1.bf16.msra.mxu0 %v1474
  %1494 = vmatprep.subr.bf16.mxu0 0
  %1495 = vmatpush2.bf16.msra.mxu0 0
  %1496 = vmatprep.subr.bf16.mxu0 0
  %1497 = vmatpush2.bf16.msra.mxu0 0
  %1498 = vmatprep.subr.bf16.mxu0 0
  %1499 = vmatpush2.bf16.msra.mxu0 0
  %1500 = vmatprep.subr.bf16.mxu0 0
  %1501 = vmatpush2.bf16.msra.mxu0 0
  %1502 = vmatprep.subr.bf16.mxu0 0
  %1503 = vmatpush2.bf16.msra.mxu0 0
  %1504 = vmatprep.subr.bf16.mxu0 0
  %1505 = vmatpush2.bf16.msra.mxu0 0
  %1506 = vmatprep.subr.bf16.mxu0 0
  %1507 = vmatpush2.bf16.msra.mxu0 0
  %1508 = vmatprep.subr.bf16.mxu0 0
  %1509 = vmatpush2.bf16.msra.mxu0 0
  %1510 = vmatprep.mubr.bf16.mxu0 0
  %1511 = vmatmul.mubr.bf16.gmra.mxu0 %v1172
  %v1512 = vpop.f32.mrf.mxu0
  %v1513 = vadd.f32 0.0, %v1512
  %v1514 = vpop.f32.mrf.mxu0
  %v1515 = vpop.f32.mrf.mxu0
  %v1516 = vadd.f32 0.0, %v1515
  %v1517 = vpop.f32.mrf.mxu0
  %1518 = vdwg.mxu0
  %v1519 = vpack.c.bf16 %v1516, %v1513
  %v1521 = vsel %vm197, %v1519, 0
  %1523 = vmatprep.subr.bf16.mxu0 0
  %1524 = vmatpush1.bf16.msra.mxu0 0
  %1525 = vmatprep.subr.bf16.mxu0 0
  %1526 = vmatpush1.bf16.msra.mxu0 0
  %1527 = vmatprep.subr.bf16.mxu0 0
  %1528 = vmatpush1.bf16.msra.mxu0 0
  %1529 = vmatprep.subr.bf16.mxu0 0
  %1530 = vmatpush1.bf16.msra.mxu0 0
  %1531 = vmatprep.subr.bf16.mxu0 0
  %1532 = vmatpush1.bf16.msra.mxu0 0
  %1533 = vmatprep.subr.bf16.mxu0 0
  %1534 = vmatpush1.bf16.msra.mxu0 0
  %1535 = vmatprep.subr.bf16.mxu0 0
  %1536 = vmatpush1.bf16.msra.mxu0 %v1274
  %1537 = vmatprep.subr.bf16.mxu0 0
  %1538 = vmatpush1.bf16.msra.mxu0 %v1273
  %1539 = vmatprep.subr.bf16.mxu0 0
  %1540 = vmatpush2.bf16.msra.mxu0 0
  %1541 = vmatprep.subr.bf16.mxu0 0
  %1542 = vmatpush2.bf16.msra.mxu0 0
  %1543 = vmatprep.subr.bf16.mxu0 0
  %1544 = vmatpush2.bf16.msra.mxu0 0
  %1545 = vmatprep.subr.bf16.mxu0 0
  %1546 = vmatpush2.bf16.msra.mxu0 0
  %1547 = vmatprep.subr.bf16.mxu0 0
  %1548 = vmatpush2.bf16.msra.mxu0 0
  %1549 = vmatprep.subr.bf16.mxu0 0
  %1550 = vmatpush2.bf16.msra.mxu0 0
  %1551 = vmatprep.subr.bf16.mxu0 0
  %1552 = vmatpush2.bf16.msra.mxu0 0
  %1553 = vmatprep.subr.bf16.mxu0 0
  %1554 = vmatpush2.bf16.msra.mxu0 0
  %1555 = vmatprep.mubr.bf16.mxu0 0
  %1556 = vmatmul.mubr.bf16.gmra.mxu0 %v1521
  %v1557 = vpop.f32.mrf.mxu0
  %v1558 = vadd.f32 %v138, %v1557
  %v1559 = vpop.f32.mrf.mxu0
  %v1560 = vpop.f32.mrf.mxu0
  %v1561 = vadd.f32 %v139, %v1560
  %v1562 = vpop.f32.mrf.mxu0
  %1563 = vdwg.mxu0
  %v1564 = vsel %vm93, %v1558, -inf
  %1565 = vmax.xlane.f32.xlu0 %v1564
  %v1566 = vpop.xlane.xlu0 %1565
  %v1567 = vsel %vm93, %v1561, -inf
  %1568 = vmax.xlane.f32.xlu0 %v1567
  %v1569 = vpop.xlane.xlu0 %1568
  %v1570 = vsub.f32 %v1558, %v1566
  %v1571 = vsub.f32 %v1561, %v1569
  %v1572 = vmul.f32 %v1570, 1.442695
  %v1573 = vpow.pop %v1572
  %v1574 = vmul.f32 %v1571, 1.442695
  %v1575 = vpow.pop %v1574
  %v1576 = vsel %vm93, %v1573, 0.0
  %1577 = vadd.xlane.f32.xlu0 %v1576
  %v1578 = vpop.xlane.xlu0 %1577
  %v1579 = vsel %vm93, %v1575, 0.0
  %1580 = vadd.xlane.f32.xlu0 %v1579
  %v1581 = vpop.xlane.xlu0 %1580
  %v1582 = vrcp.pop %v1578
  %v1583 = vrcp.pop %v1581
  %v1584 = vmul.f32 %v1573, %v1582
  %v1585 = vmul.f32 %v1575, %v1583
  %v1586 = vpack.c.bf16 %v1585, %v1584
  %v1588 = vsel %vm93, %v1586, 0
  %v1591 = vsel %vm93, %v1277, 0
  %v1594 = vsel %vm93, %v1278, 0
  %1596 = vmatprep.subr.bf16.mxu0 0
  %1597 = vmatpush1.bf16.xpose.msra.mxu0 0
  %1598 = vmatprep.subr.bf16.mxu0 0
  %1599 = vmatpush1.bf16.xpose.msra.mxu0 0
  %1600 = vmatprep.subr.bf16.mxu0 0
  %1601 = vmatpush1.bf16.xpose.msra.mxu0 0
  %1602 = vmatprep.subr.bf16.mxu0 0
  %1603 = vmatpush1.bf16.xpose.msra.mxu0 0
  %1604 = vmatprep.subr.bf16.mxu0 0
  %1605 = vmatpush1.bf16.xpose.msra.mxu0 0
  %1606 = vmatprep.subr.bf16.mxu0 0
  %1607 = vmatpush1.bf16.xpose.msra.mxu0 0
  %1608 = vmatprep.subr.bf16.mxu0 0
  %1609 = vmatpush1.bf16.xpose.msra.mxu0 %v1594
  %1610 = vmatprep.subr.bf16.mxu0 0
  %1611 = vmatpush1.bf16.xpose.msra.mxu0 %v1591
  %1612 = vmatprep.subr.bf16.mxu0 0
  %1613 = vmatpush2.bf16.xpose.msra.mxu0 0
  %1614 = vmatprep.subr.bf16.mxu0 0
  %1615 = vmatpush2.bf16.xpose.msra.mxu0 0
  %1616 = vmatprep.subr.bf16.mxu0 0
  %1617 = vmatpush2.bf16.xpose.msra.mxu0 0
  %1618 = vmatprep.subr.bf16.mxu0 0
  %1619 = vmatpush2.bf16.xpose.msra.mxu0 0
  %1620 = vmatprep.subr.bf16.mxu0 0
  %1621 = vmatpush2.bf16.xpose.msra.mxu0 0
  %1622 = vmatprep.subr.bf16.mxu0 0
  %1623 = vmatpush2.bf16.xpose.msra.mxu0 0
  %1624 = vmatprep.subr.bf16.mxu0 0
  %1625 = vmatpush2.bf16.xpose.msra.mxu0 0
  %1626 = vmatprep.subr.bf16.mxu0 0
  %1627 = vmatpush2.bf16.xpose.msra.mxu0 0
  %1628 = vmatprep.mubr.bf16.mxu0 0
  %1629 = vmatmul.mubr.bf16.gmra.mxu0 %v1588
  %v1630 = vpop.f32.mrf.mxu0
  %v1631 = vadd.f32 0.0, %v1630
  %v1632 = vpop.f32.mrf.mxu0
  %v1633 = vpop.f32.mrf.mxu0
  %v1634 = vadd.f32 0.0, %v1633
  %v1635 = vpop.f32.mrf.mxu0
  %1636 = vdwg.mxu0
  %v1637 = vpack.c.bf16 %v1634, %v1631
  %s1638 = scalar_lea.vmem %s7, 48
  %v1639 = vld [vmem:[%s1638] sm:$0xf]
  %v1640 = vld [vmem:[%s1638 + $0x4] sm:$0xf]
  %v1641 = vld [vmem:[%s1638 + $0x8] sm:$0xf]
  %v1642 = vld [vmem:[%s1638 + $0xc] sm:$0xf]
  %v1647 = vunpack.c.l.b16 %v1639
  %v1648 = vunpack.c.l.b16 %v1640
  %v1649 = vunpack.c.l.b16 %v1641
  %v1650 = vunpack.c.l.b16 %v1642
  %v1651 = vpack.c.b16 %v1648, %v1647
  %v1652 = vpack.c.b16 %v1650, %v1649
  %v1656 = vsel %vm197, %v1637, 0
  %1658 = vmatprep.subr.bf16.mxu0 0
  %1659 = vmatpush1.bf16.msra.mxu0 0
  %1660 = vmatprep.subr.bf16.mxu0 0
  %1661 = vmatpush1.bf16.msra.mxu0 0
  %1662 = vmatprep.subr.bf16.mxu0 0
  %1663 = vmatpush1.bf16.msra.mxu0 0
  %1664 = vmatprep.subr.bf16.mxu0 0
  %1665 = vmatpush1.bf16.msra.mxu0 0
  %1666 = vmatprep.subr.bf16.mxu0 0
  %1667 = vmatpush1.bf16.msra.mxu0 0
  %1668 = vmatprep.subr.bf16.mxu0 0
  %1669 = vmatpush1.bf16.msra.mxu0 0
  %1670 = vmatprep.subr.bf16.mxu0 0
  %1671 = vmatpush1.bf16.msra.mxu0 %v1652
  %1672 = vmatprep.subr.bf16.mxu0 0
  %1673 = vmatpush1.bf16.msra.mxu0 %v1651
  %1674 = vmatprep.subr.bf16.mxu0 0
  %1675 = vmatpush2.bf16.msra.mxu0 0
  %1676 = vmatprep.subr.bf16.mxu0 0
  %1677 = vmatpush2.bf16.msra.mxu0 0
  %1678 = vmatprep.subr.bf16.mxu0 0
  %1679 = vmatpush2.bf16.msra.mxu0 0
  %1680 = vmatprep.subr.bf16.mxu0 0
  %1681 = vmatpush2.bf16.msra.mxu0 0
  %1682 = vmatprep.subr.bf16.mxu0 0
  %1683 = vmatpush2.bf16.msra.mxu0 0
  %1684 = vmatprep.subr.bf16.mxu0 0
  %1685 = vmatpush2.bf16.msra.mxu0 0
  %1686 = vmatprep.subr.bf16.mxu0 0
  %1687 = vmatpush2.bf16.msra.mxu0 0
  %1688 = vmatprep.subr.bf16.mxu0 0
  %1689 = vmatpush2.bf16.msra.mxu0 0
  %1690 = vmatprep.mubr.bf16.mxu0 0
  %1691 = vmatmul.mubr.bf16.gmra.mxu0 %v1656
  %v1692 = vpop.f32.mrf.mxu0
  %v1693 = vadd.f32 0.0, %v1692
  %v1694 = vpop.f32.mrf.mxu0
  %v1695 = vpop.f32.mrf.mxu0
  %v1696 = vadd.f32 0.0, %v1695
  %v1697 = vpop.f32.mrf.mxu0
  %1698 = vdwg.mxu0
  %v1703 = vunpack.c.l.b16 %v1457
  %v1704 = vunpack.c.l.b16 %v1458
  %v1705 = vunpack.c.l.b16 %v1459
  %v1706 = vunpack.c.l.b16 %v1460
  %v1707 = vpack.c.b16 %v1704, %v1703
  %v1708 = vpack.c.b16 %v1706, %v1705
  %v1712 = vsel %vm197, %v1455, 0
  %1714 = vmatprep.subr.bf16.mxu0 0
  %1715 = vmatpush1.bf16.msra.mxu0 0
  %1716 = vmatprep.subr.bf16.mxu0 0
  %1717 = vmatpush1.bf16.msra.mxu0 0
  %1718 = vmatprep.subr.bf16.mxu0 0
  %1719 = vmatpush1.bf16.msra.mxu0 0
  %1720 = vmatprep.subr.bf16.mxu0 0
  %1721 = vmatpush1.bf16.msra.mxu0 0
  %1722 = vmatprep.subr.bf16.mxu0 0
  %1723 = vmatpush1.bf16.msra.mxu0 0
  %1724 = vmatprep.subr.bf16.mxu0 0
  %1725 = vmatpush1.bf16.msra.mxu0 0
  %1726 = vmatprep.subr.bf16.mxu0 0
  %1727 = vmatpush1.bf16.msra.mxu0 %v1708
  %1728 = vmatprep.subr.bf16.mxu0 0
  %1729 = vmatpush1.bf16.msra.mxu0 %v1707
  %1730 = vmatprep.subr.bf16.mxu0 0
  %1731 = vmatpush2.bf16.msra.mxu0 0
  %1732 = vmatprep.subr.bf16.mxu0 0
  %1733 = vmatpush2.bf16.msra.mxu0 0
  %1734 = vmatprep.subr.bf16.mxu0 0
  %1735 = vmatpush2.bf16.msra.mxu0 0
  %1736 = vmatprep.subr.bf16.mxu0 0
  %1737 = vmatpush2.bf16.msra.mxu0 0
  %1738 = vmatprep.subr.bf16.mxu0 0
  %1739 = vmatpush2.bf16.msra.mxu0 0
  %1740 = vmatprep.subr.bf16.mxu0 0
  %1741 = vmatpush2.bf16.msra.mxu0 0
  %1742 = vmatprep.subr.bf16.mxu0 0
  %1743 = vmatpush2.bf16.msra.mxu0 0
  %1744 = vmatprep.subr.bf16.mxu0 0
  %1745 = vmatpush2.bf16.msra.mxu0 0
  %1746 = vmatprep.mubr.bf16.mxu0 0
  %1747 = vmatmul.mubr.bf16.gmra.mxu0 %v1712
  %v1748 = vpop.f32.mrf.mxu0
  %v1749 = vadd.f32 %v1693, %v1748
  %v1750 = vpop.f32.mrf.mxu0
  %v1751 = vpop.f32.mrf.mxu0
  %v1752 = vadd.f32 %v1696, %v1751
  %v1753 = vpop.f32.mrf.mxu0
  %1754 = vdwg.mxu0
  %s1755 = scalar_lea.vmem %s8, 1
  %v1756 = vld [vmem:[%s1755] sm:$0x1]
  %v1758 = vlaneseq
  %v1759 = vshrl.u32 %v1758, 7
  %v1760 = vsub.s32 0, %v1759
  %v1761 = vrot.slane %v1756, %v1760
  %v1763 = vadd.f32 %v1749, %v1761
  %v1764 = vadd.f32 %v1752, %v1761
  %v1765 = vadd.f32 %v1763, %v1087
  %v1766 = vadd.f32 %v1764, %v1088
  %v1767 = vsel %vm197, %v1765, 0.0
  %1768 = vadd.xlane.f32.xlu0 %v1767
  %v1769 = vpop.xlane.xlu0 %1768
  %v1770 = vsel %vm197, %v1766, 0.0
  %1771 = vadd.xlane.f32.xlu0 %v1770
  %v1772 = vpop.xlane.xlu0 %1771
  %v1773 = vmul.f32 %v1769, %v821
  %v1774 = vmul.f32 %v1772, %v821
  %v1775 = vsub.f32 %v1765, %v1773
  %v1776 = vsub.f32 %v1766, %v1774
  %v1777 = vmul.f32 %v1775, %v1775
  %v1778 = vmul.f32 %v1776, %v1776
  %v1779 = vsel %vm197, %v1777, 0.0
  %1780 = vadd.xlane.f32.xlu0 %v1779
  %v1781 = vpop.xlane.xlu0 %1780
  %v1782 = vsel %vm197, %v1778, 0.0
  %1783 = vadd.xlane.f32.xlu0 %v1782
  %v1784 = vpop.xlane.xlu0 %1783
  %v1785 = vmul.f32 %v1781, %v821
  %v1786 = vmul.f32 %v1784, %v821
  %v1787 = vadd.f32 %v1785, 1e-05
  %v1788 = vadd.f32 %v1786, 1e-05
  %v1789 = vrsqrt.pop %v1787
  %v1790 = vrsqrt.pop %v1788
  %v1791 = vmul.f32 %v1775, %v1789
  %v1792 = vmul.f32 %v1776, %v1790
  %s1793 = scalar_lea.vmem %s9, 1
  %v1794 = vld [vmem:[%s1793] sm:$0x1]
  %v1796 = vlaneseq
  %v1797 = vshrl.u32 %v1796, 7
  %v1798 = vsub.s32 0, %v1797
  %v1799 = vrot.slane %v1794, %v1798
  %v1801 = vmul.f32 %v1791, %v1799
  %v1802 = vmul.f32 %v1792, %v1799
  %s1803 = scalar_lea.vmem %s10, 1
  %v1804 = vld [vmem:[%s1803] sm:$0x1]
  %v1806 = vlaneseq
  %v1807 = vshrl.u32 %v1806, 7
  %v1808 = vsub.s32 0, %v1807
  %v1809 = vrot.slane %v1804, %v1808
  %v1811 = vadd.f32 %v1801, %v1809
  %v1812 = vadd.f32 %v1802, %v1809
  %v1813 = vpack.c.bf16 %v1812, %v1811
  %s1814 = scalar_lea.vmem %s11, 16
  %v1815 = vld [vmem:[%s1814] sm:$0xf]
  %v1816 = vld [vmem:[%s1814 + $0x4] sm:$0xf]
  %v1817 = vld [vmem:[%s1814 + $0x8] sm:$0xf]
  %v1818 = vld [vmem:[%s1814 + $0xc] sm:$0xf]
  %s1819 = scalar_lea.vmem %s12, 1
  %v1820 = vld [vmem:[%s1819] sm:$0x1]
  %v1822 = vlaneseq
  %v1823 = vshrl.u32 %v1822, 7
  %v1824 = vsub.s32 0, %v1823
  %v1825 = vrot.slane %v1820, %v1824
  %v1831 = vunpack.c.l.b16 %v1815
  %v1832 = vunpack.c.l.b16 %v1816
  %v1833 = vunpack.c.l.b16 %v1817
  %v1834 = vunpack.c.l.b16 %v1818
  %v1835 = vpack.c.b16 %v1832, %v1831
  %v1836 = vpack.c.b16 %v1834, %v1833
  %v1840 = vsel %vm197, %v1813, 0
  %1842 = vmatprep.subr.bf16.mxu0 0
  %1843 = vmatpush1.bf16.msra.mxu0 0
  %1844 = vmatprep.subr.bf16.mxu0 0
  %1845 = vmatpush1.bf16.msra.mxu0 0
  %1846 = vmatprep.subr.bf16.mxu0 0
  %1847 = vmatpush1.bf16.msra.mxu0 0
  %1848 = vmatprep.subr.bf16.mxu0 0
  %1849 = vmatpush1.bf16.msra.mxu0 0
  %1850 = vmatprep.subr.bf16.mxu0 0
  %1851 = vmatpush1.bf16.msra.mxu0 0
  %1852 = vmatprep.subr.bf16.mxu0 0
  %1853 = vmatpush1.bf16.msra.mxu0 0
  %1854 = vmatprep.subr.bf16.mxu0 0
  %1855 = vmatpush1.bf16.msra.mxu0 %v1836
  %1856 = vmatprep.subr.bf16.mxu0 0
  %1857 = vmatpush1.bf16.msra.mxu0 %v1835
  %1858 = vmatprep.subr.bf16.mxu0 0
  %1859 = vmatpush2.bf16.msra.mxu0 0
  %1860 = vmatprep.subr.bf16.mxu0 0
  %1861 = vmatpush2.bf16.msra.mxu0 0
  %1862 = vmatprep.subr.bf16.mxu0 0
  %1863 = vmatpush2.bf16.msra.mxu0 0
  %1864 = vmatprep.subr.bf16.mxu0 0
  %1865 = vmatpush2.bf16.msra.mxu0 0
  %1866 = vmatprep.subr.bf16.mxu0 0
  %1867 = vmatpush2.bf16.msra.mxu0 0
  %1868 = vmatprep.subr.bf16.mxu0 0
  %1869 = vmatpush2.bf16.msra.mxu0 0
  %1870 = vmatprep.subr.bf16.mxu0 0
  %1871 = vmatpush2.bf16.msra.mxu0 0
  %1872 = vmatprep.subr.bf16.mxu0 0
  %1873 = vmatpush2.bf16.msra.mxu0 0
  %1874 = vmatprep.mubr.bf16.mxu0 0
  %1875 = vmatmul.mubr.bf16.gmra.mxu0 %v1840
  %v1876 = vpop.f32.mrf.mxu0
  %v1877 = vadd.f32 %v1825, %v1876
  %v1878 = vpop.f32.mrf.mxu0
  %v1879 = vpop.f32.mrf.mxu0
  %v1880 = vadd.f32 %v1825, %v1879
  %v1881 = vpop.f32.mrf.mxu0
  %1882 = vdwg.mxu0
  %v1883 = vmax.f32 %v1877, 0.0
  %v1884 = vmax.f32 %v1880, 0.0
  %v1885 = vpack.c.bf16 %v1884, %v1883
  %s1886 = scalar_lea.vmem %s13, 64
  %v1887 = vld [vmem:[%s1886] sm:$0xf]
  %v1888 = vld [vmem:[%s1886 + $0x4] sm:$0xf]
  %v1889 = vld [vmem:[%s1886 + $0x8] sm:$0xf]
  %v1890 = vld [vmem:[%s1886 + $0xc] sm:$0xf]
  %v1891 = vld [vmem:[%s1886 + $0x10] sm:$0xf]
  %v1892 = vld [vmem:[%s1886 + $0x14] sm:$0xf]
  %v1893 = vld [vmem:[%s1886 + $0x18] sm:$0xf]
  %v1894 = vld [vmem:[%s1886 + $0x1c] sm:$0xf]
  %v1895 = vld [vmem:[%s1886 + $0x20] sm:$0xf]
  %v1896 = vld [vmem:[%s1886 + $0x24] sm:$0xf]
  %v1897 = vld [vmem:[%s1886 + $0x28] sm:$0xf]
  %v1898 = vld [vmem:[%s1886 + $0x2c] sm:$0xf]
  %v1899 = vld [vmem:[%s1886 + $0x30] sm:$0xf]
  %v1900 = vld [vmem:[%s1886 + $0x34] sm:$0xf]
  %v1901 = vld [vmem:[%s1886 + $0x38] sm:$0xf]
  %v1902 = vld [vmem:[%s1886 + $0x3c] sm:$0xf]
  %s1903 = scalar_lea.vmem %s14, 1
  %v1904 = vld [vmem:[%s1903] sm:$0x1]
  %v1906 = vlaneseq
  %v1907 = vshrl.u32 %v1906, 7
  %v1908 = vsub.s32 0, %v1907
  %v1909 = vrot.slane %v1904, %v1908
  %v1927 = vunpack.c.l.b16 %v1887
  %v1928 = vunpack.c.l.b16 %v1888
  %v1929 = vunpack.c.l.b16 %v1889
  %v1930 = vunpack.c.l.b16 %v1890
  %v1931 = vunpack.c.l.b16 %v1891
  %v1932 = vunpack.c.l.b16 %v1892
  %v1933 = vunpack.c.l.b16 %v1893
  %v1934 = vunpack.c.l.b16 %v1894
  %v1935 = vunpack.c.l.b16 %v1895
  %v1936 = vunpack.c.l.b16 %v1896
  %v1937 = vunpack.c.l.b16 %v1897
  %v1938 = vunpack.c.l.b16 %v1898
  %v1939 = vunpack.c.l.b16 %v1899
  %v1940 = vunpack.c.l.b16 %v1900
  %v1941 = vunpack.c.l.b16 %v1901
  %v1942 = vunpack.c.l.b16 %v1902
  %v1943 = vpack.c.b16 %v1928, %v1927
  %v1944 = vpack.c.b16 %v1930, %v1929
  %v1945 = vpack.c.b16 %v1932, %v1931
  %v1946 = vpack.c.b16 %v1934, %v1933
  %v1947 = vpack.c.b16 %v1936, %v1935
  %v1948 = vpack.c.b16 %v1938, %v1937
  %v1949 = vpack.c.b16 %v1940, %v1939
  %v1950 = vpack.c.b16 %v1942, %v1941
  %1959 = vmatprep.subr.bf16.mxu0 0
  %1960 = vmatpush1.bf16.msra.mxu0 %v1950
  %1961 = vmatprep.subr.bf16.mxu0 0
  %1962 = vmatpush1.bf16.msra.mxu0 %v1949
  %1963 = vmatprep.subr.bf16.mxu0 0
  %1964 = vmatpush1.bf16.msra.mxu0 %v1948
  %1965 = vmatprep.subr.bf16.mxu0 0
  %1966 = vmatpush1.bf16.msra.mxu0 %v1947
  %1967 = vmatprep.subr.bf16.mxu0 0
  %1968 = vmatpush1.bf16.msra.mxu0 %v1946
  %1969 = vmatprep.subr.bf16.mxu0 0
  %1970 = vmatpush1.bf16.msra.mxu0 %v1945
  %1971 = vmatprep.subr.bf16.mxu0 0
  %1972 = vmatpush1.bf16.msra.mxu0 %v1944
  %1973 = vmatprep.subr.bf16.mxu0 0
  %1974 = vmatpush1.bf16.msra.mxu0 %v1943
  %1975 = vmatprep.subr.bf16.mxu0 0
  %1976 = vmatpush2.bf16.msra.mxu0 0
  %1977 = vmatprep.subr.bf16.mxu0 0
  %1978 = vmatpush2.bf16.msra.mxu0 0
  %1979 = vmatprep.subr.bf16.mxu0 0
  %1980 = vmatpush2.bf16.msra.mxu0 0
  %1981 = vmatprep.subr.bf16.mxu0 0
  %1982 = vmatpush2.bf16.msra.mxu0 0
  %1983 = vmatprep.subr.bf16.mxu0 0
  %1984 = vmatpush2.bf16.msra.mxu0 0
  %1985 = vmatprep.subr.bf16.mxu0 0
  %1986 = vmatpush2.bf16.msra.mxu0 0
  %1987 = vmatprep.subr.bf16.mxu0 0
  %1988 = vmatpush2.bf16.msra.mxu0 0
  %1989 = vmatprep.subr.bf16.mxu0 0
  %1990 = vmatpush2.bf16.msra.mxu0 0
  %1991 = vmatprep.mubr.bf16.mxu0 0
  %1992 = vmatmul.mubr.bf16.gmra.mxu0 %v1885
  %v1993 = vpop.f32.mrf.mxu0
  %v1994 = vadd.f32 %v1909, %v1993
  %v1995 = vpop.f32.mrf.mxu0
  %v1996 = vpop.f32.mrf.mxu0
  %v1997 = vadd.f32 %v1909, %v1996
  %v1998 = vpop.f32.mrf.mxu0
  %1999 = vdwg.mxu0
  %v2000 = vadd.f32 %v1994, %v1811
  %v2001 = vadd.f32 %v1997, %v1812
  %v2002 = vsel %vm197, %v2000, 0.0
  %2003 = vadd.xlane.f32.xlu0 %v2002
  %v2004 = vpop.xlane.xlu0 %2003
  %v2005 = vsel %vm197, %v2001, 0.0
  %2006 = vadd.xlane.f32.xlu0 %v2005
  %v2007 = vpop.xlane.xlu0 %2006
  %v2008 = vmul.f32 %v2004, %v821
  %v2009 = vmul.f32 %v2007, %v821
  %v2010 = vsub.f32 %v2000, %v2008
  %v2011 = vsub.f32 %v2001, %v2009
  %v2012 = vmul.f32 %v2010, %v2010
  %v2013 = vmul.f32 %v2011, %v2011
  %v2014 = vsel %vm197, %v2012, 0.0
  %2015 = vadd.xlane.f32.xlu0 %v2014
  %v2016 = vpop.xlane.xlu0 %2015
  %v2017 = vsel %vm197, %v2013, 0.0
  %2018 = vadd.xlane.f32.xlu0 %v2017
  %v2019 = vpop.xlane.xlu0 %2018
  %v2020 = vmul.f32 %v2016, %v821
  %v2021 = vmul.f32 %v2019, %v821
  %v2022 = vadd.f32 %v2020, 1e-05
  %v2023 = vadd.f32 %v2021, 1e-05
  %v2024 = vrsqrt.pop %v2022
  %v2025 = vrsqrt.pop %v2023
  %v2026 = vmul.f32 %v2010, %v2024
  %v2027 = vmul.f32 %v2011, %v2025
  %s2028 = scalar_lea.vmem %s15, 1
  %v2029 = vld [vmem:[%s2028] sm:$0x1]
  %v2031 = vlaneseq
  %v2032 = vshrl.u32 %v2031, 7
  %v2033 = vsub.s32 0, %v2032
  %v2034 = vrot.slane %v2029, %v2033
  %v2036 = vmul.f32 %v2026, %v2034
  %v2037 = vmul.f32 %v2027, %v2034
  %s2038 = scalar_lea.vmem %s16, 1
  %v2039 = vld [vmem:[%s2038] sm:$0x1]
  %v2041 = vlaneseq
  %v2042 = vshrl.u32 %v2041, 7
  %v2043 = vsub.s32 0, %v2042
  %v2044 = vrot.slane %v2039, %v2043
  %v2046 = vadd.f32 %v2036, %v2044
  %v2047 = vadd.f32 %v2037, %v2044
  %v2048 = vpack.c.bf16 %v2047, %v2046
  %v2049 = vld [vmem:[%s17] sm:$0xf]
  %v2050 = vld [vmem:[%s17 + $0x4] sm:$0xf]
  %v2051 = vld [vmem:[%s17 + $0x8] sm:$0xf]
  %v2052 = vld [vmem:[%s17 + $0xc] sm:$0xf]
  %v2053 = vld [vmem:[%s18] sm:$0x1]
  %v2055 = vlaneseq
  %v2056 = vshrl.u32 %v2055, 7
  %v2057 = vsub.s32 0, %v2056
  %v2058 = vrot.slane %v2053, %v2057
  %v2064 = vunpack.c.l.b16 %v2049
  %v2065 = vunpack.c.l.b16 %v2050
  %v2066 = vunpack.c.l.b16 %v2051
  %v2067 = vunpack.c.l.b16 %v2052
  %v2068 = vpack.c.b16 %v2065, %v2064
  %v2069 = vpack.c.b16 %v2067, %v2066
  %v2073 = vsel %vm197, %v2048, 0
  %2075 = vmatprep.subr.bf16.mxu0 0
  %2076 = vmatpush1.bf16.msra.mxu0 0
  %2077 = vmatprep.subr.bf16.mxu0 0
  %2078 = vmatpush1.bf16.msra.mxu0 0
  %2079 = vmatprep.subr.bf16.mxu0 0
  %2080 = vmatpush1.bf16.msra.mxu0 0
  %2081 = vmatprep.subr.bf16.mxu0 0
  %2082 = vmatpush1.bf16.msra.mxu0 0
  %2083 = vmatprep.subr.bf16.mxu0 0
  %2084 = vmatpush1.bf16.msra.mxu0 0
  %2085 = vmatprep.subr.bf16.mxu0 0
  %2086 = vmatpush1.bf16.msra.mxu0 0
  %2087 = vmatprep.subr.bf16.mxu0 0
  %2088 = vmatpush1.bf16.msra.mxu0 %v2069
  %2089 = vmatprep.subr.bf16.mxu0 0
  %2090 = vmatpush1.bf16.msra.mxu0 %v2068
  %2091 = vmatprep.subr.bf16.mxu0 0
  %2092 = vmatpush2.bf16.msra.mxu0 0
  %2093 = vmatprep.subr.bf16.mxu0 0
  %2094 = vmatpush2.bf16.msra.mxu0 0
  %2095 = vmatprep.subr.bf16.mxu0 0
  %2096 = vmatpush2.bf16.msra.mxu0 0
  %2097 = vmatprep.subr.bf16.mxu0 0
  %2098 = vmatpush2.bf16.msra.mxu0 0
  %2099 = vmatprep.subr.bf16.mxu0 0
  %2100 = vmatpush2.bf16.msra.mxu0 0
  %2101 = vmatprep.subr.bf16.mxu0 0
  %2102 = vmatpush2.bf16.msra.mxu0 0
  %2103 = vmatprep.subr.bf16.mxu0 0
  %2104 = vmatpush2.bf16.msra.mxu0 0
  %2105 = vmatprep.subr.bf16.mxu0 0
  %2106 = vmatpush2.bf16.msra.mxu0 0
  %2107 = vmatprep.mubr.bf16.mxu0 0
  %2108 = vmatmul.mubr.bf16.gmra.mxu0 %v2073
  %v2109 = vpop.f32.mrf.mxu0
  %v2110 = vadd.f32 %v2058, %v2109
  %v2111 = vpop.f32.mrf.mxu0
  %v2112 = vpop.f32.mrf.mxu0
  %v2113 = vadd.f32 %v2058, %v2112
  %v2114 = vpop.f32.mrf.mxu0
  %2115 = vdwg.mxu0
  %v2116 = vpack.c.bf16 %v2113, %v2110
  %v2117 = vld [vmem:[%s19] sm:$0xf]
  %v2118 = vld [vmem:[%s19 + $0x4] sm:$0xf]
  %v2119 = vld [vmem:[%s19 + $0x8] sm:$0xf]
  %v2120 = vld [vmem:[%s19 + $0xc] sm:$0xf]
  %v2121 = vld [vmem:[%s20] sm:$0x1]
  %v2123 = vlaneseq
  %v2124 = vshrl.u32 %v2123, 7
  %v2125 = vsub.s32 0, %v2124
  %v2126 = vrot.slane %v2121, %v2125
  %v2132 = vunpack.c.l.b16 %v2117
  %v2133 = vunpack.c.l.b16 %v2118
  %v2134 = vunpack.c.l.b16 %v2119
  %v2135 = vunpack.c.l.b16 %v2120
  %v2136 = vpack.c.b16 %v2133, %v2132
  %v2137 = vpack.c.b16 %v2135, %v2134
  %v2141 = vsel %vm197, %v2116, 0
  %2143 = vmatprep.subr.bf16.mxu0 0
  %2144 = vmatpush1.bf16.msra.mxu0 0
  %2145 = vmatprep.subr.bf16.mxu0 0
  %2146 = vmatpush1.bf16.msra.mxu0 0
  %2147 = vmatprep.subr.bf16.mxu0 0
  %2148 = vmatpush1.bf16.msra.mxu0 0
  %2149 = vmatprep.subr.bf16.mxu0 0
  %2150 = vmatpush1.bf16.msra.mxu0 0
  %2151 = vmatprep.subr.bf16.mxu0 0
  %2152 = vmatpush1.bf16.msra.mxu0 0
  %2153 = vmatprep.subr.bf16.mxu0 0
  %2154 = vmatpush1.bf16.msra.mxu0 0
  %2155 = vmatprep.subr.bf16.mxu0 0
  %2156 = vmatpush1.bf16.msra.mxu0 %v2137
  %2157 = vmatprep.subr.bf16.mxu0 0
  %2158 = vmatpush1.bf16.msra.mxu0 %v2136
  %2159 = vmatprep.subr.bf16.mxu0 0
  %2160 = vmatpush2.bf16.msra.mxu0 0
  %2161 = vmatprep.subr.bf16.mxu0 0
  %2162 = vmatpush2.bf16.msra.mxu0 0
  %2163 = vmatprep.subr.bf16.mxu0 0
  %2164 = vmatpush2.bf16.msra.mxu0 0
  %2165 = vmatprep.subr.bf16.mxu0 0
  %2166 = vmatpush2.bf16.msra.mxu0 0
  %2167 = vmatprep.subr.bf16.mxu0 0
  %2168 = vmatpush2.bf16.msra.mxu0 0
  %2169 = vmatprep.subr.bf16.mxu0 0
  %2170 = vmatpush2.bf16.msra.mxu0 0
  %2171 = vmatprep.subr.bf16.mxu0 0
  %2172 = vmatpush2.bf16.msra.mxu0 0
  %2173 = vmatprep.subr.bf16.mxu0 0
  %2174 = vmatpush2.bf16.msra.mxu0 0
  %2175 = vmatprep.mubr.bf16.mxu0 0
  %2176 = vmatmul.mubr.bf16.gmra.mxu0 %v2141
  %v2177 = vpop.f32.mrf.mxu0
  %v2178 = vadd.f32 %v2126, %v2177
  %v2179 = vpop.f32.mrf.mxu0
  %v2180 = vpop.f32.mrf.mxu0
  %v2181 = vadd.f32 %v2126, %v2180
  %v2182 = vpop.f32.mrf.mxu0
  %2183 = vdwg.mxu0
  %v2184 = vmax.f32 %v2178, 0.0
  %v2185 = vmax.f32 %v2181, 0.0
  %v2186 = vpack.c.bf16 %v2185, %v2184
  %v2187 = vld [vmem:[%s21] sm:$0xf]
  %v2188 = vld [vmem:[%s21 + $0x4] sm:$0xf]
  %v2189 = vld [vmem:[%s21 + $0x8] sm:$0xf]
  %v2190 = vld [vmem:[%s21 + $0xc] sm:$0xf]
  %v2191 = vld [vmem:[%s22] sm:$0x1]
  %v2193 = vlaneseq
  %v2194 = vshrl.u32 %v2193, 7
  %v2195 = vsub.s32 0, %v2194
  %v2196 = vrot.slane %v2191, %v2195
  %v2202 = vunpack.c.l.b16 %v2187
  %v2203 = vunpack.c.l.b16 %v2188
  %v2204 = vunpack.c.l.b16 %v2189
  %v2205 = vunpack.c.l.b16 %v2190
  %v2206 = vpack.c.b16 %v2203, %v2202
  %v2207 = vpack.c.b16 %v2205, %v2204
  %v2211 = vsel %vm197, %v2186, 0
  %2213 = vmatprep.subr.bf16.mxu0 0
  %2214 = vmatpush1.bf16.msra.mxu0 0
  %2215 = vmatprep.subr.bf16.mxu0 0
  %2216 = vmatpush1.bf16.msra.mxu0 0
  %2217 = vmatprep.subr.bf16.mxu0 0
  %2218 = vmatpush1.bf16.msra.mxu0 0
  %2219 = vmatprep.subr.bf16.mxu0 0
  %2220 = vmatpush1.bf16.msra.mxu0 0
  %2221 = vmatprep.subr.bf16.mxu0 0
  %2222 = vmatpush1.bf16.msra.mxu0 0
  %2223 = vmatprep.subr.bf16.mxu0 0
  %2224 = vmatpush1.bf16.msra.mxu0 0
  %2225 = vmatprep.subr.bf16.mxu0 0
  %2226 = vmatpush1.bf16.msra.mxu0 %v2207
  %2227 = vmatprep.subr.bf16.mxu0 0
  %2228 = vmatpush1.bf16.msra.mxu0 %v2206
  %2229 = vmatprep.subr.bf16.mxu0 0
  %2230 = vmatpush2.bf16.msra.mxu0 0
  %2231 = vmatprep.subr.bf16.mxu0 0
  %2232 = vmatpush2.bf16.msra.mxu0 0
  %2233 = vmatprep.subr.bf16.mxu0 0
  %2234 = vmatpush2.bf16.msra.mxu0 0
  %2235 = vmatprep.subr.bf16.mxu0 0
  %2236 = vmatpush2.bf16.msra.mxu0 0
  %2237 = vmatprep.subr.bf16.mxu0 0
  %2238 = vmatpush2.bf16.msra.mxu0 0
  %2239 = vmatprep.subr.bf16.mxu0 0
  %2240 = vmatpush2.bf16.msra.mxu0 0
  %2241 = vmatprep.subr.bf16.mxu0 0
  %2242 = vmatpush2.bf16.msra.mxu0 0
  %2243 = vmatprep.subr.bf16.mxu0 0
  %2244 = vmatpush2.bf16.msra.mxu0 0
  %2245 = vmatprep.mubr.bf16.mxu0 0
  %2246 = vmatmul.mubr.bf16.gmra.mxu0 %v2211
  %v2247 = vpop.f32.mrf.mxu0
  %v2248 = vadd.f32 %v2196, %v2247
  %v2249 = vpop.f32.mrf.mxu0
  %v2250 = vpop.f32.mrf.mxu0
  %v2251 = vadd.f32 %v2196, %v2250
  %v2252 = vpop.f32.mrf.mxu0
  %2253 = vdwg.mxu0
  %v2254 = vmul.f32 %v2248, 1.442695
  %v2255 = vpow.pop %v2254
  %v2256 = vmul.f32 %v2251, 1.442695
  %v2257 = vpow.pop %v2256
  %v2258 = vadd.f32 %v2255, 1e-07
  %v2259 = vadd.f32 %v2257, 1e-07
  %v2260 = vadd.f32 %v2258, 1e-07
  %v2261 = vadd.f32 %v2259, 1e-07
  %v2262 = vrcp.pop %v2260
  %v2263 = vmul.f32 1.0, %v2262
  %v2264 = vrcp.pop %v2261
  %v2265 = vmul.f32 1.0, %v2264
  %2266 = vst [vmem:[%s23] sm:$0x3] 0.0
  %vm2267 = vcmask 523520
  %v2268 = vsel %vm2267, %v2263, 0.0
  %v2269 = vrot.slane %v2268, 4
  %v2270 = vadd.f32 %v2268, %v2269
  %v2271 = vrot.slane %v2270, 2
  %v2272 = vadd.f32 %v2270, %v2271
  %v2273 = vrot.slane %v2272, 1
  %v2274 = vadd.f32 %v2272, %v2273
  %v2275 = vadd.f32 %v2274, 0.9999998
  %2277 = vrot.lane.b32.xlu0 %v2263, 96
  %v2278 = vpop.permute.xlu0 %2277
  %v2280 = vmul.f32 %v2248, %v2278
  %v2281 = vsel %vm197, %v2280, 0.0
  %v2282 = vrot.slane %v2281, 4
  %v2283 = vadd.f32 %v2281, %v2282
  %v2284 = vrot.slane %v2283, 2
  %v2285 = vadd.f32 %v2283, %v2284
  %v2286 = vrot.slane %v2285, 1
  %v2287 = vadd.f32 %v2285, %v2286
  %v2288 = vrcp.pop %v2275
  %v2289 = vmul.f32 1.0, %v2288
  %2291 = vrot.lane.b32.xlu0 %v2289, 96
  %v2292 = vpop.permute.xlu0 %2291
  %v2294 = vmul.f32 %v2287, %v2292
  %v2295 = vld [vmem:[%s2] sm:$0x1]
  %v2296 = vrsqrt.pop %v2289
  %v2297 = vmul.f32 %v2289, %v2296
  %vm2298 = vcmp.eq.f32.partialorder %v2289, inf
  %v2299 = vsel %vm2298, %v2289, %v2297
  %vm2300 = vcmp.eq.f32.partialorder %v2289, 0.0
  %v2301 = vand.u32 %v2289, 2147483648
  %v2302 = vsel %vm2300, %v2301, %v2299
  %2304 = vrot.lane.b32.xlu0 %v2302, 96
  %v2305 = vpop.permute.xlu0 %2304
  %v2307 = vmul.f32 %v2295, %v2305
  %v2308 = vadd.f32 %v2307, %v2294
  %vm2309 = vcmask 253952
  %2310 = vst.msk [vmem:[%s23] sm:$0x1] %vm2309, %v2308
  %2312 = vrot.lane.b32.xlu0 %v2294, 32
  %v2313 = vpop.permute.xlu0 %2312
  %vm2315 = vcmask 516352
  %2316 = vst.msk [vmem:[%s23] sm:$0x1] %vm2315, %v2313
  %v2317 = vlog2.pop %v2275
  %v2318 = vmul.f32 %v2317, 0.6931472
  %v2319 = vsub.f32 0.0, %v2318
  %2321 = vrot.lane.b32.xlu0 %v2319, 32
  %v2322 = vpop.permute.xlu0 %2321
  %vm2324 = vcmask 778752
  %2325 = vst.msk [vmem:[%s23] sm:$0x1] %vm2324, %v2322
  %v2326 = vsel %vm2267, %v2265, 0.0
  %v2327 = vrot.slane %v2326, 4
  %v2328 = vadd.f32 %v2326, %v2327
  %v2329 = vrot.slane %v2328, 2
  %v2330 = vadd.f32 %v2328, %v2329
  %v2331 = vrot.slane %v2330, 1
  %v2332 = vadd.f32 %v2330, %v2331
  %v2333 = vadd.f32 %v2332, 0.9999998
  %2335 = vrot.lane.b32.xlu0 %v2265, 96
  %v2336 = vpop.permute.xlu0 %2335
  %v2338 = vmul.f32 %v2251, %v2336
  %v2339 = vsel %vm197, %v2338, 0.0
  %v2340 = vrot.slane %v2339, 4
  %v2341 = vadd.f32 %v2339, %v2340
  %v2342 = vrot.slane %v2341, 2
  %v2343 = vadd.f32 %v2341, %v2342
  %v2344 = vrot.slane %v2343, 1
  %v2345 = vadd.f32 %v2343, %v2344
  %v2346 = vrcp.pop %v2333
  %v2347 = vmul.f32 1.0, %v2346
  %2349 = vrot.lane.b32.xlu0 %v2347, 96
  %v2350 = vpop.permute.xlu0 %2349
  %v2352 = vmul.f32 %v2345, %v2350
  %v2353 = vld [vmem:[%s2 + $0x1] sm:$0x1]
  %v2354 = vrsqrt.pop %v2347
  %v2355 = vmul.f32 %v2347, %v2354
  %vm2356 = vcmp.eq.f32.partialorder %v2347, inf
  %v2357 = vsel %vm2356, %v2347, %v2355
  %vm2358 = vcmp.eq.f32.partialorder %v2347, 0.0
  %v2359 = vand.u32 %v2347, 2147483648
  %v2360 = vsel %vm2358, %v2359, %v2357
  %2362 = vrot.lane.b32.xlu0 %v2360, 96
  %v2363 = vpop.permute.xlu0 %2362
  %v2365 = vmul.f32 %v2353, %v2363
  %v2366 = vadd.f32 %v2365, %v2352
  %2367 = vst.msk [vmem:[%s23 + $0x1] sm:$0x1] %vm2309, %v2366
  %2369 = vrot.lane.b32.xlu0 %v2352, 32
  %v2370 = vpop.permute.xlu0 %2369
  %2372 = vst.msk [vmem:[%s23 + $0x1] sm:$0x1] %vm2315, %v2370
  %v2373 = vlog2.pop %v2333
  %v2374 = vmul.f32 %v2373, 0.6931472
  %v2375 = vsub.f32 0.0, %v2374
  %2377 = vrot.lane.b32.xlu0 %v2375, 32
  %v2378 = vpop.permute.xlu0 %2377
  %2380 = vst.msk [vmem:[%s23 + $0x1] sm:$0x1] %vm2324, %v2378
  // Predicated region
  $region94: #{transformer_encoder_forward.1} parent=0 // pred_check
    _
  $region95: #{transformer_encoder_forward.1} parent=0 // pred_check_branch
    %2382 = sbr.rel (0) target = $region97
  $region96: #{transformer_encoder_forward.1} parent=0 // pred_region
    _
  $region97: #{transformer_encoder_forward.1} parent=0 // pred_fallthru
    _
  // Predicated region
  $region98: #{transformer_encoder_forward.1} parent=0 // pred_check
    _
  $region99: #{transformer_encoder_forward.1} parent=0 // pred_check_branch
    %2384 = sbr.rel (0) target = $region101
  $region100: #{transformer_encoder_forward.1} parent=0 // pred_region
    _
  $region101: #{transformer_encoder_forward.1} parent=0 // pred_fallthru
    _

</llo_original>
